<compile_context>
chip_gen: v5e
topology: v5e:2x2
jax: 0.10.0
libtpu: 0.0.40
codegen_flags: <defaults>
</compile_context>

<pallas_src>
import functools
import math

import jax
import jax.numpy as jnp
from jax import lax
from jax.experimental import pallas as pl
from jax.experimental.pallas import tpu as pltpu

LN_EPS = 1e-5  # nn.LayerNorm default


def _layernorm(x, gamma, beta):
    # x: (S, D) f32, gamma/beta: (1, D) f32; biased variance = torch.nn.LayerNorm
    mu = jnp.mean(x, axis=-1, keepdims=True)
    var = jnp.mean((x - mu) ** 2, axis=-1, keepdims=True)
    return (x - mu) * lax.rsqrt(var + LN_EPS) * gamma + beta


# ----------------------------------------------------------------------------
# Fused decoder stack kernel.  grid = (B, L):
#   batch axis "parallel" (megacore), layer axis "arbitrary".
# The (S, D) activation lives in a bf16 VMEM scratch across the layer axis;
# per-layer weights are streamed via the l index_map.
# ----------------------------------------------------------------------------
def decoder_stack_kernel(x_ref, ln1g_ref, ln1b_ref, wqkv_ref, wo_ref,
                         ln2g_ref, ln2b_ref, w1_ref, b1_ref, w2_ref, b2_ref,
                         o_ref, act_ref, *, head_num):
    l = pl.program_id(1)

    @pl.when(l == 0)
    def _():
        act_ref[...] = x_ref[0]                            # load fresh batch row

    x = act_ref[...].astype(jnp.float32)                   # (S, D) f32 working copy
    S, D = x.shape
    d_k = D // head_num
    scale = 1.0 / math.sqrt(d_k)

    ln1g = ln1g_ref[0].astype(jnp.float32)                 # (1, D)
    ln1b = ln1b_ref[0].astype(jnp.float32)
    ln2g = ln2g_ref[0].astype(jnp.float32)
    ln2b = ln2b_ref[0].astype(jnp.float32)

    # --- addnorm1 (PyTorch uses the normalized x as the residual base)
    xn = _layernorm(x, ln1g, ln1b)
    xn_lp = xn.astype(jnp.bfloat16)                        # bf16 into the MXU

    # --- fused QKV projection: (S, D) @ (D, 3D), f32 accumulation.
    qkv = jnp.dot(xn_lp, wqkv_ref[0], preferred_element_type=jnp.float32)
    # Fold 1/sqrt(d_k) into q once (exact in f32), then keep q/k/v in bf16.
    q = (qkv[:, :D] * scale).astype(jnp.bfloat16)
    k = qkv[:, D:2 * D].astype(jnp.bfloat16)
    v = qkv[:, 2 * D:].astype(jnp.bfloat16)

    # Causal mask built once (not per head).  GenerateMask: lower-tri True.
    row = lax.broadcasted_iota(jnp.int32, (S, S), 0)
    col = lax.broadcasted_iota(jnp.int32, (S, S), 1)
    allowed = row >= col

    # --- multi-head attention: per-head scores/PV (bf16 MXU, f32 accumulate),
    #     bf16 head contexts concatenated once, single output projection.
    ctx_heads = []
    for h in range(head_num):                              # unrolled at trace time
        lo, hi = h * d_k, (h + 1) * d_k
        qh = q[:, lo:hi]                                   # (S, d_k) bf16
        kh = k[:, lo:hi]
        vh = v[:, lo:hi]
        # contract last dims directly -> no explicit K transpose materialized
        score = lax.dot_general(qh, kh, (((1,), (1,)), ((), ())),
                                preferred_element_type=jnp.float32)
        # torch: score.masked_fill(mask == 0, 1e-09)  (NOT -inf; keep exact)
        score = jnp.where(allowed, score, 1e-9)
        # explicit softmax; approx reciprocal rides the EUP slot
        m = jnp.max(score, axis=-1, keepdims=True)
        e = jnp.exp(score - m)
        p = e * pl.reciprocal(jnp.sum(e, axis=-1, keepdims=True), approx=True)
        ctx_h = jnp.dot(p.astype(jnp.bfloat16), vh,
                        preferred_element_type=jnp.float32)
        ctx_heads.append(ctx_h.astype(jnp.bfloat16))       # keep bf16 (vreg pressure)
    ctx = jnp.concatenate(ctx_heads, axis=-1)              # (S, D) bf16

    attn_proj = jnp.dot(ctx, wo_ref[0], preferred_element_type=jnp.float32)
    x2 = xn + attn_proj                                    # x = addnorm1(x) + drop(attn)

    # --- addnorm2 + feed-forward (dropout = identity in eval mode)
    xn2 = _layernorm(x2, ln2g, ln2b)
    h1 = jnp.dot(xn2.astype(jnp.bfloat16), w1_ref[0],
                 preferred_element_type=jnp.float32) + b1_ref[0].astype(jnp.float32)
    h2 = jnp.dot(h1.astype(jnp.bfloat16), w2_ref[0],
                 preferred_element_type=jnp.float32) + b2_ref[0].astype(jnp.float32)
    out = xn2 + h2                                         # output = addnorm2(x) + drop(fc)

    out_lp = out.astype(act_ref.dtype)
    act_ref[...] = out_lp                                  # feed the next layer

    @pl.when(l == pl.num_programs(1) - 1)
    def _():
        o_ref[0] = out_lp


# ----------------------------------------------------------------------------
# Final kernel: LayerNorm + logits projection on flattened (B*S, D) row tiles.
# ----------------------------------------------------------------------------
def final_kernel(x_ref, g_ref, b_ref, w_ref, bias_ref, o_ref):
    x = x_ref[...].astype(jnp.float32)                     # (TM, D)
    xn = _layernorm(x, g_ref[...].astype(jnp.float32),
                    b_ref[...].astype(jnp.float32))
    logits = jnp.dot(xn.astype(w_ref.dtype), w_ref[...],
                     preferred_element_type=jnp.float32) + bias_ref[...].astype(jnp.float32)
    o_ref[...] = logits.astype(o_ref.dtype)


# ----------------------------------------------------------------------------
# Wrappers
# ----------------------------------------------------------------------------
def run_decoder_stack(x, params, head_num):
    B, S, D = x.shape
    L = params["wqkv"].shape[0]
    d_ff = params["w1"].shape[2]
    kernel = functools.partial(decoder_stack_kernel, head_num=head_num)

    def wspec(shape):
        # per-layer stacked weight: stream block l, last two dims = full array dims
        ndim = len(shape)
        return pl.BlockSpec((1,) + tuple(shape[1:]),
                            lambda b, l, _nd=ndim: (l,) + (0,) * (_nd - 1))

    # VMEM budget (re-derived after layer fusion): ~260 KiB weights/layer
    # double-buffered + a few (S,D)/(S,3D) f32 tiles -> well under 32 MiB,
    # which itself is within v7x's 64 MiB physical VMEM.
    cparams = pltpu.CompilerParams(
        dimension_semantics=("parallel", "arbitrary"),
        vmem_limit_bytes=32 * 1024 * 1024,
    )

    return pl.pallas_call(
        kernel,
        out_shape=jax.ShapeDtypeStruct((B, S, D), x.dtype),
        grid=(B, L),
        in_specs=[
            pl.BlockSpec((1, S, D), lambda b, l: (b, 0, 0)),      # activations
            wspec((L, 1, D)), wspec((L, 1, D)),                   # ln1 gamma/beta
            wspec((L, D, 3 * D)),                                 # fused Wqkv
            wspec((L, D, D)),                                     # Wo
            wspec((L, 1, D)), wspec((L, 1, D)),                   # ln2 gamma/beta
            wspec((L, D, d_ff)), wspec((L, 1, d_ff)),             # fc1
            wspec((L, d_ff, D)), wspec((L, 1, D)),                # fc2
        ],
        out_specs=pl.BlockSpec((1, S, D), lambda b, l: (b, 0, 0)),
        scratch_shapes=[pltpu.VMEM((S, D), jnp.bfloat16)],        # resident activation
        compiler_params=cparams,
    )(x, params["ln1_g"], params["ln1_b"], params["wqkv"], params["wo"],
      params["ln2_g"], params["ln2_b"], params["w1"], params["b1"],
      params["w2"], params["b2"])


def run_final(x, params, *, tm=128):
    B, S, D = x.shape
    V = params["final_w"].shape[1]
    n_rows = B * S
    xf = x.reshape(n_rows, D)
    # Pad rows to a multiple of the tile instead of one giant tile (VMEM-safe
    # on v7x and keeps lane-dense 128-row pipelined tiles).
    pad = (-n_rows) % tm
    if pad:
        xf = jnp.pad(xf, ((0, pad), (0, 0)))
    n_padded = n_rows + pad

    logits = pl.pallas_call(
        final_kernel,
        out_shape=jax.ShapeDtypeStruct((n_padded, V), jnp.float32),
        grid=(n_padded // tm,),
        in_specs=[
            pl.BlockSpec((tm, D), lambda i: (i, 0)),
            pl.BlockSpec((1, D), lambda i: (0, 0)),
            pl.BlockSpec((1, D), lambda i: (0, 0)),
            pl.BlockSpec((D, V), lambda i: (0, 0)),
            pl.BlockSpec((1, V), lambda i: (0, 0)),
        ],
        out_specs=pl.BlockSpec((tm, V), lambda i: (i, 0)),
        compiler_params=pltpu.CompilerParams(
            dimension_semantics=("parallel",),
            vmem_limit_bytes=32 * 1024 * 1024,
        ),
    )(xf, params["final_ln_g"], params["final_ln_b"],
      params["final_w"], params["final_b"])
    if pad:
        logits = logits[:n_rows]
    return logits.reshape(B, S, V)


def mygpt_forward(tokens, params, head_num):
    # Embedding gather + positional add are parameter-setup glue in plain JAX.
    x = jnp.take(params["wte"], tokens, axis=0)            # (B, S, D) bf16
    x = x + params["wpe"][:, : tokens.shape[1], :]
    # drop(p=0.1): identity in eval mode (no RNG needed for inference).
    x = run_decoder_stack(x, params, head_num)             # all layers in one kernel
    return run_final(x, params)


# ----------------------------------------------------------------------------
# Deterministic parameter construction (synthetic weights, shapes per __init__).
# Matmul weights & embeddings stored bf16; LN params / biases stored f32.
# Per-layer weights are stacked along a leading L axis; Wq/Wk/Wv are fused.
# All Linear weights are pre-transposed to (in, out) so kernels do y = x @ W + b.
# ----------------------------------------------------------------------------
def init_params(key, vac_size, d_model, seq_len, d_ff, layer_num):
    keys = iter(jax.random.split(key, 8 + 8 * layer_num))

    def nrm(shape, scale=0.02, dtype=jnp.bfloat16):
        return (scale * jax.random.normal(next(keys), shape)).astype(dtype)

    params = {
        "wte": nrm((vac_size, d_model)),
        "wpe": nrm((1, seq_len, d_model)),
        "final_ln_g": jnp.ones((1, d_model), jnp.float32),
        "final_ln_b": jnp.zeros((1, d_model), jnp.float32),
        "final_w": nrm((d_model, vac_size)),               # (in, out)
        "final_b": jnp.zeros((1, vac_size), jnp.float32),
    }
    # Stacked per-layer weights (leading L axis) with fused QKV.
    wqkv, wo, w1, w2 = [], [], [], []
    for _ in range(layer_num):
        wq = nrm((d_model, d_model))
        wk = nrm((d_model, d_model))
        wv = nrm((d_model, d_model))
        wqkv.append(jnp.concatenate([wq, wk, wv], axis=1))  # (D, 3D)
        wo.append(nrm((d_model, d_model)))
        w1.append(nrm((d_model, d_ff)))
        w2.append(nrm((d_ff, d_model)))
    params.update({
        "wqkv": jnp.stack(wqkv),                            # (L, D, 3D) bf16
        "wo": jnp.stack(wo),                                 # (L, D, D)
        "w1": jnp.stack(w1),                                 # (L, D, d_ff)
        "w2": jnp.stack(w2),                                 # (L, d_ff, D)
        "ln1_g": jnp.ones((layer_num, 1, d_model), jnp.float32),
        "ln1_b": jnp.zeros((layer_num, 1, d_model), jnp.float32),
        "ln2_g": jnp.ones((layer_num, 1, d_model), jnp.float32),
        "ln2_b": jnp.zeros((layer_num, 1, d_model), jnp.float32),
        "b1": jnp.zeros((layer_num, 1, d_ff), jnp.float32),
        "b2": jnp.zeros((layer_num, 1, d_model), jnp.float32),
    })
    return params


if __name__ == "__main__":
    # Small but 128-aligned config (lane-dense tiles on TPU).
    vac_size, d_model, seq_len, head_num, d_ff, layer_num = 256, 128, 128, 4, 256, 2
    batch = 2

    key = jax.random.PRNGKey(0)
    pkey, tkey = jax.random.split(key)
    params = init_params(pkey, vac_size, d_model, seq_len, d_ff, layer_num)
    tokens = jax.random.randint(tkey, (batch, seq_len), 0, vac_size, jnp.int32)

    logits = mygpt_forward(tokens, params, head_num)
    logits = jax.block_until_ready(logits)
    assert logits.shape == (batch, seq_len, vac_size)
    assert bool(jnp.all(jnp.isfinite(logits)))
    print("KERNEL_OK")
</pallas_src>

<mosaic_0001>
module attributes {stable_mosaic.version = 11 : i64} {
  func.func @decoder_stack_kernel(%arg0: i32, %arg1: i32, %arg2: memref<1x128x128xbf16, #tpu.memory_space<vmem>>, %arg3: memref<1x1x128xf32, #tpu.memory_space<vmem>>, %arg4: memref<1x1x128xf32, #tpu.memory_space<vmem>>, %arg5: memref<1x128x384xbf16, #tpu.memory_space<vmem>>, %arg6: memref<1x128x128xbf16, #tpu.memory_space<vmem>>, %arg7: memref<1x1x128xf32, #tpu.memory_space<vmem>>, %arg8: memref<1x1x128xf32, #tpu.memory_space<vmem>>, %arg9: memref<1x128x256xbf16, #tpu.memory_space<vmem>>, %arg10: memref<1x1x256xf32, #tpu.memory_space<vmem>>, %arg11: memref<1x256x128xbf16, #tpu.memory_space<vmem>>, %arg12: memref<1x1x128xf32, #tpu.memory_space<vmem>>, %arg13: memref<1x128x128xbf16, #tpu.memory_space<vmem>>, %arg14: memref<128x128xbf16, #tpu.memory_space<vmem>>) attributes {dimension_semantics = [#tpu.dimension_semantics<parallel>, #tpu.dimension_semantics<arbitrary>], iteration_bounds = array<i64: 2, 2>, scalar_prefetch = 0 : i64, scratch_operands = 1 : i64, tpu.core_type = #tpu.core_type<tc>, window_params = [{transform_indices = @transform_0, window_bounds = array<i64: 1, 128, 128>}, {transform_indices = @transform_1, window_bounds = array<i64: 1, 1, 128>}, {transform_indices = @transform_2, window_bounds = array<i64: 1, 1, 128>}, {transform_indices = @transform_3, window_bounds = array<i64: 1, 128, 384>}, {transform_indices = @transform_4, window_bounds = array<i64: 1, 128, 128>}, {transform_indices = @transform_5, window_bounds = array<i64: 1, 1, 128>}, {transform_indices = @transform_6, window_bounds = array<i64: 1, 1, 128>}, {transform_indices = @transform_7, window_bounds = array<i64: 1, 128, 256>}, {transform_indices = @transform_8, window_bounds = array<i64: 1, 1, 256>}, {transform_indices = @transform_9, window_bounds = array<i64: 1, 256, 128>}, {transform_indices = @transform_10, window_bounds = array<i64: 1, 1, 128>}, {transform_indices = @transform_11, window_bounds = array<i64: 1, 128, 128>}]} {
    %c0_i32 = arith.constant 0 : i32
    %0 = arith.cmpi eq, %arg1, %c0_i32 : i32
    %1 = arith.extui %0 : i1 to i32
    %c0_i32_0 = arith.constant 0 : i32
    %2 = arith.cmpi ne, %1, %c0_i32_0 : i32
    scf.if %2 {
      %c0_69 = arith.constant 0 : index
      %c0_70 = arith.constant 0 : index
      %c0_71 = arith.constant 0 : index
      %175 = vector.load %arg2[%c0_69, %c0_70, %c0_71] : memref<1x128x128xbf16, #tpu.memory_space<vmem>>, vector<1x128x128xbf16>
      %176 = vector.shape_cast %175 : vector<1x128x128xbf16> to vector<128x128xbf16>
      %c0_72 = arith.constant 0 : index
      %c0_73 = arith.constant 0 : index
      %177 = vector.load %arg14[%c0_72, %c0_73] : memref<128x128xbf16, #tpu.memory_space<vmem>>, vector<128x128xbf16>
      tpu.vector_store %arg14[%c0_72, %c0_73], %176 {strides = array<i32>} : memref<128x128xbf16, #tpu.memory_space<vmem>>, vector<128x128xbf16>,
    } else {
    }
    %c0 = arith.constant 0 : index
    %c0_1 = arith.constant 0 : index
    %3 = vector.load %arg14[%c0, %c0_1] : memref<128x128xbf16, #tpu.memory_space<vmem>>, vector<128x128xbf16>
    %4 = arith.extf %3 : vector<128x128xbf16> to vector<128x128xf32>
    %c0_2 = arith.constant 0 : index
    %c0_3 = arith.constant 0 : index
    %c0_4 = arith.constant 0 : index
    %5 = vector.load %arg3[%c0_2, %c0_3, %c0_4] : memref<1x1x128xf32, #tpu.memory_space<vmem>>, vector<1x1x128xf32>
    %6 = vector.shape_cast %5 : vector<1x1x128xf32> to vector<1x128xf32>
    %c0_5 = arith.constant 0 : index
    %c0_6 = arith.constant 0 : index
    %c0_7 = arith.constant 0 : index
    %7 = vector.load %arg4[%c0_5, %c0_6, %c0_7] : memref<1x1x128xf32, #tpu.memory_space<vmem>>, vector<1x1x128xf32>
    %8 = vector.shape_cast %7 : vector<1x1x128xf32> to vector<1x128xf32>
    %c0_8 = arith.constant 0 : index
    %c0_9 = arith.constant 0 : index
    %c0_10 = arith.constant 0 : index
    %9 = vector.load %arg7[%c0_8, %c0_9, %c0_10] : memref<1x1x128xf32, #tpu.memory_space<vmem>>, vector<1x1x128xf32>
    %10 = vector.shape_cast %9 : vector<1x1x128xf32> to vector<1x128xf32>
    %c0_11 = arith.constant 0 : index
    %c0_12 = arith.constant 0 : index
    %c0_13 = arith.constant 0 : index
    %11 = vector.load %arg8[%c0_11, %c0_12, %c0_13] : memref<1x1x128xf32, #tpu.memory_space<vmem>>, vector<1x1x128xf32>
    %12 = vector.shape_cast %11 : vector<1x1x128xf32> to vector<1x128xf32>
    %cst = arith.constant dense<0.000000e+00> : vector<128xf32>
    %13 = vector.multi_reduction <add>, %4, %cst [1] : vector<128x128xf32> to vector<128xf32>
    %14 = vector.shape_cast %13 : vector<128xf32> to vector<128x1xf32>
    %cst_14 = arith.constant 1.280000e+02 : f32
    %15 = vector.broadcast %cst_14 : f32 to vector<128x1xf32>
    %16 = arith.divf %14, %15 : vector<128x1xf32>
    %17 = vector.broadcast %16 : vector<128x1xf32> to vector<128x128xf32>
    %18 = arith.subf %4, %17 : vector<128x128xf32>
    %19 = arith.mulf %18, %18 : vector<128x128xf32>
    %cst_15 = arith.constant dense<0.000000e+00> : vector<128xf32>
    %20 = vector.multi_reduction <add>, %19, %cst_15 [1] : vector<128x128xf32> to vector<128xf32>
    %21 = vector.shape_cast %20 : vector<128xf32> to vector<128x1xf32>
    %cst_16 = arith.constant 1.280000e+02 : f32
    %22 = vector.broadcast %cst_16 : f32 to vector<128x1xf32>
    %23 = arith.divf %21, %22 : vector<128x1xf32>
    %24 = vector.broadcast %16 : vector<128x1xf32> to vector<128x128xf32>
    %25 = arith.subf %4, %24 : vector<128x128xf32>
    %cst_17 = arith.constant 9.99999974E-6 : f32
    %26 = vector.broadcast %cst_17 : f32 to vector<128x1xf32>
    %27 = arith.addf %23, %26 : vector<128x1xf32>
    %28 = math.rsqrt %27 : vector<128x1xf32>
    %29 = vector.broadcast %28 : vector<128x1xf32> to vector<128x128xf32>
    %30 = arith.mulf %25, %29 : vector<128x128xf32>
    %31 = vector.broadcast %6 : vector<1x128xf32> to vector<128x128xf32>
    %32 = arith.mulf %30, %31 : vector<128x128xf32>
    %33 = vector.broadcast %8 : vector<1x128xf32> to vector<128x128xf32>
    %34 = arith.addf %32, %33 : vector<128x128xf32>
    %35 = arith.truncf %34 : vector<128x128xf32> to vector<128x128xbf16>
    %c0_18 = arith.constant 0 : index
    %c0_19 = arith.constant 0 : index
    %c0_20 = arith.constant 0 : index
    %36 = vector.load %arg5[%c0_18, %c0_19, %c0_20] : memref<1x128x384xbf16, #tpu.memory_space<vmem>>, vector<1x128x384xbf16>
    %37 = vector.shape_cast %36 : vector<1x128x384xbf16> to vector<128x384xbf16>
    %cst_21 = arith.constant dense<0.000000e+00> : vector<128x384xf32>
    %38 = tpu.matmul %35, %37, %cst_21 {dimension_numbers = #tpu.dot_dimension_numbers<[1], [0], [0], [1], [0, 0, 1, 1], [], []>} : vector<128x128xbf16>, vector<128x384xbf16>, vector<128x384xf32> -> vector<128x384xf32>
    %39 = vector.extract_strided_slice %38 {offsets = [0, 0], sizes = [128, 128], strides = [1, 1]} : vector<128x384xf32> to vector<128x128xf32>
    %cst_22 = arith.constant 0.176776692 : f32
    %40 = vector.broadcast %cst_22 : f32 to vector<128x128xf32>
    %41 = arith.mulf %39, %40 : vector<128x128xf32>
    %42 = arith.truncf %41 : vector<128x128xf32> to vector<128x128xbf16>
    %43 = vector.extract_strided_slice %38 {offsets = [0, 128], sizes = [128, 128], strides = [1, 1]} : vector<128x384xf32> to vector<128x128xf32>
    %44 = arith.truncf %43 : vector<128x128xf32> to vector<128x128xbf16>
    %45 = vector.extract_strided_slice %38 {offsets = [0, 256], sizes = [128, 128], strides = [1, 1]} : vector<128x384xf32> to vector<128x128xf32>
    %46 = arith.truncf %45 : vector<128x128xf32> to vector<128x128xbf16>
    %47 = tpu.iota {dimensions = array<i32: 0>} : vector<128x128xi32>
    %48 = tpu.iota {dimensions = array<i32: 1>} : vector<128x128xi32>
    %49 = arith.cmpi sge, %47, %48 : vector<128x128xi32>
    %50 = vector.extract_strided_slice %42 {offsets = [0, 0], sizes = [128, 32], strides = [1, 1]} : vector<128x128xbf16> to vector<128x32xbf16>
    %51 = vector.extract_strided_slice %44 {offsets = [0, 0], sizes = [128, 32], strides = [1, 1]} : vector<128x128xbf16> to vector<128x32xbf16>
    %52 = vector.extract_strided_slice %46 {offsets = [0, 0], sizes = [128, 32], strides = [1, 1]} : vector<128x128xbf16> to vector<128x32xbf16>
    %cst_23 = arith.constant dense<0.000000e+00> : vector<128x128xf32>
    %53 = tpu.matmul %50, %51, %cst_23 {dimension_numbers = #tpu.dot_dimension_numbers<[1], [1], [0], [0], [0, 0, 1, 0], [], []>} : vector<128x32xbf16>, vector<128x32xbf16>, vector<128x128xf32> -> vector<128x128xf32>
    %cst_24 = arith.constant 9.99999971E-10 : f32
    %54 = vector.broadcast %cst_24 : f32 to vector<128x128xf32>
    %55 = arith.select %49, %53, %54 : vector<128x128xi1>, vector<128x128xf32>
    %cst_25 = arith.constant dense<0xFF800000> : vector<128xf32>
    %56 = vector.multi_reduction <maximumf>, %55, %cst_25 [1] : vector<128x128xf32> to vector<128xf32>
    %57 = vector.shape_cast %56 : vector<128xf32> to vector<128x1xf32>
    %58 = vector.broadcast %57 : vector<128x1xf32> to vector<128x128xf32>
    %59 = arith.subf %55, %58 : vector<128x128xf32>
    %60 = math.exp %59 : vector<128x128xf32>
    %cst_26 = arith.constant dense<0.000000e+00> : vector<128xf32>
    %61 = vector.multi_reduction <add>, %60, %cst_26 [1] : vector<128x128xf32> to vector<128xf32>
    %62 = vector.shape_cast %61 : vector<128xf32> to vector<128x1xf32>
    %63 = tpu.reciprocal %62 {approx = true} : vector<128x1xf32> -> vector<128x1xf32>
    %64 = vector.broadcast %63 : vector<128x1xf32> to vector<128x128xf32>
    %65 = arith.mulf %60, %64 : vector<128x128xf32>
    %66 = arith.truncf %65 : vector<128x128xf32> to vector<128x128xbf16>
    %cst_27 = arith.constant dense<0.000000e+00> : vector<128x32xf32>
    %67 = tpu.matmul %66, %52, %cst_27 {dimension_numbers = #tpu.dot_dimension_numbers<[1], [0], [0], [1], [0, 0, 1, 1], [], []>} : vector<128x128xbf16>, vector<128x32xbf16>, vector<128x32xf32> -> vector<128x32xf32>
    %68 = arith.truncf %67 : vector<128x32xf32> to vector<128x32xbf16>
    %69 = vector.extract_strided_slice %42 {offsets = [0, 32], sizes = [128, 32], strides = [1, 1]} : vector<128x128xbf16> to vector<128x32xbf16>
    %70 = vector.extract_strided_slice %44 {offsets = [0, 32], sizes = [128, 32], strides = [1, 1]} : vector<128x128xbf16> to vector<128x32xbf16>
    %71 = vector.extract_strided_slice %46 {offsets = [0, 32], sizes = [128, 32], strides = [1, 1]} : vector<128x128xbf16> to vector<128x32xbf16>
    %cst_28 = arith.constant dense<0.000000e+00> : vector<128x128xf32>
    %72 = tpu.matmul %69, %70, %cst_28 {dimension_numbers = #tpu.dot_dimension_numbers<[1], [1], [0], [0], [0, 0, 1, 0], [], []>} : vector<128x32xbf16>, vector<128x32xbf16>, vector<128x128xf32> -> vector<128x128xf32>
    %cst_29 = arith.constant 9.99999971E-10 : f32
    %73 = vector.broadcast %cst_29 : f32 to vector<128x128xf32>
    %74 = arith.select %49, %72, %73 : vector<128x128xi1>, vector<128x128xf32>
    %cst_30 = arith.constant dense<0xFF800000> : vector<128xf32>
    %75 = vector.multi_reduction <maximumf>, %74, %cst_30 [1] : vector<128x128xf32> to vector<128xf32>
    %76 = vector.shape_cast %75 : vector<128xf32> to vector<128x1xf32>
    %77 = vector.broadcast %76 : vector<128x1xf32> to vector<128x128xf32>
    %78 = arith.subf %74, %77 : vector<128x128xf32>
    %79 = math.exp %78 : vector<128x128xf32>
    %cst_31 = arith.constant dense<0.000000e+00> : vector<128xf32>
    %80 = vector.multi_reduction <add>, %79, %cst_31 [1] : vector<128x128xf32> to vector<128xf32>
    %81 = vector.shape_cast %80 : vector<128xf32> to vector<128x1xf32>
    %82 = tpu.reciprocal %81 {approx = true} : vector<128x1xf32> -> vector<128x1xf32>
    %83 = vector.broadcast %82 : vector<128x1xf32> to vector<128x128xf32>
    %84 = arith.mulf %79, %83 : vector<128x128xf32>
    %85 = arith.truncf %84 : vector<128x128xf32> to vector<128x128xbf16>
    %cst_32 = arith.constant dense<0.000000e+00> : vector<128x32xf32>
    %86 = tpu.matmul %85, %71, %cst_32 {dimension_numbers = #tpu.dot_dimension_numbers<[1], [0], [0], [1], [0, 0, 1, 1], [], []>} : vector<128x128xbf16>, vector<128x32xbf16>, vector<128x32xf32> -> vector<128x32xf32>
    %87 = arith.truncf %86 : vector<128x32xf32> to vector<128x32xbf16>
    %88 = vector.extract_strided_slice %42 {offsets = [0, 64], sizes = [128, 32], strides = [1, 1]} : vector<128x128xbf16> to vector<128x32xbf16>
    %89 = vector.extract_strided_slice %44 {offsets = [0, 64], sizes = [128, 32], strides = [1, 1]} : vector<128x128xbf16> to vector<128x32xbf16>
    %90 = vector.extract_strided_slice %46 {offsets = [0, 64], sizes = [128, 32], strides = [1, 1]} : vector<128x128xbf16> to vector<128x32xbf16>
    %cst_33 = arith.constant dense<0.000000e+00> : vector<128x128xf32>
    %91 = tpu.matmul %88, %89, %cst_33 {dimension_numbers = #tpu.dot_dimension_numbers<[1], [1], [0], [0], [0, 0, 1, 0], [], []>} : vector<128x32xbf16>, vector<128x32xbf16>, vector<128x128xf32> -> vector<128x128xf32>
    %cst_34 = arith.constant 9.99999971E-10 : f32
    %92 = vector.broadcast %cst_34 : f32 to vector<128x128xf32>
    %93 = arith.select %49, %91, %92 : vector<128x128xi1>, vector<128x128xf32>
    %cst_35 = arith.constant dense<0xFF800000> : vector<128xf32>
    %94 = vector.multi_reduction <maximumf>, %93, %cst_35 [1] : vector<128x128xf32> to vector<128xf32>
    %95 = vector.shape_cast %94 : vector<128xf32> to vector<128x1xf32>
    %96 = vector.broadcast %95 : vector<128x1xf32> to vector<128x128xf32>
    %97 = arith.subf %93, %96 : vector<128x128xf32>
    %98 = math.exp %97 : vector<128x128xf32>
    %cst_36 = arith.constant dense<0.000000e+00> : vector<128xf32>
    %99 = vector.multi_reduction <add>, %98, %cst_36 [1] : vector<128x128xf32> to vector<128xf32>
    %100 = vector.shape_cast %99 : vector<128xf32> to vector<128x1xf32>
    %101 = tpu.reciprocal %100 {approx = true} : vector<128x1xf32> -> vector<128x1xf32>
    %102 = vector.broadcast %101 : vector<128x1xf32> to vector<128x128xf32>
    %103 = arith.mulf %98, %102 : vector<128x128xf32>
    %104 = arith.truncf %103 : vector<128x128xf32> to vector<128x128xbf16>
    %cst_37 = arith.constant dense<0.000000e+00> : vector<128x32xf32>
    %105 = tpu.matmul %104, %90, %cst_37 {dimension_numbers = #tpu.dot_dimension_numbers<[1], [0], [0], [1], [0, 0, 1, 1], [], []>} : vector<128x128xbf16>, vector<128x32xbf16>, vector<128x32xf32> -> vector<128x32xf32>
    %106 = arith.truncf %105 : vector<128x32xf32> to vector<128x32xbf16>
    %107 = vector.extract_strided_slice %42 {offsets = [0, 96], sizes = [128, 32], strides = [1, 1]} : vector<128x128xbf16> to vector<128x32xbf16>
    %108 = vector.extract_strided_slice %44 {offsets = [0, 96], sizes = [128, 32], strides = [1, 1]} : vector<128x128xbf16> to vector<128x32xbf16>
    %109 = vector.extract_strided_slice %46 {offsets = [0, 96], sizes = [128, 32], strides = [1, 1]} : vector<128x128xbf16> to vector<128x32xbf16>
    %cst_38 = arith.constant dense<0.000000e+00> : vector<128x128xf32>
    %110 = tpu.matmul %107, %108, %cst_38 {dimension_numbers = #tpu.dot_dimension_numbers<[1], [1], [0], [0], [0, 0, 1, 0], [], []>} : vector<128x32xbf16>, vector<128x32xbf16>, vector<128x128xf32> -> vector<128x128xf32>
    %cst_39 = arith.constant 9.99999971E-10 : f32
    %111 = vector.broadcast %cst_39 : f32 to vector<128x128xf32>
    %112 = arith.select %49, %110, %111 : vector<128x128xi1>, vector<128x128xf32>
    %cst_40 = arith.constant dense<0xFF800000> : vector<128xf32>
    %113 = vector.multi_reduction <maximumf>, %112, %cst_40 [1] : vector<128x128xf32> to vector<128xf32>
    %114 = vector.shape_cast %113 : vector<128xf32> to vector<128x1xf32>
    %115 = vector.broadcast %114 : vector<128x1xf32> to vector<128x128xf32>
    %116 = arith.subf %112, %115 : vector<128x128xf32>
    %117 = math.exp %116 : vector<128x128xf32>
    %cst_41 = arith.constant dense<0.000000e+00> : vector<128xf32>
    %118 = vector.multi_reduction <add>, %117, %cst_41 [1] : vector<128x128xf32> to vector<128xf32>
    %119 = vector.shape_cast %118 : vector<128xf32> to vector<128x1xf32>
    %120 = tpu.reciprocal %119 {approx = true} : vector<128x1xf32> -> vector<128x1xf32>
    %121 = vector.broadcast %120 : vector<128x1xf32> to vector<128x128xf32>
    %122 = arith.mulf %117, %121 : vector<128x128xf32>
    %123 = arith.truncf %122 : vector<128x128xf32> to vector<128x128xbf16>
    %cst_42 = arith.constant dense<0.000000e+00> : vector<128x32xf32>
    %124 = tpu.matmul %123, %109, %cst_42 {dimension_numbers = #tpu.dot_dimension_numbers<[1], [0], [0], [1], [0, 0, 1, 1], [], []>} : vector<128x128xbf16>, vector<128x32xbf16>, vector<128x32xf32> -> vector<128x32xf32>
    %125 = arith.truncf %124 : vector<128x32xf32> to vector<128x32xbf16>
    %126 = tpu.concatenate %68, %87, %106, %125 in 1 : vector<128x32xbf16>, vector<128x32xbf16>, vector<128x32xbf16>, vector<128x32xbf16> -> vector<128x128xbf16>
    %c0_43 = arith.constant 0 : index
    %c0_44 = arith.constant 0 : index
    %c0_45 = arith.constant 0 : index
    %127 = vector.load %arg6[%c0_43, %c0_44, %c0_45] : memref<1x128x128xbf16, #tpu.memory_space<vmem>>, vector<1x128x128xbf16>
    %128 = vector.shape_cast %127 : vector<1x128x128xbf16> to vector<128x128xbf16>
    %cst_46 = arith.constant dense<0.000000e+00> : vector<128x128xf32>
    %129 = tpu.matmul %126, %128, %cst_46 {dimension_numbers = #tpu.dot_dimension_numbers<[1], [0], [0], [1], [0, 0, 1, 1], [], []>} : vector<128x128xbf16>, vector<128x128xbf16>, vector<128x128xf32> -> vector<128x128xf32>
    %130 = arith.addf %34, %129 : vector<128x128xf32>
    %cst_47 = arith.constant dense<0.000000e+00> : vector<128xf32>
    %131 = vector.multi_reduction <add>, %130, %cst_47 [1] : vector<128x128xf32> to vector<128xf32>
    %132 = vector.shape_cast %131 : vector<128xf32> to vector<128x1xf32>
    %cst_48 = arith.constant 1.280000e+02 : f32
    %133 = vector.broadcast %cst_48 : f32 to vector<128x1xf32>
    %134 = arith.divf %132, %133 : vector<128x1xf32>
    %135 = vector.broadcast %134 : vector<128x1xf32> to vector<128x128xf32>
    %136 = arith.subf %130, %135 : vector<128x128xf32>
    %137 = arith.mulf %136, %136 : vector<128x128xf32>
    %cst_49 = arith.constant dense<0.000000e+00> : vector<128xf32>
    %138 = vector.multi_reduction <add>, %137, %cst_49 [1] : vector<128x128xf32> to vector<128xf32>
    %139 = vector.shape_cast %138 : vector<128xf32> to vector<128x1xf32>
    %cst_50 = arith.constant 1.280000e+02 : f32
    %140 = vector.broadcast %cst_50 : f32 to vector<128x1xf32>
    %141 = arith.divf %139, %140 : vector<128x1xf32>
    %142 = vector.broadcast %134 : vector<128x1xf32> to vector<128x128xf32>
    %143 = arith.subf %130, %142 : vector<128x128xf32>
    %cst_51 = arith.constant 9.99999974E-6 : f32
    %144 = vector.broadcast %cst_51 : f32 to vector<128x1xf32>
    %145 = arith.addf %141, %144 : vector<128x1xf32>
    %146 = math.rsqrt %145 : vector<128x1xf32>
    %147 = vector.broadcast %146 : vector<128x1xf32> to vector<128x128xf32>
    %148 = arith.mulf %143, %147 : vector<128x128xf32>
    %149 = vector.broadcast %10 : vector<1x128xf32> to vector<128x128xf32>
    %150 = arith.mulf %148, %149 : vector<128x128xf32>
    %151 = vector.broadcast %12 : vector<1x128xf32> to vector<128x128xf32>
    %152 = arith.addf %150, %151 : vector<128x128xf32>
    %153 = arith.truncf %152 : vector<128x128xf32> to vector<128x128xbf16>
    %c0_52 = arith.constant 0 : index
    %c0_53 = arith.constant 0 : index
    %c0_54 = arith.constant 0 : index
    %154 = vector.load %arg9[%c0_52, %c0_53, %c0_54] : memref<1x128x256xbf16, #tpu.memory_space<vmem>>, vector<1x128x256xbf16>
    %155 = vector.shape_cast %154 : vector<1x128x256xbf16> to vector<128x256xbf16>
    %cst_55 = arith.constant dense<0.000000e+00> : vector<128x256xf32>
    %156 = tpu.matmul %153, %155, %cst_55 {dimension_numbers = #tpu.dot_dimension_numbers<[1], [0], [0], [1], [0, 0, 1, 1], [], []>} : vector<128x128xbf16>, vector<128x256xbf16>, vector<128x256xf32> -> vector<128x256xf32>
    %c0_56 = arith.constant 0 : index
    %c0_57 = arith.constant 0 : index
    %c0_58 = arith.constant 0 : index
    %157 = vector.load %arg10[%c0_56, %c0_57, %c0_58] : memref<1x1x256xf32, #tpu.memory_space<vmem>>, vector<1x1x256xf32>
    %158 = vector.shape_cast %157 : vector<1x1x256xf32> to vector<1x256xf32>
    %159 = vector.broadcast %158 : vector<1x256xf32> to vector<128x256xf32>
    %160 = arith.addf %156, %159 : vector<128x256xf32>
    %161 = arith.truncf %160 : vector<128x256xf32> to vector<128x256xbf16>
    %c0_59 = arith.constant 0 : index
    %c0_60 = arith.constant 0 : index
    %c0_61 = arith.constant 0 : index
    %162 = vector.load %arg11[%c0_59, %c0_60, %c0_61] : memref<1x256x128xbf16, #tpu.memory_space<vmem>>, vector<1x256x128xbf16>
    %163 = vector.shape_cast %162 : vector<1x256x128xbf16> to vector<256x128xbf16>
    %cst_62 = arith.constant dense<0.000000e+00> : vector<128x128xf32>
    %164 = tpu.matmul %161, %163, %cst_62 {dimension_numbers = #tpu.dot_dimension_numbers<[1], [0], [0], [1], [0, 0, 1, 1], [], []>} : vector<128x256xbf16>, vector<256x128xbf16>, vector<128x128xf32> -> vector<128x128xf32>
    %c0_63 = arith.constant 0 : index
    %c0_64 = arith.constant 0 : index
    %c0_65 = arith.constant 0 : index
    %165 = vector.load %arg12[%c0_63, %c0_64, %c0_65] : memref<1x1x128xf32, #tpu.memory_space<vmem>>, vector<1x1x128xf32>
    %166 = vector.shape_cast %165 : vector<1x1x128xf32> to vector<1x128xf32>
    %167 = vector.broadcast %166 : vector<1x128xf32> to vector<128x128xf32>
    %168 = arith.addf %164, %167 : vector<128x128xf32>
    %169 = arith.addf %152, %168 : vector<128x128xf32>
    %170 = arith.truncf %169 : vector<128x128xf32> to vector<128x128xbf16>
    %c0_66 = arith.constant 0 : index
    %c0_67 = arith.constant 0 : index
    %171 = vector.load %arg14[%c0_66, %c0_67] : memref<128x128xbf16, #tpu.memory_space<vmem>>, vector<128x128xbf16>
    tpu.vector_store %arg14[%c0_66, %c0_67], %170 {strides = array<i32>} : memref<128x128xbf16, #tpu.memory_space<vmem>>, vector<128x128xbf16>,
    %c1_i32 = arith.constant 1 : i32
    %172 = arith.cmpi eq, %arg1, %c1_i32 : i32
    %173 = arith.extui %172 : i1 to i32
    %c0_i32_68 = arith.constant 0 : i32
    %174 = arith.cmpi ne, %173, %c0_i32_68 : i32
    scf.if %174 {
      %c0_69 = arith.constant 0 : index
      %c0_70 = arith.constant 0 : index
      %c0_71 = arith.constant 0 : index
      %175 = vector.load %arg13[%c0_69, %c0_70, %c0_71] : memref<1x128x128xbf16, #tpu.memory_space<vmem>>, vector<1x128x128xbf16>
      %176 = vector.shape_cast %175 : vector<1x128x128xbf16> to vector<128x128xbf16>
      %177 = vector.shape_cast %170 : vector<128x128xbf16> to vector<1x128x128xbf16>
      tpu.vector_store %arg13[%c0_69, %c0_70, %c0_71], %177 {strides = array<i32>} : memref<1x128x128xbf16, #tpu.memory_space<vmem>>, vector<1x128x128xbf16>,
    } else {
    }
    return
  }
  func.func @transform_0(%arg0: i32, %arg1: i32) -> (i32, i32, i32) {
    %c0_i32 = arith.constant 0 : i32
    %c0_i32_0 = arith.constant 0 : i32
    %c0_i32_1 = arith.constant 0 : i32
    return %arg0, %c0_i32, %c0_i32_0 : i32, i32, i32
  }
  func.func @transform_1(%arg0: i32, %arg1: i32) -> (i32, i32, i32) {
    %c0_i32 = arith.constant 0 : i32
    %c0_i32_0 = arith.constant 0 : i32
    %c0_i32_1 = arith.constant 0 : i32
    return %arg1, %c0_i32, %c0_i32_0 : i32, i32, i32
  }
  func.func @transform_2(%arg0: i32, %arg1: i32) -> (i32, i32, i32) {
    %c0_i32 = arith.constant 0 : i32
    %c0_i32_0 = arith.constant 0 : i32
    %c0_i32_1 = arith.constant 0 : i32
    return %arg1, %c0_i32, %c0_i32_0 : i32, i32, i32
  }
  func.func @transform_3(%arg0: i32, %arg1: i32) -> (i32, i32, i32) {
    %c0_i32 = arith.constant 0 : i32
    %c0_i32_0 = arith.constant 0 : i32
    %c0_i32_1 = arith.constant 0 : i32
    return %arg1, %c0_i32, %c0_i32_0 : i32, i32, i32
  }
  func.func @transform_4(%arg0: i32, %arg1: i32) -> (i32, i32, i32) {
    %c0_i32 = arith.constant 0 : i32
    %c0_i32_0 = arith.constant 0 : i32
    %c0_i32_1 = arith.constant 0 : i32
    return %arg1, %c0_i32, %c0_i32_0 : i32, i32, i32
  }
  func.func @transform_5(%arg0: i32, %arg1: i32) -> (i32, i32, i32) {
    %c0_i32 = arith.constant 0 : i32
    %c0_i32_0 = arith.constant 0 : i32
    %c0_i32_1 = arith.constant 0 : i32
    return %arg1, %c0_i32, %c0_i32_0 : i32, i32, i32
  }
  func.func @transform_6(%arg0: i32, %arg1: i32) -> (i32, i32, i32) {
    %c0_i32 = arith.constant 0 : i32
    %c0_i32_0 = arith.constant 0 : i32
    %c0_i32_1 = arith.constant 0 : i32
    return %arg1, %c0_i32, %c0_i32_0 : i32, i32, i32
  }
  func.func @transform_7(%arg0: i32, %arg1: i32) -> (i32, i32, i32) {
    %c0_i32 = arith.constant 0 : i32
    %c0_i32_0 = arith.constant 0 : i32
    %c0_i32_1 = arith.constant 0 : i32
    return %arg1, %c0_i32, %c0_i32_0 : i32, i32, i32
  }
  func.func @transform_8(%arg0: i32, %arg1: i32) -> (i32, i32, i32) {
    %c0_i32 = arith.constant 0 : i32
    %c0_i32_0 = arith.constant 0 : i32
    %c0_i32_1 = arith.constant 0 : i32
    return %arg1, %c0_i32, %c0_i32_0 : i32, i32, i32
  }
  func.func @transform_9(%arg0: i32, %arg1: i32) -> (i32, i32, i32) {
    %c0_i32 = arith.constant 0 : i32
    %c0_i32_0 = arith.constant 0 : i32
    %c0_i32_1 = arith.constant 0 : i32
    return %arg1, %c0_i32, %c0_i32_0 : i32, i32, i32
  }
  func.func @transform_10(%arg0: i32, %arg1: i32) -> (i32, i32, i32) {
    %c0_i32 = arith.constant 0 : i32
    %c0_i32_0 = arith.constant 0 : i32
    %c0_i32_1 = arith.constant 0 : i32
    return %arg1, %c0_i32, %c0_i32_0 : i32, i32, i32
  }
  func.func @transform_11(%arg0: i32, %arg1: i32) -> (i32, i32, i32) {
    %c0_i32 = arith.constant 0 : i32
    %c0_i32_0 = arith.constant 0 : i32
    %c0_i32_1 = arith.constant 0 : i32
    return %arg0, %c0_i32, %c0_i32_0 : i32, i32, i32
  }
}

</mosaic_0001>

<llo_original>
// kernel: tpu_custom_call.1
$region0: #{tpu_custom_call.1}
  #allocation0 [shape = 'u32[]', space=smem, size = 0x4, offset = 0x4, fixed_abs, tag = 'smem constant byte address 0x4 - core index']
  #allocation1 [shape = 'u32[72,128]{1,0:T(1,128)}', space=vmem, size = 0x9000, scoped, tag = 'internal scratch']
  #allocation2 [shape = 'bf16[128,128]{1,0:T(8,128)(2,1)}', space=vmem, size = 0x8000, scoped, tag = 'scratch operand']
  %s0 = inlined_call_operand.hbm [shape: bf16[2,128,128], index: 0, kind: input, shape index: {}]
  %s1 = inlined_call_operand.hbm [shape: f32[2,1,128], index: 1, kind: input, shape index: {}]
  %s2 = inlined_call_operand.hbm [shape: f32[2,1,128], index: 2, kind: input, shape index: {}]
  %s3 = inlined_call_operand.hbm [shape: bf16[2,128,384], index: 3, kind: input, shape index: {}]
  %s4 = inlined_call_operand.hbm [shape: bf16[2,128,128], index: 4, kind: input, shape index: {}]
  %s5 = inlined_call_operand.vmem [shape: f32[2,1,128], index: 5, kind: input, shape index: {}]
  %s6 = inlined_call_operand.hbm [shape: f32[2,1,128], index: 6, kind: input, shape index: {}]
  %s7 = inlined_call_operand.hbm [shape: bf16[2,128,256], index: 7, kind: input, shape index: {}]
  %s8 = inlined_call_operand.vmem [shape: f32[2,1,256], index: 8, kind: input, shape index: {}]
  %s9 = inlined_call_operand.hbm [shape: bf16[2,256,128], index: 9, kind: input, shape index: {}]
  %s10 = inlined_call_operand.vmem [shape: f32[2,1,128], index: 10, kind: input, shape index: {}]
  %s11 = inlined_call_operand.hbm [shape: bf16[2,128,128], index: 11, kind: output, shape index: {}]
  %s12 = sld [smem:[#allocation0]]
  $region117: #{tpu_custom_call.1} parent=0
    _
  %s14 = ssub.s32 1, %s12
  %s15 = scalar_select 0, %s14, %s12
  $region1: #{tpu_custom_call.1} parent=0
    #allocation3 [shape = 'u8[65536]{0}', space=vmem, size = 0x10000, scoped, tag = 'input window, operand 0']
    #allocation4 [shape = 's32[2]{0}', space=sflag, size = 0x8, scoped, tag = 'scoped memory for tpu_custom_call.1']
    #allocation5 [shape = 's32[2]{0}', space=sflag, size = 0x8, scoped, tag = 'scoped memory for tpu_custom_call.1']
    #allocation6 [shape = 'u8[1024]{0}', space=vmem, size = 0x400, scoped, tag = 'input window, operand 1']
    #allocation7 [shape = 's32[2]{0}', space=sflag, size = 0x8, scoped, tag = 'scoped memory for tpu_custom_call.1']
    #allocation8 [shape = 'u8[1024]{0}', space=vmem, size = 0x400, scoped, tag = 'input window, operand 2']
    #allocation9 [shape = 'u8[196608]{0}', space=vmem, size = 0x30000, scoped, tag = 'input window, operand 3']
    #allocation10 [shape = 's32[2]{0}', space=sflag, size = 0x8, scoped, tag = 'scoped memory for tpu_custom_call.1']
    #allocation11 [shape = 'u8[65536]{0}', space=vmem, size = 0x10000, scoped, tag = 'input window, operand 4']
    #allocation12 [shape = 'u8[1024]{0}', space=vmem, size = 0x400, scoped, tag = 'input window, operand 6']
    #allocation13 [shape = 's32[2]{0}', space=sflag, size = 0x8, scoped, tag = 'scoped memory for tpu_custom_call.1']
    #allocation14 [shape = 'u8[131072]{0}', space=vmem, size = 0x20000, scoped, tag = 'input window, operand 7']
    #allocation15 [shape = 'u8[131072]{0}', space=vmem, size = 0x20000, scoped, tag = 'input window, operand 9']
    #allocation16 [shape = 's32[2]{0}', space=sflag, size = 0x8, scoped, tag = 'scoped memory for tpu_custom_call.1']
    #allocation17 [shape = 'u8[65536]{0}', space=vmem, size = 0x10000, scoped, tag = 'output window, operand 0']
    %16 = vsyncpa [#allocation4], 0
    %s17 = scalar_lea.sflag [#allocation4], 1
    %18 = vsyncpa %s17, 0
    %19 = vsyncpa [#allocation7], 0
    %s20 = scalar_lea.sflag [#allocation7], 1
    %21 = vsyncpa %s20, 0
    %22 = vsyncpa [#allocation10], 0
    %s23 = scalar_lea.sflag [#allocation10], 1
    %24 = vsyncpa %s23, 0
    %25 = vsyncpa [#allocation13], 0
    %s26 = scalar_lea.sflag [#allocation13], 1
    %27 = vsyncpa %s26, 0
    %28 = vsyncpa [#allocation16], 0
    %s29 = scalar_lea.sflag [#allocation16], 1
    %30 = vsyncpa %s29, 0
    %31 = vsyncpa [#allocation5], 0
    %s32 = scalar_lea.sflag [#allocation5], 1
    %33 = vsyncpa %s32, 0
    loop: start=0, step=1, limit=6
    $region2: #{tpu_custom_call.1} parent=1 // loop_pre_header
      _
    $region3: #{tpu_custom_call.1} parent=1 // loop_header
      %s35 = sphi 0, %s39
      %p36 = scmp.ge.s32.totalorder %s35, 6
      %s42 = sphi 0, %s54
      %s43 = sphi 0, %s50
      %s44 = sphi 0, %s42
      %s45 = sphi 0, %s43
      %s46 = sphi 0, %s44
      %s47 = sphi 0, %s45
      %s57 = sphi 0, %s59
      %s60 = sphi 0, %s57
      %s61 = sphi 0, %s60
      %s77 = sphi 0, %s61
      %s83 = sphi 0, %s85
      %s86 = sphi 0, %s83
      %s87 = sphi 0, %s86
      %s103 = sphi 0, %s87
      %s109 = sphi 0, %s111
      %s112 = sphi 0, %s109
      %s113 = sphi 0, %s112
      %s129 = sphi 0, %s113
      %s135 = sphi 0, %s137
      %s138 = sphi 0, %s135
      %s139 = sphi 0, %s138
      %s155 = sphi 0, %s139
      %s161 = sphi 0, %s163
      %s164 = sphi 0, %s161
      %s165 = sphi 0, %s164
      %s181 = sphi 0, %s165
      %s187 = sphi 0, %s189
      %s190 = sphi 0, %s187
      %s191 = sphi 0, %s190
      %s207 = sphi 0, %s191
      %s213 = sphi 0, %s215
      %s216 = sphi 0, %s213
      %s217 = sphi 0, %s216
      %s233 = sphi 0, %s217
      %s239 = sphi 0, %s241
      %s242 = sphi 0, %s239
      %s243 = sphi 0, %s242
      %s259 = sphi 0, %s243
      %s265 = sphi 0, %s267
      %s268 = sphi 0, %s265
      %s269 = sphi 0, %s268
      %s285 = sphi 0, %s269
      %s291 = sphi 0, %s293
      %s294 = sphi 0, %s291
      %s295 = sphi 0, %s294
      %s311 = sphi 0, %s295
      %s317 = sphi 0, %s319
      %s320 = sphi 0, %s317
      %s321 = sphi 0, %s320
      %s337 = sphi 0, %s321
      %s343 = sphi 0, %s345
      %s346 = sphi 0, %s343
      %s347 = sphi 0, %s346
      %s363 = sphi 0, %s347
    $region4: #{tpu_custom_call.1} parent=1 // loop_header_branch
      %38 = sbr.rel (%p36) target = $region8
    $region5: #{tpu_custom_call.1} parent=1 // loop_body
      %s40 = ssub.s32 %s35, 1
      %s41 = ssub.s32 %s35, 2
      %s48 = sadd.s32 1, %s43
      %p49 = scmp.ge.s32.totalorder %s48, 2
      %s50 = scalar_select %p49, 0, %s48
      %s51 = sadd.s32 1, %s42
      %s52 = scalar_select %p49, %s51, %s42
      %p53 = scmp.ge.s32.totalorder %s52, 2
      %s54 = scalar_select %p53, 0, %s52
      %s55 = ssub.s32 %s42, %s54
      %p56 = scmp.eq.s32.totalorder %s55, 0
      %s58 = sadd.s32 %s57, 1
      %s59 = scalar_select %p56, %s57, %s58
      %p62 = pneg %p56
      %p63 = scmp.eq.s32.totalorder %s35, 3
      %p64 = por %p62, %p63
      %p65 = scmp.ne.s32.totalorder %s57, %s60
      %p66 = scmp.eq.s32.totalorder %s35, 0
      %p67 = por %p65, %p66
      %p68 = scmp.ne.s32.totalorder %s57, %s60
      %p69 = scmp.eq.s32.totalorder %s40, 3
      %p70 = por %p68, %p69
      %p71 = scmp.ne.s32.totalorder %s60, %s61
      %p72 = scmp.eq.s32.totalorder %s40, 0
      %p73 = por %p71, %p72
      %p74 = scmp.ne.s32.totalorder %s60, %s61
      %p75 = scmp.eq.s32.totalorder %s41, 3
      %p76 = por %p74, %p75
      %p78 = scmp.ne.s32.totalorder %s61, %s77
      %p79 = scmp.eq.s32.totalorder %s41, 0
      %p80 = por %p78, %p79
      %s81 = ssub.s32 %s43, %s50
      %p82 = scmp.eq.s32.totalorder %s81, 0
      %s84 = sadd.s32 %s83, 1
      %s85 = scalar_select %p82, %s83, %s84
      %p88 = pneg %p82
      %p89 = scmp.eq.s32.totalorder %s35, 3
      %p90 = por %p88, %p89
      %p91 = scmp.ne.s32.totalorder %s83, %s86
      %p92 = scmp.eq.s32.totalorder %s35, 0
      %p93 = por %p91, %p92
      %p94 = scmp.ne.s32.totalorder %s83, %s86
      %p95 = scmp.eq.s32.totalorder %s40, 3
      %p96 = por %p94, %p95
      %p97 = scmp.ne.s32.totalorder %s86, %s87
      %p98 = scmp.eq.s32.totalorder %s40, 0
      %p99 = por %p97, %p98
      %p100 = scmp.ne.s32.totalorder %s86, %s87
      %p101 = scmp.eq.s32.totalorder %s41, 3
      %p102 = por %p100, %p101
      %p104 = scmp.ne.s32.totalorder %s87, %s103
      %p105 = scmp.eq.s32.totalorder %s41, 0
      %p106 = por %p104, %p105
      %s107 = ssub.s32 %s43, %s50
      %p108 = scmp.eq.s32.totalorder %s107, 0
      %s110 = sadd.s32 %s109, 1
      %s111 = scalar_select %p108, %s109, %s110
      %p114 = pneg %p108
      %p115 = scmp.eq.s32.totalorder %s35, 3
      %p116 = por %p114, %p115
      %p117 = scmp.ne.s32.totalorder %s109, %s112
      %p118 = scmp.eq.s32.totalorder %s35, 0
      %p119 = por %p117, %p118
      %p120 = scmp.ne.s32.totalorder %s109, %s112
      %p121 = scmp.eq.s32.totalorder %s40, 3
      %p122 = por %p120, %p121
      %p123 = scmp.ne.s32.totalorder %s112, %s113
      %p124 = scmp.eq.s32.totalorder %s40, 0
      %p125 = por %p123, %p124
      %p126 = scmp.ne.s32.totalorder %s112, %s113
      %p127 = scmp.eq.s32.totalorder %s41, 3
      %p128 = por %p126, %p127
      %p130 = scmp.ne.s32.totalorder %s113, %s129
      %p131 = scmp.eq.s32.totalorder %s41, 0
      %p132 = por %p130, %p131
      %s133 = ssub.s32 %s43, %s50
      %p134 = scmp.eq.s32.totalorder %s133, 0
      %s136 = sadd.s32 %s135, 1
      %s137 = scalar_select %p134, %s135, %s136
      %p140 = pneg %p134
      %p141 = scmp.eq.s32.totalorder %s35, 3
      %p142 = por %p140, %p141
      %p143 = scmp.ne.s32.totalorder %s135, %s138
      %p144 = scmp.eq.s32.totalorder %s35, 0
      %p145 = por %p143, %p144
      %p146 = scmp.ne.s32.totalorder %s135, %s138
      %p147 = scmp.eq.s32.totalorder %s40, 3
      %p148 = por %p146, %p147
      %p149 = scmp.ne.s32.totalorder %s138, %s139
      %p150 = scmp.eq.s32.totalorder %s40, 0
      %p151 = por %p149, %p150
      %p152 = scmp.ne.s32.totalorder %s138, %s139
      %p153 = scmp.eq.s32.totalorder %s41, 3
      %p154 = por %p152, %p153
      %p156 = scmp.ne.s32.totalorder %s139, %s155
      %p157 = scmp.eq.s32.totalorder %s41, 0
      %p158 = por %p156, %p157
      %s159 = ssub.s32 %s43, %s50
      %p160 = scmp.eq.s32.totalorder %s159, 0
      %s162 = sadd.s32 %s161, 1
      %s163 = scalar_select %p160, %s161, %s162
      %p166 = pneg %p160
      %p167 = scmp.eq.s32.totalorder %s35, 3
      %p168 = por %p166, %p167
      %p169 = scmp.ne.s32.totalorder %s161, %s164
      %p170 = scmp.eq.s32.totalorder %s35, 0
      %p171 = por %p169, %p170
      %p172 = scmp.ne.s32.totalorder %s161, %s164
      %p173 = scmp.eq.s32.totalorder %s40, 3
      %p174 = por %p172, %p173
      %p175 = scmp.ne.s32.totalorder %s164, %s165
      %p176 = scmp.eq.s32.totalorder %s40, 0
      %p177 = por %p175, %p176
      %p178 = scmp.ne.s32.totalorder %s164, %s165
      %p179 = scmp.eq.s32.totalorder %s41, 3
      %p180 = por %p178, %p179
      %p182 = scmp.ne.s32.totalorder %s165, %s181
      %p183 = scmp.eq.s32.totalorder %s41, 0
      %p184 = por %p182, %p183
      %s185 = ssub.s32 %s43, %s50
      %p186 = scmp.eq.s32.totalorder %s185, 0
      %s188 = sadd.s32 %s187, 1
      %s189 = scalar_select %p186, %s187, %s188
      %p192 = pneg %p186
      %p193 = scmp.eq.s32.totalorder %s35, 3
      %p194 = por %p192, %p193
      %p195 = scmp.ne.s32.totalorder %s187, %s190
      %p196 = scmp.eq.s32.totalorder %s35, 0
      %p197 = por %p195, %p196
      %p198 = scmp.ne.s32.totalorder %s187, %s190
      %p199 = scmp.eq.s32.totalorder %s40, 3
      %p200 = por %p198, %p199
      %p201 = scmp.ne.s32.totalorder %s190, %s191
      %p202 = scmp.eq.s32.totalorder %s40, 0
      %p203 = por %p201, %p202
      %p204 = scmp.ne.s32.totalorder %s190, %s191
      %p205 = scmp.eq.s32.totalorder %s41, 3
      %p206 = por %p204, %p205
      %p208 = scmp.ne.s32.totalorder %s191, %s207
      %p209 = scmp.eq.s32.totalorder %s41, 0
      %p210 = por %p208, %p209
      %s211 = ssub.s32 %s43, %s50
      %p212 = scmp.eq.s32.totalorder %s211, 0
      %s214 = sadd.s32 %s213, 1
      %s215 = scalar_select %p212, %s213, %s214
      %p218 = pneg %p212
      %p219 = scmp.eq.s32.totalorder %s35, 3
      %p220 = por %p218, %p219
      %p221 = scmp.ne.s32.totalorder %s213, %s216
      %p222 = scmp.eq.s32.totalorder %s35, 0
      %p223 = por %p221, %p222
      %p224 = scmp.ne.s32.totalorder %s213, %s216
      %p225 = scmp.eq.s32.totalorder %s40, 3
      %p226 = por %p224, %p225
      %p227 = scmp.ne.s32.totalorder %s216, %s217
      %p228 = scmp.eq.s32.totalorder %s40, 0
      %p229 = por %p227, %p228
      %p230 = scmp.ne.s32.totalorder %s216, %s217
      %p231 = scmp.eq.s32.totalorder %s41, 3
      %p232 = por %p230, %p231
      %p234 = scmp.ne.s32.totalorder %s217, %s233
      %p235 = scmp.eq.s32.totalorder %s41, 0
      %p236 = por %p234, %p235
      %s237 = ssub.s32 %s43, %s50
      %p238 = scmp.eq.s32.totalorder %s237, 0
      %s240 = sadd.s32 %s239, 1
      %s241 = scalar_select %p238, %s239, %s240
      %p244 = pneg %p238
      %p245 = scmp.eq.s32.totalorder %s35, 3
      %p246 = por %p244, %p245
      %p247 = scmp.ne.s32.totalorder %s239, %s242
      %p248 = scmp.eq.s32.totalorder %s35, 0
      %p249 = por %p247, %p248
      %p250 = scmp.ne.s32.totalorder %s239, %s242
      %p251 = scmp.eq.s32.totalorder %s40, 3
      %p252 = por %p250, %p251
      %p253 = scmp.ne.s32.totalorder %s242, %s243
      %p254 = scmp.eq.s32.totalorder %s40, 0
      %p255 = por %p253, %p254
      %p256 = scmp.ne.s32.totalorder %s242, %s243
      %p257 = scmp.eq.s32.totalorder %s41, 3
      %p258 = por %p256, %p257
      %p260 = scmp.ne.s32.totalorder %s243, %s259
      %p261 = scmp.eq.s32.totalorder %s41, 0
      %p262 = por %p260, %p261
      %s263 = ssub.s32 %s43, %s50
      %p264 = scmp.eq.s32.totalorder %s263, 0
      %s266 = sadd.s32 %s265, 1
      %s267 = scalar_select %p264, %s265, %s266
      %p270 = pneg %p264
      %p271 = scmp.eq.s32.totalorder %s35, 3
      %p272 = por %p270, %p271
      %p273 = scmp.ne.s32.totalorder %s265, %s268
      %p274 = scmp.eq.s32.totalorder %s35, 0
      %p275 = por %p273, %p274
      %p276 = scmp.ne.s32.totalorder %s265, %s268
      %p277 = scmp.eq.s32.totalorder %s40, 3
      %p278 = por %p276, %p277
      %p279 = scmp.ne.s32.totalorder %s268, %s269
      %p280 = scmp.eq.s32.totalorder %s40, 0
      %p281 = por %p279, %p280
      %p282 = scmp.ne.s32.totalorder %s268, %s269
      %p283 = scmp.eq.s32.totalorder %s41, 3
      %p284 = por %p282, %p283
      %p286 = scmp.ne.s32.totalorder %s269, %s285
      %p287 = scmp.eq.s32.totalorder %s41, 0
      %p288 = por %p286, %p287
      %s289 = ssub.s32 %s43, %s50
      %p290 = scmp.eq.s32.totalorder %s289, 0
      %s292 = sadd.s32 %s291, 1
      %s293 = scalar_select %p290, %s291, %s292
      %p296 = pneg %p290
      %p297 = scmp.eq.s32.totalorder %s35, 3
      %p298 = por %p296, %p297
      %p299 = scmp.ne.s32.totalorder %s291, %s294
      %p300 = scmp.eq.s32.totalorder %s35, 0
      %p301 = por %p299, %p300
      %p302 = scmp.ne.s32.totalorder %s291, %s294
      %p303 = scmp.eq.s32.totalorder %s40, 3
      %p304 = por %p302, %p303
      %p305 = scmp.ne.s32.totalorder %s294, %s295
      %p306 = scmp.eq.s32.totalorder %s40, 0
      %p307 = por %p305, %p306
      %p308 = scmp.ne.s32.totalorder %s294, %s295
      %p309 = scmp.eq.s32.totalorder %s41, 3
      %p310 = por %p308, %p309
      %p312 = scmp.ne.s32.totalorder %s295, %s311
      %p313 = scmp.eq.s32.totalorder %s41, 0
      %p314 = por %p312, %p313
      %s315 = ssub.s32 %s43, %s50
      %p316 = scmp.eq.s32.totalorder %s315, 0
      %s318 = sadd.s32 %s317, 1
      %s319 = scalar_select %p316, %s317, %s318
      %p322 = pneg %p316
      %p323 = scmp.eq.s32.totalorder %s35, 3
      %p324 = por %p322, %p323
      %p325 = scmp.ne.s32.totalorder %s317, %s320
      %p326 = scmp.eq.s32.totalorder %s35, 0
      %p327 = por %p325, %p326
      %p328 = scmp.ne.s32.totalorder %s317, %s320
      %p329 = scmp.eq.s32.totalorder %s40, 3
      %p330 = por %p328, %p329
      %p331 = scmp.ne.s32.totalorder %s320, %s321
      %p332 = scmp.eq.s32.totalorder %s40, 0
      %p333 = por %p331, %p332
      %p334 = scmp.ne.s32.totalorder %s320, %s321
      %p335 = scmp.eq.s32.totalorder %s41, 3
      %p336 = por %p334, %p335
      %p338 = scmp.ne.s32.totalorder %s321, %s337
      %p339 = scmp.eq.s32.totalorder %s41, 0
      %p340 = por %p338, %p339
      %s341 = ssub.s32 %s42, %s54
      %p342 = scmp.eq.s32.totalorder %s341, 0
      %s344 = sadd.s32 %s343, 1
      %s345 = scalar_select %p342, %s343, %s344
      %p348 = pneg %p342
      %p349 = scmp.eq.s32.totalorder %s35, 3
      %p350 = por %p348, %p349
      %p351 = scmp.ne.s32.totalorder %s343, %s346
      %p352 = scmp.eq.s32.totalorder %s35, 0
      %p353 = por %p351, %p352
      %p354 = scmp.ne.s32.totalorder %s343, %s346
      %p355 = scmp.eq.s32.totalorder %s40, 3
      %p356 = por %p354, %p355
      %p357 = scmp.ne.s32.totalorder %s346, %s347
      %p358 = scmp.eq.s32.totalorder %s40, 0
      %p359 = por %p357, %p358
      %p360 = scmp.ne.s32.totalorder %s346, %s347
      %p361 = scmp.eq.s32.totalorder %s41, 3
      %p362 = por %p360, %p361
      %p364 = scmp.ne.s32.totalorder %s347, %s363
      %p365 = scmp.eq.s32.totalorder %s41, 0
      %p366 = por %p364, %p365
      %p367 = scmp.le.s32.totalorder 1, %s35
      %p368 = scmp.lt.s32.totalorder %s35, 5
      %p369 = pnand %p367, %p368
      %p370 = pneg %p369
      // Predicated region
      $region9: #{tpu_custom_call.1} parent=5 // pred_check
        _
      $region10: #{tpu_custom_call.1} parent=5 // pred_check_branch
        %372 = sbr.rel (%p369) target = $region12
      $region11: #{tpu_custom_call.1} parent=5 // pred_region
        %s373 = ssub.s32 %s35, 1
      $region12: #{tpu_custom_call.1} parent=5 // pred_fallthru
        _
      %p374 = scmp.lt.s32.totalorder %s35, 4
      // Predicated region
      $region13: #{tpu_custom_call.1} parent=5 // pred_check
        %p375 = pneg %p374
      $region14: #{tpu_custom_call.1} parent=5 // pred_check_branch
        %377 = sbr.rel (%p375) target = $region16
      $region15: #{tpu_custom_call.1} parent=5 // pred_region
        // Predicated region
        $region17: #{tpu_custom_call.1} parent=15 // pred_check
          %p378 = pneg %p67
        $region18: #{tpu_custom_call.1} parent=15 // pred_check_branch
          %380 = sbr.rel (%p378) target = $region20
        $region19: #{tpu_custom_call.1} parent=15 // pred_region
          %s381 = sand.u32 %s57, 1
          %s382 = scalar_lea.sflag [#allocation4], %s381
          %s383 = sand.u32 %s57, 1
          %s384 = smul.addr %s383, 64
          %s385 = scalar_lea.vmem [#allocation3], %s384
          %387 = vsyncadd %s382, 0
          %s388 = smul.addr %s42, 16
          %s389 = smul.addr %s388, 4
          %s390 = scalar_lea.hbm %s0, %s389
          %s391 = sshll.u32 %s390, 4
          %s392 = int_to_ptr.hbm [resolvable:$true] %s391
          %s393 = sshll.u32 %s385, 4
          %s394 = int_to_ptr.vmem [resolvable:$true] %s393
          %399 = dma.hbm_to_vmem [thread:$0]  %s392, 1024, %s394, %s382, 64, 64, 4
        $region20: #{tpu_custom_call.1} parent=15 // pred_fallthru
          _
        // Predicated region
        $region21: #{tpu_custom_call.1} parent=15 // pred_check
          %p400 = pneg %p93
        $region22: #{tpu_custom_call.1} parent=15 // pred_check_branch
          %402 = sbr.rel (%p400) target = $region24
        $region23: #{tpu_custom_call.1} parent=15 // pred_region
          %s403 = sand.u32 %s35, 1
          %s404 = scalar_lea.sflag [#allocation7], %s403
          %s405 = sand.u32 %s83, 1
          %s406 = scalar_lea.vmem [#allocation6], %s405
          %408 = vsyncadd %s404, 0
          %s409 = scalar_lea.hbm %s1, %s43
          %s411 = sshll.u32 %s409, 4
          %s412 = int_to_ptr.hbm [resolvable:$true] %s411
          %s413 = sshll.u32 %s406, 4
          %s414 = int_to_ptr.vmem [resolvable:$true] %s413
          %416 = dma.hbm_to_vmem [thread:$0]  %s412, 16, %s414, %s404
        $region24: #{tpu_custom_call.1} parent=15 // pred_fallthru
          _
        // Predicated region
        $region25: #{tpu_custom_call.1} parent=15 // pred_check
          %p417 = pneg %p119
        $region26: #{tpu_custom_call.1} parent=15 // pred_check_branch
          %419 = sbr.rel (%p417) target = $region28
        $region27: #{tpu_custom_call.1} parent=15 // pred_region
          %s420 = sand.u32 %s35, 1
          %s421 = scalar_lea.sflag [#allocation7], %s420
          %s422 = sand.u32 %s109, 1
          %s423 = scalar_lea.vmem [#allocation8], %s422
          %425 = vsyncadd %s421, 0
          %s426 = scalar_lea.hbm %s2, %s43
          %s428 = sshll.u32 %s426, 4
          %s429 = int_to_ptr.hbm [resolvable:$true] %s428
          %s430 = sshll.u32 %s423, 4
          %s431 = int_to_ptr.vmem [resolvable:$true] %s430
          %433 = dma.hbm_to_vmem [thread:$0]  %s429, 16, %s431, %s421
        $region28: #{tpu_custom_call.1} parent=15 // pred_fallthru
          _
        // Predicated region
        $region29: #{tpu_custom_call.1} parent=15 // pred_check
          %p434 = pneg %p145
        $region30: #{tpu_custom_call.1} parent=15 // pred_check_branch
          %436 = sbr.rel (%p434) target = $region32
        $region31: #{tpu_custom_call.1} parent=15 // pred_region
          %s437 = sand.u32 %s35, 1
          %s438 = scalar_lea.sflag [#allocation10], %s437
          %s439 = sand.u32 %s135, 1
          %s440 = smul.addr %s439, 192
          %s441 = scalar_lea.vmem [#allocation9], %s440
          %443 = vsyncadd %s438, 0
          %s444 = smul.addr %s43, 48
          %s445 = smul.addr %s444, 4
          %s446 = scalar_lea.hbm %s3, %s445
          %s447 = sshll.u32 %s446, 4
          %s448 = int_to_ptr.hbm [resolvable:$true] %s447
          %s449 = sshll.u32 %s441, 4
          %s450 = int_to_ptr.vmem [resolvable:$true] %s449
          %455 = dma.hbm_to_vmem [thread:$0]  %s448, 3072, %s450, %s438, 192, 192, 12
        $region32: #{tpu_custom_call.1} parent=15 // pred_fallthru
          _
        // Predicated region
        $region33: #{tpu_custom_call.1} parent=15 // pred_check
          %p456 = pneg %p171
        $region34: #{tpu_custom_call.1} parent=15 // pred_check_branch
          %458 = sbr.rel (%p456) target = $region36
        $region35: #{tpu_custom_call.1} parent=15 // pred_region
          %s459 = sand.u32 %s35, 1
          %s460 = scalar_lea.sflag [#allocation10], %s459
          %s461 = sand.u32 %s161, 1
          %s462 = smul.addr %s461, 64
          %s463 = scalar_lea.vmem [#allocation11], %s462
          %465 = vsyncadd %s460, 0
          %s466 = smul.addr %s43, 16
          %s467 = smul.addr %s466, 4
          %s468 = scalar_lea.hbm %s4, %s467
          %s469 = sshll.u32 %s468, 4
          %s470 = int_to_ptr.hbm [resolvable:$true] %s469
          %s471 = sshll.u32 %s463, 4
          %s472 = int_to_ptr.vmem [resolvable:$true] %s471
          %477 = dma.hbm_to_vmem [thread:$0]  %s470, 1024, %s472, %s460, 64, 64, 4
        $region36: #{tpu_custom_call.1} parent=15 // pred_fallthru
          _
        // Predicated region
        $region37: #{tpu_custom_call.1} parent=15 // pred_check
          %p478 = pneg %p197
        $region38: #{tpu_custom_call.1} parent=15 // pred_check_branch
          %480 = sbr.rel (%p478) target = $region40
        $region39: #{tpu_custom_call.1} parent=15 // pred_region
          %p481 = scmp.lt.s32.totalorder %s43, 1
          %s482 = scalar_select %p481, %s43, 1
          %s483 = scalar_lea.vmem %s5, %s482
        $region40: #{tpu_custom_call.1} parent=15 // pred_fallthru
          _
        // Predicated region
        $region41: #{tpu_custom_call.1} parent=15 // pred_check
          %p484 = pneg %p223
        $region42: #{tpu_custom_call.1} parent=15 // pred_check_branch
          %486 = sbr.rel (%p484) target = $region44
        $region43: #{tpu_custom_call.1} parent=15 // pred_region
          %s487 = sand.u32 %s35, 1
          %s488 = scalar_lea.sflag [#allocation13], %s487
          %s489 = sand.u32 %s213, 1
          %s490 = scalar_lea.vmem [#allocation12], %s489
          %492 = vsyncadd %s488, 0
          %s493 = scalar_lea.hbm %s6, %s43
          %s495 = sshll.u32 %s493, 4
          %s496 = int_to_ptr.hbm [resolvable:$true] %s495
          %s497 = sshll.u32 %s490, 4
          %s498 = int_to_ptr.vmem [resolvable:$true] %s497
          %500 = dma.hbm_to_vmem [thread:$0]  %s496, 16, %s498, %s488
        $region44: #{tpu_custom_call.1} parent=15 // pred_fallthru
          _
        // Predicated region
        $region45: #{tpu_custom_call.1} parent=15 // pred_check
          %p501 = pneg %p249
        $region46: #{tpu_custom_call.1} parent=15 // pred_check_branch
          %503 = sbr.rel (%p501) target = $region48
        $region47: #{tpu_custom_call.1} parent=15 // pred_region
          %s504 = sand.u32 %s35, 1
          %s505 = scalar_lea.sflag [#allocation13], %s504
          %s506 = sand.u32 %s239, 1
          %s507 = smul.addr %s506, 128
          %s508 = scalar_lea.vmem [#allocation14], %s507
          %510 = vsyncadd %s505, 0
          %s511 = smul.addr %s43, 32
          %s512 = smul.addr %s511, 4
          %s513 = scalar_lea.hbm %s7, %s512
          %s514 = sshll.u32 %s513, 4
          %s515 = int_to_ptr.hbm [resolvable:$true] %s514
          %s516 = sshll.u32 %s508, 4
          %s517 = int_to_ptr.vmem [resolvable:$true] %s516
          %522 = dma.hbm_to_vmem [thread:$0]  %s515, 2048, %s517, %s505, 128, 128, 8
        $region48: #{tpu_custom_call.1} parent=15 // pred_fallthru
          _
        // Predicated region
        $region49: #{tpu_custom_call.1} parent=15 // pred_check
          %p523 = pneg %p275
        $region50: #{tpu_custom_call.1} parent=15 // pred_check_branch
          %525 = sbr.rel (%p523) target = $region52
        $region51: #{tpu_custom_call.1} parent=15 // pred_region
          %p526 = scmp.lt.s32.totalorder %s43, 1
          %s527 = scalar_select %p526, %s43, 1
          %s528 = smul.addr %s527, 2
          %s529 = scalar_lea.vmem %s8, %s528
        $region52: #{tpu_custom_call.1} parent=15 // pred_fallthru
          _
        // Predicated region
        $region53: #{tpu_custom_call.1} parent=15 // pred_check
          %p530 = pneg %p301
        $region54: #{tpu_custom_call.1} parent=15 // pred_check_branch
          %532 = sbr.rel (%p530) target = $region56
        $region55: #{tpu_custom_call.1} parent=15 // pred_region
          %s533 = sand.u32 %s291, 1
          %s534 = scalar_lea.sflag [#allocation16], %s533
          %s535 = sand.u32 %s291, 1
          %s536 = smul.addr %s535, 128
          %s537 = scalar_lea.vmem [#allocation15], %s536
          %539 = vsyncadd %s534, 0
          %s540 = smul.addr %s43, 32
          %s541 = smul.addr %s540, 4
          %s542 = scalar_lea.hbm %s9, %s541
          %s543 = sshll.u32 %s542, 4
          %s544 = int_to_ptr.hbm [resolvable:$true] %s543
          %s545 = sshll.u32 %s537, 4
          %s546 = int_to_ptr.vmem [resolvable:$true] %s545
          %551 = dma.hbm_to_vmem [thread:$0]  %s544, 2048, %s546, %s534, 64, 64, 4
        $region56: #{tpu_custom_call.1} parent=15 // pred_fallthru
          _
        // Predicated region
        $region57: #{tpu_custom_call.1} parent=15 // pred_check
          %p552 = pneg %p327
        $region58: #{tpu_custom_call.1} parent=15 // pred_check_branch
          %554 = sbr.rel (%p552) target = $region60
        $region59: #{tpu_custom_call.1} parent=15 // pred_region
          %p555 = scmp.lt.s32.totalorder %s43, 1
          %s556 = scalar_select %p555, %s43, 1
          %s557 = scalar_lea.vmem %s10, %s556
        $region60: #{tpu_custom_call.1} parent=15 // pred_fallthru
          _
      $region16: #{tpu_custom_call.1} parent=5 // pred_fallthru
        _
      %p558 = scmp.le.s32.totalorder 1, %s35
      %p559 = scmp.lt.s32.totalorder %s35, 5
      %p560 = pnand %p558, %p559
      %p561 = pneg %p560
      // Predicated region
      $region61: #{tpu_custom_call.1} parent=5 // pred_check
        _
      $region62: #{tpu_custom_call.1} parent=5 // pred_check_branch
        %563 = sbr.rel (%p560) target = $region64
      $region63: #{tpu_custom_call.1} parent=5 // pred_region
        %s564 = ssub.s32 %s35, 1
        %s565 = sand.u32 %s60, 1
        %s566 = scalar_lea.sflag [#allocation4], %s565
        %s567 = sand.u32 %s60, 1
        %s568 = smul.addr %s567, 64
        %s569 = scalar_lea.vmem [#allocation3], %s568
        // Predicated region
        $region65: #{tpu_custom_call.1} parent=63 // pred_check
          %p570 = pneg %p73
        $region66: #{tpu_custom_call.1} parent=63 // pred_check_branch
          %572 = sbr.rel (%p570) target = $region68
        $region67: #{tpu_custom_call.1} parent=63 // pred_region
          %574 = dma.done %s566, 1024
        $region68: #{tpu_custom_call.1} parent=63 // pred_fallthru
          _
        %s575 = sand.u32 %s40, 1
        %s576 = scalar_lea.sflag [#allocation7], %s575
        %s577 = sand.u32 %s86, 1
        %s578 = scalar_lea.vmem [#allocation6], %s577
        // Predicated region
        $region69: #{tpu_custom_call.1} parent=63 // pred_check
          %p579 = pneg %p99
        $region70: #{tpu_custom_call.1} parent=63 // pred_check_branch
          %581 = sbr.rel (%p579) target = $region72
        $region71: #{tpu_custom_call.1} parent=63 // pred_region
          %583 = dma.done %s576, 16
        $region72: #{tpu_custom_call.1} parent=63 // pred_fallthru
          _
        %s584 = sand.u32 %s40, 1
        %s585 = scalar_lea.sflag [#allocation7], %s584
        %s586 = sand.u32 %s112, 1
        %s587 = scalar_lea.vmem [#allocation8], %s586
        // Predicated region
        $region73: #{tpu_custom_call.1} parent=63 // pred_check
          %p588 = pneg %p125
        $region74: #{tpu_custom_call.1} parent=63 // pred_check_branch
          %590 = sbr.rel (%p588) target = $region76
        $region75: #{tpu_custom_call.1} parent=63 // pred_region
          %592 = dma.done %s585, 16
        $region76: #{tpu_custom_call.1} parent=63 // pred_fallthru
          _
        %s593 = sand.u32 %s40, 1
        %s594 = scalar_lea.sflag [#allocation10], %s593
        %s595 = sand.u32 %s138, 1
        %s596 = smul.addr %s595, 192
        %s597 = scalar_lea.vmem [#allocation9], %s596
        // Predicated region
        $region77: #{tpu_custom_call.1} parent=63 // pred_check
          %p598 = pneg %p151
        $region78: #{tpu_custom_call.1} parent=63 // pred_check_branch
          %600 = sbr.rel (%p598) target = $region80
        $region79: #{tpu_custom_call.1} parent=63 // pred_region
          %602 = dma.done %s594, 3072
        $region80: #{tpu_custom_call.1} parent=63 // pred_fallthru
          _
        %s603 = sand.u32 %s40, 1
        %s604 = scalar_lea.sflag [#allocation10], %s603
        %s605 = sand.u32 %s164, 1
        %s606 = smul.addr %s605, 64
        %s607 = scalar_lea.vmem [#allocation11], %s606
        // Predicated region
        $region81: #{tpu_custom_call.1} parent=63 // pred_check
          %p608 = pneg %p177
        $region82: #{tpu_custom_call.1} parent=63 // pred_check_branch
          %610 = sbr.rel (%p608) target = $region84
        $region83: #{tpu_custom_call.1} parent=63 // pred_region
          %612 = dma.done %s604, 1024
        $region84: #{tpu_custom_call.1} parent=63 // pred_fallthru
          _
        %s613 = sand.u32 %s40, 1
        %s614 = scalar_lea.sflag [#allocation13], %s613
        %s615 = sand.u32 %s216, 1
        %s616 = scalar_lea.vmem [#allocation12], %s615
        // Predicated region
        $region85: #{tpu_custom_call.1} parent=63 // pred_check
          %p617 = pneg %p229
        $region86: #{tpu_custom_call.1} parent=63 // pred_check_branch
          %619 = sbr.rel (%p617) target = $region88
        $region87: #{tpu_custom_call.1} parent=63 // pred_region
          %621 = dma.done %s614, 16
        $region88: #{tpu_custom_call.1} parent=63 // pred_fallthru
          _
        %s622 = sand.u32 %s40, 1
        %s623 = scalar_lea.sflag [#allocation13], %s622
        %s624 = sand.u32 %s242, 1
        %s625 = smul.addr %s624, 128
        %s626 = scalar_lea.vmem [#allocation14], %s625
        // Predicated region
        $region89: #{tpu_custom_call.1} parent=63 // pred_check
          %p627 = pneg %p255
        $region90: #{tpu_custom_call.1} parent=63 // pred_check_branch
          %629 = sbr.rel (%p627) target = $region92
        $region91: #{tpu_custom_call.1} parent=63 // pred_region
          %631 = dma.done %s623, 2048
        $region92: #{tpu_custom_call.1} parent=63 // pred_fallthru
          _
        %s632 = sand.u32 %s294, 1
        %s633 = scalar_lea.sflag [#allocation16], %s632
        %s634 = sand.u32 %s294, 1
        %s635 = smul.addr %s634, 128
        %s636 = scalar_lea.vmem [#allocation15], %s635
        // Predicated region
        $region93: #{tpu_custom_call.1} parent=63 // pred_check
          %p637 = pneg %p307
        $region94: #{tpu_custom_call.1} parent=63 // pred_check_branch
          %639 = sbr.rel (%p637) target = $region96
        $region95: #{tpu_custom_call.1} parent=63 // pred_region
          %641 = dma.done %s633, 2048
        $region96: #{tpu_custom_call.1} parent=63 // pred_fallthru
          _
        %s642 = sand.u32 %s60, 1
        %s643 = scalar_lea.sflag [#allocation4], %s642
        %s644 = sand.u32 %s60, 1
        %s645 = smul.addr %s644, 64
        %s646 = scalar_lea.vmem [#allocation3], %s645
        %p647 = pneg %p73
        %p648 = pneg %p70
        %s649 = sand.u32 %s40, 1
        %s650 = scalar_lea.sflag [#allocation7], %s649
        %s651 = sand.u32 %s86, 1
        %s652 = scalar_lea.vmem [#allocation6], %s651
        %p653 = pneg %p99
        %p654 = pneg %p96
        %s655 = sand.u32 %s40, 1
        %s656 = scalar_lea.sflag [#allocation7], %s655
        %s657 = sand.u32 %s112, 1
        %s658 = scalar_lea.vmem [#allocation8], %s657
        %p659 = pneg %p125
        %p660 = pneg %p122
        %s661 = sand.u32 %s40, 1
        %s662 = scalar_lea.sflag [#allocation10], %s661
        %s663 = sand.u32 %s138, 1
        %s664 = smul.addr %s663, 192
        %s665 = scalar_lea.vmem [#allocation9], %s664
        %p666 = pneg %p151
        %p667 = pneg %p148
        %s668 = sand.u32 %s40, 1
        %s669 = scalar_lea.sflag [#allocation10], %s668
        %s670 = sand.u32 %s164, 1
        %s671 = smul.addr %s670, 64
        %s672 = scalar_lea.vmem [#allocation11], %s671
        %p673 = pneg %p177
        %p674 = pneg %p174
        %p675 = scmp.lt.s32.totalorder %s45, 1
        %s676 = scalar_select %p675, %s45, 1
        %s677 = scalar_lea.vmem %s5, %s676
        %p678 = pneg %p203
        %p679 = pneg %p200
        %s680 = sand.u32 %s40, 1
        %s681 = scalar_lea.sflag [#allocation13], %s680
        %s682 = sand.u32 %s216, 1
        %s683 = scalar_lea.vmem [#allocation12], %s682
        %p684 = pneg %p229
        %p685 = pneg %p226
        %s686 = sand.u32 %s40, 1
        %s687 = scalar_lea.sflag [#allocation13], %s686
        %s688 = sand.u32 %s242, 1
        %s689 = smul.addr %s688, 128
        %s690 = scalar_lea.vmem [#allocation14], %s689
        %p691 = pneg %p255
        %p692 = pneg %p252
        %p693 = scmp.lt.s32.totalorder %s45, 1
        %s694 = scalar_select %p693, %s45, 1
        %s695 = smul.addr %s694, 2
        %s696 = scalar_lea.vmem %s8, %s695
        %p697 = pneg %p281
        %p698 = pneg %p278
        %s699 = sand.u32 %s294, 1
        %s700 = scalar_lea.sflag [#allocation16], %s699
        %s701 = sand.u32 %s294, 1
        %s702 = smul.addr %s701, 128
        %s703 = scalar_lea.vmem [#allocation15], %s702
        %p704 = pneg %p307
        %p705 = pneg %p304
        %p706 = scmp.lt.s32.totalorder %s45, 1
        %s707 = scalar_select %p706, %s45, 1
        %s708 = scalar_lea.vmem %s10, %s707
        %p709 = pneg %p333
        %p710 = pneg %p330
        %p711 = pneg %p359
        %p712 = pneg %p356
        %s713 = sand.u32 %s346, 1
        %s714 = scalar_lea.sflag [#allocation5], %s713
        %s715 = sand.u32 %s346, 1
        %s716 = smul.addr %s715, 64
        %s717 = scalar_lea.vmem [#allocation17], %s716
        %p718 = scmp.lt.s32.totalorder %s45, 1
        %s719 = scalar_select %p718, %s45, 1
        %s720 = scalar_lea.vmem %s5, %s719
        %p721 = scmp.lt.s32.totalorder %s45, 1
        %s722 = scalar_select %p721, %s45, 1
        %s723 = smul.addr %s722, 2
        %s724 = scalar_lea.vmem %s8, %s723
        %p725 = scmp.lt.s32.totalorder %s45, 1
        %s726 = scalar_select %p725, %s45, 1
        %s727 = scalar_lea.vmem %s10, %s726
        %p728 = scmp.eq.s32.totalorder %s45, 0
        // Predicated region
        $region97: #{tpu_custom_call.1} parent=63 // pred_check
          %p729 = pneg %p728
        $region98: #{tpu_custom_call.1} parent=63 // pred_check_branch
          %731 = sbr.rel (%p729) target = $region100
        $region99: #{tpu_custom_call.1} parent=63 // pred_region
          %v732 = vld [vmem:[%s569] sm:$0xf]
          %v733 = vld [vmem:[%s569 + $0x4] sm:$0xf]
          %v734 = vld [vmem:[%s569 + $0x8] sm:$0xf]
          %v735 = vld [vmem:[%s569 + $0xc] sm:$0xf]
          %v736 = vld [vmem:[%s569 + $0x10] sm:$0xf]
          %v737 = vld [vmem:[%s569 + $0x14] sm:$0xf]
          %v738 = vld [vmem:[%s569 + $0x18] sm:$0xf]
          %v739 = vld [vmem:[%s569 + $0x1c] sm:$0xf]
          %v740 = vld [vmem:[%s569 + $0x20] sm:$0xf]
          %v741 = vld [vmem:[%s569 + $0x24] sm:$0xf]
          %v742 = vld [vmem:[%s569 + $0x28] sm:$0xf]
          %v743 = vld [vmem:[%s569 + $0x2c] sm:$0xf]
          %v744 = vld [vmem:[%s569 + $0x30] sm:$0xf]
          %v745 = vld [vmem:[%s569 + $0x34] sm:$0xf]
          %v746 = vld [vmem:[%s569 + $0x38] sm:$0xf]
          %v747 = vld [vmem:[%s569 + $0x3c] sm:$0xf]
          %748 = vst [vmem:[#allocation2] sm:$0xf] %v732
          %749 = vst [vmem:[#allocation2 + $0x4] sm:$0xf] %v733
          %750 = vst [vmem:[#allocation2 + $0x8] sm:$0xf] %v734
          %751 = vst [vmem:[#allocation2 + $0xc] sm:$0xf] %v735
          %752 = vst [vmem:[#allocation2 + $0x10] sm:$0xf] %v736
          %753 = vst [vmem:[#allocation2 + $0x14] sm:$0xf] %v737
          %754 = vst [vmem:[#allocation2 + $0x18] sm:$0xf] %v738
          %755 = vst [vmem:[#allocation2 + $0x1c] sm:$0xf] %v739
          %756 = vst [vmem:[#allocation2 + $0x20] sm:$0xf] %v740
          %757 = vst [vmem:[#allocation2 + $0x24] sm:$0xf] %v741
          %758 = vst [vmem:[#allocation2 + $0x28] sm:$0xf] %v742
          %759 = vst [vmem:[#allocation2 + $0x2c] sm:$0xf] %v743
          %760 = vst [vmem:[#allocation2 + $0x30] sm:$0xf] %v744
          %761 = vst [vmem:[#allocation2 + $0x34] sm:$0xf] %v745
          %762 = vst [vmem:[#allocation2 + $0x38] sm:$0xf] %v746
          %763 = vst [vmem:[#allocation2 + $0x3c] sm:$0xf] %v747
        $region100: #{tpu_custom_call.1} parent=63 // pred_fallthru
          _
        %v764 = vld [vmem:[#allocation2] sm:$0xf]
        %v765 = vld [vmem:[#allocation2 + $0x4] sm:$0xf]
        %v766 = vld [vmem:[#allocation2 + $0x8] sm:$0xf]
        %v767 = vld [vmem:[#allocation2 + $0xc] sm:$0xf]
        %v768 = vld [vmem:[#allocation2 + $0x10] sm:$0xf]
        %v769 = vld [vmem:[#allocation2 + $0x14] sm:$0xf]
        %v770 = vld [vmem:[#allocation2 + $0x18] sm:$0xf]
        %v771 = vld [vmem:[#allocation2 + $0x1c] sm:$0xf]
        %v772 = vld [vmem:[#allocation2 + $0x20] sm:$0xf]
        %v773 = vld [vmem:[#allocation2 + $0x24] sm:$0xf]
        %v774 = vld [vmem:[#allocation2 + $0x28] sm:$0xf]
        %v775 = vld [vmem:[#allocation2 + $0x2c] sm:$0xf]
        %v776 = vld [vmem:[#allocation2 + $0x30] sm:$0xf]
        %v777 = vld [vmem:[#allocation2 + $0x34] sm:$0xf]
        %v778 = vld [vmem:[#allocation2 + $0x38] sm:$0xf]
        %v779 = vld [vmem:[#allocation2 + $0x3c] sm:$0xf]
        %v780 = vunpack.c.l.bf16 %v764
        %v781 = vunpack.c.l.bf16 %v765
        %v782 = vunpack.c.l.bf16 %v766
        %v783 = vunpack.c.l.bf16 %v767
        %v784 = vunpack.c.l.bf16 %v768
        %v785 = vunpack.c.l.bf16 %v769
        %v786 = vunpack.c.l.bf16 %v770
        %v787 = vunpack.c.l.bf16 %v771
        %v788 = vunpack.c.l.bf16 %v772
        %v789 = vunpack.c.l.bf16 %v773
        %v790 = vunpack.c.l.bf16 %v774
        %v791 = vunpack.c.l.bf16 %v775
        %v792 = vunpack.c.l.bf16 %v776
        %v793 = vunpack.c.l.bf16 %v777
        %v794 = vunpack.c.l.bf16 %v778
        %v795 = vunpack.c.l.bf16 %v779
        %v796 = vld [vmem:[%s578] sm:$0x1]
        %v797 = vld [vmem:[%s587] sm:$0x1]
        %v798 = vld [vmem:[%s720] sm:$0x1]
        %v799 = vld [vmem:[%s616] sm:$0x1]
        %800 = vadd.xlane.f32.xlu0 %v780
        %v801 = vpop.xlane.xlu0 %800
        %802 = vadd.xlane.f32.xlu0 %v781
        %v803 = vpop.xlane.xlu0 %802
        %804 = vadd.xlane.f32.xlu0 %v782
        %v805 = vpop.xlane.xlu0 %804
        %806 = vadd.xlane.f32.xlu0 %v783
        %v807 = vpop.xlane.xlu0 %806
        %808 = vadd.xlane.f32.xlu0 %v784
        %v809 = vpop.xlane.xlu0 %808
        %810 = vadd.xlane.f32.xlu0 %v785
        %v811 = vpop.xlane.xlu0 %810
        %812 = vadd.xlane.f32.xlu0 %v786
        %v813 = vpop.xlane.xlu0 %812
        %814 = vadd.xlane.f32.xlu0 %v787
        %v815 = vpop.xlane.xlu0 %814
        %816 = vadd.xlane.f32.xlu0 %v788
        %v817 = vpop.xlane.xlu0 %816
        %818 = vadd.xlane.f32.xlu0 %v789
        %v819 = vpop.xlane.xlu0 %818
        %820 = vadd.xlane.f32.xlu0 %v790
        %v821 = vpop.xlane.xlu0 %820
        %822 = vadd.xlane.f32.xlu0 %v791
        %v823 = vpop.xlane.xlu0 %822
        %824 = vadd.xlane.f32.xlu0 %v792
        %v825 = vpop.xlane.xlu0 %824
        %826 = vadd.xlane.f32.xlu0 %v793
        %v827 = vpop.xlane.xlu0 %826
        %828 = vadd.xlane.f32.xlu0 %v794
        %v829 = vpop.xlane.xlu0 %828
        %830 = vadd.xlane.f32.xlu0 %v795
        %v831 = vpop.xlane.xlu0 %830
        %v832 = vrcp.pop 128.0
        %v833 = vmul.f32 128.0, %v832
        %v834 = vsub.f32 1.0, %v833
        %v835 = vmul.f32 %v832, %v834
        %v836 = vadd.f32 %v832, %v835
        %vm837 = vweird.f32 %v832
        %v838 = vsel %vm837, %v832, %v836
        %v839 = vmul.f32 %v801, %v838
        %v840 = vmul.f32 %v803, %v838
        %v841 = vmul.f32 %v805, %v838
        %v842 = vmul.f32 %v807, %v838
        %v843 = vmul.f32 %v809, %v838
        %v844 = vmul.f32 %v811, %v838
        %v845 = vmul.f32 %v813, %v838
        %v846 = vmul.f32 %v815, %v838
        %v847 = vmul.f32 %v817, %v838
        %v848 = vmul.f32 %v819, %v838
        %v849 = vmul.f32 %v821, %v838
        %v850 = vmul.f32 %v823, %v838
        %v851 = vmul.f32 %v825, %v838
        %v852 = vmul.f32 %v827, %v838
        %v853 = vmul.f32 %v829, %v838
        %v854 = vmul.f32 %v831, %v838
        %v855 = vsub.f32 %v780, %v839
        %v856 = vsub.f32 %v781, %v840
        %v857 = vsub.f32 %v782, %v841
        %v858 = vsub.f32 %v783, %v842
        %v859 = vsub.f32 %v784, %v843
        %v860 = vsub.f32 %v785, %v844
        %v861 = vsub.f32 %v786, %v845
        %v862 = vsub.f32 %v787, %v846
        %v863 = vsub.f32 %v788, %v847
        %v864 = vsub.f32 %v789, %v848
        %v865 = vsub.f32 %v790, %v849
        %v866 = vsub.f32 %v791, %v850
        %v867 = vsub.f32 %v792, %v851
        %v868 = vsub.f32 %v793, %v852
        %v869 = vsub.f32 %v794, %v853
        %v870 = vsub.f32 %v795, %v854
        %v871 = vmul.f32 %v855, %v855
        %v872 = vmul.f32 %v856, %v856
        %v873 = vmul.f32 %v857, %v857
        %v874 = vmul.f32 %v858, %v858
        %v875 = vmul.f32 %v859, %v859
        %v876 = vmul.f32 %v860, %v860
        %v877 = vmul.f32 %v861, %v861
        %v878 = vmul.f32 %v862, %v862
        %v879 = vmul.f32 %v863, %v863
        %v880 = vmul.f32 %v864, %v864
        %v881 = vmul.f32 %v865, %v865
        %v882 = vmul.f32 %v866, %v866
        %v883 = vmul.f32 %v867, %v867
        %v884 = vmul.f32 %v868, %v868
        %v885 = vmul.f32 %v869, %v869
        %v886 = vmul.f32 %v870, %v870
        %887 = vadd.xlane.f32.xlu0 %v871
        %v888 = vpop.xlane.xlu0 %887
        %889 = vadd.xlane.f32.xlu0 %v872
        %v890 = vpop.xlane.xlu0 %889
        %891 = vadd.xlane.f32.xlu0 %v873
        %v892 = vpop.xlane.xlu0 %891
        %893 = vadd.xlane.f32.xlu0 %v874
        %v894 = vpop.xlane.xlu0 %893
        %895 = vadd.xlane.f32.xlu0 %v875
        %v896 = vpop.xlane.xlu0 %895
        %897 = vadd.xlane.f32.xlu0 %v876
        %v898 = vpop.xlane.xlu0 %897
        %899 = vadd.xlane.f32.xlu0 %v877
        %v900 = vpop.xlane.xlu0 %899
        %901 = vadd.xlane.f32.xlu0 %v878
        %v902 = vpop.xlane.xlu0 %901
        %903 = vadd.xlane.f32.xlu0 %v879
        %v904 = vpop.xlane.xlu0 %903
        %905 = vadd.xlane.f32.xlu0 %v880
        %v906 = vpop.xlane.xlu0 %905
        %907 = vadd.xlane.f32.xlu0 %v881
        %v908 = vpop.xlane.xlu0 %907
        %909 = vadd.xlane.f32.xlu0 %v882
        %v910 = vpop.xlane.xlu0 %909
        %911 = vadd.xlane.f32.xlu0 %v883
        %v912 = vpop.xlane.xlu0 %911
        %913 = vadd.xlane.f32.xlu0 %v884
        %v914 = vpop.xlane.xlu0 %913
        %915 = vadd.xlane.f32.xlu0 %v885
        %v916 = vpop.xlane.xlu0 %915
        %917 = vadd.xlane.f32.xlu0 %v886
        %v918 = vpop.xlane.xlu0 %917
        %v919 = vmul.f32 %v888, %v838
        %v920 = vmul.f32 %v890, %v838
        %v921 = vmul.f32 %v892, %v838
        %v922 = vmul.f32 %v894, %v838
        %v923 = vmul.f32 %v896, %v838
        %v924 = vmul.f32 %v898, %v838
        %v925 = vmul.f32 %v900, %v838
        %v926 = vmul.f32 %v902, %v838
        %v927 = vmul.f32 %v904, %v838
        %v928 = vmul.f32 %v906, %v838
        %v929 = vmul.f32 %v908, %v838
        %v930 = vmul.f32 %v910, %v838
        %v931 = vmul.f32 %v912, %v838
        %v932 = vmul.f32 %v914, %v838
        %v933 = vmul.f32 %v916, %v838
        %v934 = vmul.f32 %v918, %v838
        %v935 = vadd.f32 %v919, 1e-05
        %v936 = vadd.f32 %v920, 1e-05
        %v937 = vadd.f32 %v921, 1e-05
        %v938 = vadd.f32 %v922, 1e-05
        %v939 = vadd.f32 %v923, 1e-05
        %v940 = vadd.f32 %v924, 1e-05
        %v941 = vadd.f32 %v925, 1e-05
        %v942 = vadd.f32 %v926, 1e-05
        %v943 = vadd.f32 %v927, 1e-05
        %v944 = vadd.f32 %v928, 1e-05
        %v945 = vadd.f32 %v929, 1e-05
        %v946 = vadd.f32 %v930, 1e-05
        %v947 = vadd.f32 %v931, 1e-05
        %v948 = vadd.f32 %v932, 1e-05
        %v949 = vadd.f32 %v933, 1e-05
        %v950 = vadd.f32 %v934, 1e-05
        %v951 = vrsqrt.pop %v935
        %v952 = vmul.f32 %v951, %v935
        %v953 = vmul.f32 %v952, %v951
        %v954 = vmul.f32 0.5, %v953
        %v955 = vsub.f32 1.5, %v954
        %v956 = vmul.f32 %v951, %v955
        %vm957 = vweird.f32 %v935
        %vm958 = vweird.f32 %v951
        %vm959 = vmor %vm957, %vm958
        %v960 = vsel %vm959, %v951, %v956
        %v961 = vrsqrt.pop %v936
        %v962 = vmul.f32 %v961, %v936
        %v963 = vmul.f32 %v962, %v961
        %v964 = vmul.f32 0.5, %v963
        %v965 = vsub.f32 1.5, %v964
        %v966 = vmul.f32 %v961, %v965
        %vm967 = vweird.f32 %v936
        %vm968 = vweird.f32 %v961
        %vm969 = vmor %vm967, %vm968
        %v970 = vsel %vm969, %v961, %v966
        %v971 = vrsqrt.pop %v937
        %v972 = vmul.f32 %v971, %v937
        %v973 = vmul.f32 %v972, %v971
        %v974 = vmul.f32 0.5, %v973
        %v975 = vsub.f32 1.5, %v974
        %v976 = vmul.f32 %v971, %v975
        %vm977 = vweird.f32 %v937
        %vm978 = vweird.f32 %v971
        %vm979 = vmor %vm977, %vm978
        %v980 = vsel %vm979, %v971, %v976
        %v981 = vrsqrt.pop %v938
        %v982 = vmul.f32 %v981, %v938
        %v983 = vmul.f32 %v982, %v981
        %v984 = vmul.f32 0.5, %v983
        %v985 = vsub.f32 1.5, %v984
        %v986 = vmul.f32 %v981, %v985
        %vm987 = vweird.f32 %v938
        %vm988 = vweird.f32 %v981
        %vm989 = vmor %vm987, %vm988
        %v990 = vsel %vm989, %v981, %v986
        %v991 = vrsqrt.pop %v939
        %v992 = vmul.f32 %v991, %v939
        %v993 = vmul.f32 %v992, %v991
        %v994 = vmul.f32 0.5, %v993
        %v995 = vsub.f32 1.5, %v994
        %v996 = vmul.f32 %v991, %v995
        %vm997 = vweird.f32 %v939
        %vm998 = vweird.f32 %v991
        %vm999 = vmor %vm997, %vm998
        %v1000 = vsel %vm999, %v991, %v996
        %v1001 = vrsqrt.pop %v940
        %v1002 = vmul.f32 %v1001, %v940
        %v1003 = vmul.f32 %v1002, %v1001
        %v1004 = vmul.f32 0.5, %v1003
        %v1005 = vsub.f32 1.5, %v1004
        %v1006 = vmul.f32 %v1001, %v1005
        %vm1007 = vweird.f32 %v940
        %vm1008 = vweird.f32 %v1001
        %vm1009 = vmor %vm1007, %vm1008
        %v1010 = vsel %vm1009, %v1001, %v1006
        %v1011 = vrsqrt.pop %v941
        %v1012 = vmul.f32 %v1011, %v941
        %v1013 = vmul.f32 %v1012, %v1011
        %v1014 = vmul.f32 0.5, %v1013
        %v1015 = vsub.f32 1.5, %v1014
        %v1016 = vmul.f32 %v1011, %v1015
        %vm1017 = vweird.f32 %v941
        %vm1018 = vweird.f32 %v1011
        %vm1019 = vmor %vm1017, %vm1018
        %v1020 = vsel %vm1019, %v1011, %v1016
        %v1021 = vrsqrt.pop %v942
        %v1022 = vmul.f32 %v1021, %v942
        %v1023 = vmul.f32 %v1022, %v1021
        %v1024 = vmul.f32 0.5, %v1023
        %v1025 = vsub.f32 1.5, %v1024
        %v1026 = vmul.f32 %v1021, %v1025
        %vm1027 = vweird.f32 %v942
        %vm1028 = vweird.f32 %v1021
        %vm1029 = vmor %vm1027, %vm1028
        %v1030 = vsel %vm1029, %v1021, %v1026
        %v1031 = vrsqrt.pop %v943
        %v1032 = vmul.f32 %v1031, %v943
        %v1033 = vmul.f32 %v1032, %v1031
        %v1034 = vmul.f32 0.5, %v1033
        %v1035 = vsub.f32 1.5, %v1034
        %v1036 = vmul.f32 %v1031, %v1035
        %vm1037 = vweird.f32 %v943
        %vm1038 = vweird.f32 %v1031
        %vm1039 = vmor %vm1037, %vm1038
        %v1040 = vsel %vm1039, %v1031, %v1036
        %v1041 = vrsqrt.pop %v944
        %v1042 = vmul.f32 %v1041, %v944
        %v1043 = vmul.f32 %v1042, %v1041
        %v1044 = vmul.f32 0.5, %v1043
        %v1045 = vsub.f32 1.5, %v1044
        %v1046 = vmul.f32 %v1041, %v1045
        %vm1047 = vweird.f32 %v944
        %vm1048 = vweird.f32 %v1041
        %vm1049 = vmor %vm1047, %vm1048
        %v1050 = vsel %vm1049, %v1041, %v1046
        %v1051 = vrsqrt.pop %v945
        %v1052 = vmul.f32 %v1051, %v945
        %v1053 = vmul.f32 %v1052, %v1051
        %v1054 = vmul.f32 0.5, %v1053
        %v1055 = vsub.f32 1.5, %v1054
        %v1056 = vmul.f32 %v1051, %v1055
        %vm1057 = vweird.f32 %v945
        %vm1058 = vweird.f32 %v1051
        %vm1059 = vmor %vm1057, %vm1058
        %v1060 = vsel %vm1059, %v1051, %v1056
        %v1061 = vrsqrt.pop %v946
        %v1062 = vmul.f32 %v1061, %v946
        %v1063 = vmul.f32 %v1062, %v1061
        %v1064 = vmul.f32 0.5, %v1063
        %v1065 = vsub.f32 1.5, %v1064
        %v1066 = vmul.f32 %v1061, %v1065
        %vm1067 = vweird.f32 %v946
        %vm1068 = vweird.f32 %v1061
        %vm1069 = vmor %vm1067, %vm1068
        %v1070 = vsel %vm1069, %v1061, %v1066
        %v1071 = vrsqrt.pop %v947
        %v1072 = vmul.f32 %v1071, %v947
        %v1073 = vmul.f32 %v1072, %v1071
        %v1074 = vmul.f32 0.5, %v1073
        %v1075 = vsub.f32 1.5, %v1074
        %v1076 = vmul.f32 %v1071, %v1075
        %vm1077 = vweird.f32 %v947
        %vm1078 = vweird.f32 %v1071
        %vm1079 = vmor %vm1077, %vm1078
        %v1080 = vsel %vm1079, %v1071, %v1076
        %v1081 = vrsqrt.pop %v948
        %v1082 = vmul.f32 %v1081, %v948
        %v1083 = vmul.f32 %v1082, %v1081
        %v1084 = vmul.f32 0.5, %v1083
        %v1085 = vsub.f32 1.5, %v1084
        %v1086 = vmul.f32 %v1081, %v1085
        %vm1087 = vweird.f32 %v948
        %vm1088 = vweird.f32 %v1081
        %vm1089 = vmor %vm1087, %vm1088
        %v1090 = vsel %vm1089, %v1081, %v1086
        %v1091 = vrsqrt.pop %v949
        %v1092 = vmul.f32 %v1091, %v949
        %v1093 = vmul.f32 %v1092, %v1091
        %v1094 = vmul.f32 0.5, %v1093
        %v1095 = vsub.f32 1.5, %v1094
        %v1096 = vmul.f32 %v1091, %v1095
        %vm1097 = vweird.f32 %v949
        %vm1098 = vweird.f32 %v1091
        %vm1099 = vmor %vm1097, %vm1098
        %v1100 = vsel %vm1099, %v1091, %v1096
        %v1101 = vrsqrt.pop %v950
        %v1102 = vmul.f32 %v1101, %v950
        %v1103 = vmul.f32 %v1102, %v1101
        %v1104 = vmul.f32 0.5, %v1103
        %v1105 = vsub.f32 1.5, %v1104
        %v1106 = vmul.f32 %v1101, %v1105
        %vm1107 = vweird.f32 %v950
        %vm1108 = vweird.f32 %v1101
        %vm1109 = vmor %vm1107, %vm1108
        %v1110 = vsel %vm1109, %v1101, %v1106
        %v1111 = vmul.f32 %v855, %v960
        %v1112 = vmul.f32 %v856, %v970
        %v1113 = vmul.f32 %v857, %v980
        %v1114 = vmul.f32 %v858, %v990
        %v1115 = vmul.f32 %v859, %v1000
        %v1116 = vmul.f32 %v860, %v1010
        %v1117 = vmul.f32 %v861, %v1020
        %v1118 = vmul.f32 %v862, %v1030
        %v1119 = vmul.f32 %v863, %v1040
        %v1120 = vmul.f32 %v864, %v1050
        %v1121 = vmul.f32 %v865, %v1060
        %v1122 = vmul.f32 %v866, %v1070
        %v1123 = vmul.f32 %v867, %v1080
        %v1124 = vmul.f32 %v868, %v1090
        %v1125 = vmul.f32 %v869, %v1100
        %v1126 = vmul.f32 %v870, %v1110
        %v1128 = vperm.slane %v796, 0
        %v1130 = vmul.f32 %v1111, %v1128
        %v1131 = vmul.f32 %v1112, %v1128
        %v1132 = vmul.f32 %v1113, %v1128
        %v1133 = vmul.f32 %v1114, %v1128
        %v1134 = vmul.f32 %v1115, %v1128
        %v1135 = vmul.f32 %v1116, %v1128
        %v1136 = vmul.f32 %v1117, %v1128
        %v1137 = vmul.f32 %v1118, %v1128
        %v1138 = vmul.f32 %v1119, %v1128
        %v1139 = vmul.f32 %v1120, %v1128
        %v1140 = vmul.f32 %v1121, %v1128
        %v1141 = vmul.f32 %v1122, %v1128
        %v1142 = vmul.f32 %v1123, %v1128
        %v1143 = vmul.f32 %v1124, %v1128
        %v1144 = vmul.f32 %v1125, %v1128
        %v1145 = vmul.f32 %v1126, %v1128
        %v1147 = vperm.slane %v797, 0
        %v1149 = vadd.f32 %v1130, %v1147
        %v1150 = vadd.f32 %v1131, %v1147
        %v1151 = vadd.f32 %v1132, %v1147
        %v1152 = vadd.f32 %v1133, %v1147
        %v1153 = vadd.f32 %v1134, %v1147
        %v1154 = vadd.f32 %v1135, %v1147
        %v1155 = vadd.f32 %v1136, %v1147
        %v1156 = vadd.f32 %v1137, %v1147
        %v1157 = vadd.f32 %v1138, %v1147
        %v1158 = vadd.f32 %v1139, %v1147
        %v1159 = vadd.f32 %v1140, %v1147
        %v1160 = vadd.f32 %v1141, %v1147
        %v1161 = vadd.f32 %v1142, %v1147
        %v1162 = vadd.f32 %v1143, %v1147
        %v1163 = vadd.f32 %v1144, %v1147
        %v1164 = vadd.f32 %v1145, %v1147
        %v1165 = vpack.c.bf16 %v1150, %v1149
        %v1166 = vpack.c.bf16 %v1152, %v1151
        %v1167 = vpack.c.bf16 %v1154, %v1153
        %v1168 = vpack.c.bf16 %v1156, %v1155
        %v1169 = vpack.c.bf16 %v1158, %v1157
        %v1170 = vpack.c.bf16 %v1160, %v1159
        %v1171 = vpack.c.bf16 %v1162, %v1161
        %v1172 = vpack.c.bf16 %v1164, %v1163
        %v1173 = vld [vmem:[%s597] sm:$0xff]
        %v1174 = vld [vmem:[%s597 + $0x8] sm:$0xf]
        %v1175 = vld [vmem:[%s597 + $0xc] sm:$0xff]
        %v1176 = vld [vmem:[%s597 + $0x14] sm:$0xf]
        %v1177 = vld [vmem:[%s597 + $0x18] sm:$0xff]
        %v1178 = vld [vmem:[%s597 + $0x20] sm:$0xf]
        %v1179 = vld [vmem:[%s597 + $0x24] sm:$0xff]
        %v1180 = vld [vmem:[%s597 + $0x2c] sm:$0xf]
        %v1181 = vld [vmem:[%s597 + $0x30] sm:$0xff]
        %v1182 = vld [vmem:[%s597 + $0x38] sm:$0xf]
        %v1183 = vld [vmem:[%s597 + $0x3c] sm:$0xff]
        %v1184 = vld [vmem:[%s597 + $0x44] sm:$0xf]
        %v1185 = vld [vmem:[%s597 + $0x48] sm:$0xff]
        %v1186 = vld [vmem:[%s597 + $0x50] sm:$0xf]
        %v1187 = vld [vmem:[%s597 + $0x54] sm:$0xff]
        %v1188 = vld [vmem:[%s597 + $0x5c] sm:$0xf]
        %v1189 = vld [vmem:[%s597 + $0x60] sm:$0xff]
        %v1190 = vld [vmem:[%s597 + $0x68] sm:$0xf]
        %v1191 = vld [vmem:[%s597 + $0x6c] sm:$0xff]
        %v1192 = vld [vmem:[%s597 + $0x74] sm:$0xf]
        %v1193 = vld [vmem:[%s597 + $0x78] sm:$0xff]
        %v1194 = vld [vmem:[%s597 + $0x80] sm:$0xf]
        %v1195 = vld [vmem:[%s597 + $0x84] sm:$0xff]
        %v1196 = vld [vmem:[%s597 + $0x8c] sm:$0xf]
        %v1197 = vld [vmem:[%s597 + $0x90] sm:$0xff]
        %v1198 = vld [vmem:[%s597 + $0x98] sm:$0xf]
        %v1199 = vld [vmem:[%s597 + $0x9c] sm:$0xff]
        %v1200 = vld [vmem:[%s597 + $0xa4] sm:$0xf]
        %v1201 = vld [vmem:[%s597 + $0xa8] sm:$0xff]
        %v1202 = vld [vmem:[%s597 + $0xb0] sm:$0xf]
        %v1203 = vld [vmem:[%s597 + $0xb4] sm:$0xff]
        %v1204 = vld [vmem:[%s597 + $0xbc] sm:$0xf]
        %v1237 = vunpack.c.l.b16 %v1173
        %v1238 = vunpack.c.h.b16 %v1173
        %v1239 = vunpack.c.l.b16 %v1174
        %v1240 = vunpack.c.l.b16 %v1175
        %v1241 = vunpack.c.h.b16 %v1175
        %v1242 = vunpack.c.l.b16 %v1176
        %v1243 = vunpack.c.l.b16 %v1177
        %v1244 = vunpack.c.h.b16 %v1177
        %v1245 = vunpack.c.l.b16 %v1178
        %v1246 = vunpack.c.l.b16 %v1179
        %v1247 = vunpack.c.h.b16 %v1179
        %v1248 = vunpack.c.l.b16 %v1180
        %v1249 = vunpack.c.l.b16 %v1181
        %v1250 = vunpack.c.h.b16 %v1181
        %v1251 = vunpack.c.l.b16 %v1182
        %v1252 = vunpack.c.l.b16 %v1183
        %v1253 = vunpack.c.h.b16 %v1183
        %v1254 = vunpack.c.l.b16 %v1184
        %v1255 = vunpack.c.l.b16 %v1185
        %v1256 = vunpack.c.h.b16 %v1185
        %v1257 = vunpack.c.l.b16 %v1186
        %v1258 = vunpack.c.l.b16 %v1187
        %v1259 = vunpack.c.h.b16 %v1187
        %v1260 = vunpack.c.l.b16 %v1188
        %v1261 = vunpack.c.l.b16 %v1189
        %v1262 = vunpack.c.h.b16 %v1189
        %v1263 = vunpack.c.l.b16 %v1190
        %v1264 = vunpack.c.l.b16 %v1191
        %v1265 = vunpack.c.h.b16 %v1191
        %v1266 = vunpack.c.l.b16 %v1192
        %v1267 = vunpack.c.l.b16 %v1193
        %v1268 = vunpack.c.h.b16 %v1193
        %v1269 = vunpack.c.l.b16 %v1194
        %v1270 = vunpack.c.l.b16 %v1195
        %v1271 = vunpack.c.h.b16 %v1195
        %v1272 = vunpack.c.l.b16 %v1196
        %v1273 = vunpack.c.l.b16 %v1197
        %v1274 = vunpack.c.h.b16 %v1197
        %v1275 = vunpack.c.l.b16 %v1198
        %v1276 = vunpack.c.l.b16 %v1199
        %v1277 = vunpack.c.h.b16 %v1199
        %v1278 = vunpack.c.l.b16 %v1200
        %v1279 = vunpack.c.l.b16 %v1201
        %v1280 = vunpack.c.h.b16 %v1201
        %v1281 = vunpack.c.l.b16 %v1202
        %v1282 = vunpack.c.l.b16 %v1203
        %v1283 = vunpack.c.h.b16 %v1203
        %v1284 = vunpack.c.l.b16 %v1204
        %v1285 = vpack.c.b16 %v1240, %v1237
        %v1286 = vpack.c.b16 %v1241, %v1238
        %v1287 = vpack.c.b16 %v1242, %v1239
        %v1288 = vpack.c.b16 %v1246, %v1243
        %v1289 = vpack.c.b16 %v1247, %v1244
        %v1290 = vpack.c.b16 %v1248, %v1245
        %v1291 = vpack.c.b16 %v1252, %v1249
        %v1292 = vpack.c.b16 %v1253, %v1250
        %v1293 = vpack.c.b16 %v1254, %v1251
        %v1294 = vpack.c.b16 %v1258, %v1255
        %v1295 = vpack.c.b16 %v1259, %v1256
        %v1296 = vpack.c.b16 %v1260, %v1257
        %v1297 = vpack.c.b16 %v1264, %v1261
        %v1298 = vpack.c.b16 %v1265, %v1262
        %v1299 = vpack.c.b16 %v1266, %v1263
        %v1300 = vpack.c.b16 %v1270, %v1267
        %v1301 = vpack.c.b16 %v1271, %v1268
        %v1302 = vpack.c.b16 %v1272, %v1269
        %v1303 = vpack.c.b16 %v1276, %v1273
        %v1304 = vpack.c.b16 %v1277, %v1274
        %v1305 = vpack.c.b16 %v1278, %v1275
        %v1306 = vpack.c.b16 %v1282, %v1279
        %v1307 = vpack.c.b16 %v1283, %v1280
        %v1308 = vpack.c.b16 %v1284, %v1281
        %1333 = vmatpush.bf16.msra.mxu0 %v1306
        %1334 = vmatpush.bf16.msra.mxu0 %v1303
        %1335 = vmatpush.bf16.msra.mxu0 %v1300
        %1336 = vmatpush.bf16.msra.mxu0 %v1297
        %1337 = vmatpush.bf16.msra.mxu0 %v1294
        %1338 = vmatpush.bf16.msra.mxu0 %v1291
        %1339 = vmatpush.bf16.msra.mxu0 %v1288
        %1340 = vmatpush.bf16.msra.mxu0 %v1285
        %1341 = vmatmul.bf16.gmra.mxu0 %v1165
        %v1342 = vpop.f32.mrf.mxu0
        %v1343 = vadd.f32 0.0, %v1342
        %v1344 = vpop.f32.mrf.mxu0
        %v1345 = vadd.f32 0.0, %v1344
        %1346 = vmatmul.bf16.gmra.mxu0 %v1166
        %v1347 = vpop.f32.mrf.mxu0
        %v1348 = vadd.f32 0.0, %v1347
        %v1349 = vpop.f32.mrf.mxu0
        %v1350 = vadd.f32 0.0, %v1349
        %1351 = vmatmul.bf16.gmra.mxu0 %v1167
        %v1352 = vpop.f32.mrf.mxu0
        %v1353 = vadd.f32 0.0, %v1352
        %v1354 = vpop.f32.mrf.mxu0
        %v1355 = vadd.f32 0.0, %v1354
        %1356 = vmatmul.bf16.gmra.mxu0 %v1168
        %v1357 = vpop.f32.mrf.mxu0
        %v1358 = vadd.f32 0.0, %v1357
        %v1359 = vpop.f32.mrf.mxu0
        %v1360 = vadd.f32 0.0, %v1359
        %1361 = vmatmul.bf16.gmra.mxu0 %v1169
        %v1362 = vpop.f32.mrf.mxu0
        %v1363 = vadd.f32 0.0, %v1362
        %v1364 = vpop.f32.mrf.mxu0
        %v1365 = vadd.f32 0.0, %v1364
        %1366 = vmatmul.bf16.gmra.mxu0 %v1170
        %v1367 = vpop.f32.mrf.mxu0
        %v1368 = vadd.f32 0.0, %v1367
        %v1369 = vpop.f32.mrf.mxu0
        %v1370 = vadd.f32 0.0, %v1369
        %1371 = vmatmul.bf16.gmra.mxu0 %v1171
        %v1372 = vpop.f32.mrf.mxu0
        %v1373 = vadd.f32 0.0, %v1372
        %v1374 = vpop.f32.mrf.mxu0
        %v1375 = vadd.f32 0.0, %v1374
        %1376 = vmatmul.bf16.gmra.mxu0 %v1172
        %v1377 = vpop.f32.mrf.mxu0
        %v1378 = vadd.f32 0.0, %v1377
        %v1379 = vpop.f32.mrf.mxu0
        %v1380 = vadd.f32 0.0, %v1379
        %1381 = vdwg.mxu0
        %1382 = vmatpush.bf16.msra.mxu0 %v1307
        %1383 = vmatpush.bf16.msra.mxu0 %v1304
        %1384 = vmatpush.bf16.msra.mxu0 %v1301
        %1385 = vmatpush.bf16.msra.mxu0 %v1298
        %1386 = vmatpush.bf16.msra.mxu0 %v1295
        %1387 = vmatpush.bf16.msra.mxu0 %v1292
        %1388 = vmatpush.bf16.msra.mxu0 %v1289
        %1389 = vmatpush.bf16.msra.mxu0 %v1286
        %1390 = vmatmul.bf16.gmra.mxu0 %v1165
        %v1391 = vpop.f32.mrf.mxu0
        %v1392 = vadd.f32 0.0, %v1391
        %v1393 = vpop.f32.mrf.mxu0
        %v1394 = vadd.f32 0.0, %v1393
        %1395 = vmatmul.bf16.gmra.mxu0 %v1166
        %v1396 = vpop.f32.mrf.mxu0
        %v1397 = vadd.f32 0.0, %v1396
        %v1398 = vpop.f32.mrf.mxu0
        %v1399 = vadd.f32 0.0, %v1398
        %1400 = vmatmul.bf16.gmra.mxu0 %v1167
        %v1401 = vpop.f32.mrf.mxu0
        %v1402 = vadd.f32 0.0, %v1401
        %v1403 = vpop.f32.mrf.mxu0
        %v1404 = vadd.f32 0.0, %v1403
        %1405 = vmatmul.bf16.gmra.mxu0 %v1168
        %v1406 = vpop.f32.mrf.mxu0
        %v1407 = vadd.f32 0.0, %v1406
        %v1408 = vpop.f32.mrf.mxu0
        %v1409 = vadd.f32 0.0, %v1408
        %1410 = vmatmul.bf16.gmra.mxu0 %v1169
        %v1411 = vpop.f32.mrf.mxu0
        %v1412 = vadd.f32 0.0, %v1411
        %v1413 = vpop.f32.mrf.mxu0
        %v1414 = vadd.f32 0.0, %v1413
        %1415 = vmatmul.bf16.gmra.mxu0 %v1170
        %v1416 = vpop.f32.mrf.mxu0
        %v1417 = vadd.f32 0.0, %v1416
        %v1418 = vpop.f32.mrf.mxu0
        %v1419 = vadd.f32 0.0, %v1418
        %1420 = vmatmul.bf16.gmra.mxu0 %v1171
        %v1421 = vpop.f32.mrf.mxu0
        %v1422 = vadd.f32 0.0, %v1421
        %v1423 = vpop.f32.mrf.mxu0
        %v1424 = vadd.f32 0.0, %v1423
        %1425 = vmatmul.bf16.gmra.mxu0 %v1172
        %v1426 = vpop.f32.mrf.mxu0
        %v1427 = vadd.f32 0.0, %v1426
        %v1428 = vpop.f32.mrf.mxu0
        %v1429 = vadd.f32 0.0, %v1428
        %1430 = vdwg.mxu0
        %1431 = vmatpush.bf16.msra.mxu0 %v1308
        %1432 = vmatpush.bf16.msra.mxu0 %v1305
        %1433 = vmatpush.bf16.msra.mxu0 %v1302
        %1434 = vmatpush.bf16.msra.mxu0 %v1299
        %1435 = vmatpush.bf16.msra.mxu0 %v1296
        %1436 = vmatpush.bf16.msra.mxu0 %v1293
        %1437 = vmatpush.bf16.msra.mxu0 %v1290
        %1438 = vmatpush.bf16.msra.mxu0 %v1287
        %1439 = vmatmul.bf16.gmra.mxu0 %v1165
        %v1440 = vpop.f32.mrf.mxu0
        %v1441 = vadd.f32 0.0, %v1440
        %v1442 = vpop.f32.mrf.mxu0
        %v1443 = vadd.f32 0.0, %v1442
        %1444 = vmatmul.bf16.gmra.mxu0 %v1166
        %v1445 = vpop.f32.mrf.mxu0
        %v1446 = vadd.f32 0.0, %v1445
        %v1447 = vpop.f32.mrf.mxu0
        %v1448 = vadd.f32 0.0, %v1447
        %1449 = vmatmul.bf16.gmra.mxu0 %v1167
        %v1450 = vpop.f32.mrf.mxu0
        %v1451 = vadd.f32 0.0, %v1450
        %v1452 = vpop.f32.mrf.mxu0
        %v1453 = vadd.f32 0.0, %v1452
        %1454 = vmatmul.bf16.gmra.mxu0 %v1168
        %v1455 = vpop.f32.mrf.mxu0
        %v1456 = vadd.f32 0.0, %v1455
        %v1457 = vpop.f32.mrf.mxu0
        %v1458 = vadd.f32 0.0, %v1457
        %1459 = vmatmul.bf16.gmra.mxu0 %v1169
        %v1460 = vpop.f32.mrf.mxu0
        %v1461 = vadd.f32 0.0, %v1460
        %v1462 = vpop.f32.mrf.mxu0
        %v1463 = vadd.f32 0.0, %v1462
        %1464 = vmatmul.bf16.gmra.mxu0 %v1170
        %v1465 = vpop.f32.mrf.mxu0
        %v1466 = vadd.f32 0.0, %v1465
        %v1467 = vpop.f32.mrf.mxu0
        %v1468 = vadd.f32 0.0, %v1467
        %1469 = vmatmul.bf16.gmra.mxu0 %v1171
        %v1470 = vpop.f32.mrf.mxu0
        %v1471 = vadd.f32 0.0, %v1470
        %v1472 = vpop.f32.mrf.mxu0
        %v1473 = vadd.f32 0.0, %v1472
        %1474 = vmatmul.bf16.gmra.mxu0 %v1172
        %v1475 = vpop.f32.mrf.mxu0
        %v1476 = vadd.f32 0.0, %v1475
        %v1477 = vpop.f32.mrf.mxu0
        %v1478 = vadd.f32 0.0, %v1477
        %1479 = vdwg.mxu0
        %v1480 = vmul.f32 %v1343, 0.17677669
        %v1481 = vmul.f32 %v1345, 0.17677669
        %v1482 = vmul.f32 %v1348, 0.17677669
        %v1483 = vmul.f32 %v1350, 0.17677669
        %v1484 = vmul.f32 %v1353, 0.17677669
        %v1485 = vmul.f32 %v1355, 0.17677669
        %v1486 = vmul.f32 %v1358, 0.17677669
        %v1487 = vmul.f32 %v1360, 0.17677669
        %v1488 = vmul.f32 %v1363, 0.17677669
        %v1489 = vmul.f32 %v1365, 0.17677669
        %v1490 = vmul.f32 %v1368, 0.17677669
        %v1491 = vmul.f32 %v1370, 0.17677669
        %v1492 = vmul.f32 %v1373, 0.17677669
        %v1493 = vmul.f32 %v1375, 0.17677669
        %v1494 = vmul.f32 %v1378, 0.17677669
        %v1495 = vmul.f32 %v1380, 0.17677669
        %v1496 = vpack.c.bf16 %v1480, %v1480
        %v1497 = vpack.c.bf16 %v1481, %v1481
        %v1498 = vpack.c.bf16 %v1482, %v1482
        %v1499 = vpack.c.bf16 %v1483, %v1483
        %v1500 = vpack.c.bf16 %v1484, %v1484
        %v1501 = vpack.c.bf16 %v1485, %v1485
        %v1502 = vpack.c.bf16 %v1486, %v1486
        %v1503 = vpack.c.bf16 %v1487, %v1487
        %v1504 = vpack.c.bf16 %v1488, %v1488
        %v1505 = vpack.c.bf16 %v1489, %v1489
        %v1506 = vpack.c.bf16 %v1490, %v1490
        %v1507 = vpack.c.bf16 %v1491, %v1491
        %v1508 = vpack.c.bf16 %v1492, %v1492
        %v1509 = vpack.c.bf16 %v1493, %v1493
        %v1510 = vpack.c.bf16 %v1494, %v1494
        %v1511 = vpack.c.bf16 %v1495, %v1495
        %v1512 = vpack.c.bf16 %v1392, %v1392
        %v1513 = vpack.c.bf16 %v1394, %v1394
        %v1514 = vpack.c.bf16 %v1397, %v1397
        %v1515 = vpack.c.bf16 %v1399, %v1399
        %v1516 = vpack.c.bf16 %v1402, %v1402
        %v1517 = vpack.c.bf16 %v1404, %v1404
        %v1518 = vpack.c.bf16 %v1407, %v1407
        %v1519 = vpack.c.bf16 %v1409, %v1409
        %v1520 = vpack.c.bf16 %v1412, %v1412
        %v1521 = vpack.c.bf16 %v1414, %v1414
        %v1522 = vpack.c.bf16 %v1417, %v1417
        %v1523 = vpack.c.bf16 %v1419, %v1419
        %v1524 = vpack.c.bf16 %v1422, %v1422
        %v1525 = vpack.c.bf16 %v1424, %v1424
        %v1526 = vpack.c.bf16 %v1427, %v1427
        %v1527 = vpack.c.bf16 %v1429, %v1429
        %v1528 = vpack.c.bf16 %v1441, %v1441
        %v1529 = vpack.c.bf16 %v1443, %v1443
        %v1530 = vpack.c.bf16 %v1446, %v1446
        %v1531 = vpack.c.bf16 %v1448, %v1448
        %v1532 = vpack.c.bf16 %v1451, %v1451
        %v1533 = vpack.c.bf16 %v1453, %v1453
        %v1534 = vpack.c.bf16 %v1456, %v1456
        %v1535 = vpack.c.bf16 %v1458, %v1458
        %v1536 = vpack.c.bf16 %v1461, %v1461
        %v1537 = vpack.c.bf16 %v1463, %v1463
        %v1538 = vpack.c.bf16 %v1466, %v1466
        %v1539 = vpack.c.bf16 %v1468, %v1468
        %v1540 = vpack.c.bf16 %v1471, %v1471
        %v1541 = vpack.c.bf16 %v1473, %v1473
        %v1542 = vpack.c.bf16 %v1476, %v1476
        %v1543 = vpack.c.bf16 %v1478, %v1478
        %v1544 = vlaneseq
        %v1545 = vshrl.u32 %v1544, 7
        %v1546 = vadd.s32 %v1545, 8
        %v1547 = vadd.s32 %v1545, 16
        %v1548 = vadd.s32 %v1545, 24
        %v1549 = vadd.s32 %v1545, 32
        %v1550 = vadd.s32 %v1545, 40
        %v1551 = vadd.s32 %v1545, 48
        %v1552 = vadd.s32 %v1545, 56
        %v1553 = vadd.s32 %v1545, 64
        %v1554 = vadd.s32 %v1545, 72
        %v1555 = vadd.s32 %v1545, 80
        %v1556 = vadd.s32 %v1545, 88
        %v1557 = vadd.s32 %v1545, 96
        %v1558 = vadd.s32 %v1545, 104
        %v1559 = vadd.s32 %v1545, 112
        %v1560 = vadd.s32 %v1545, 120
        %v1561 = vlaneseq
        %v1562 = vand.u32 %v1561, 127
        %vm1563 = vcmp.ge.s32.totalorder %v1545, %v1562
        %vm1564 = vcmp.ge.s32.totalorder %v1546, %v1562
        %vm1565 = vcmp.ge.s32.totalorder %v1547, %v1562
        %vm1566 = vcmp.ge.s32.totalorder %v1548, %v1562
        %vm1567 = vcmp.ge.s32.totalorder %v1549, %v1562
        %vm1568 = vcmp.ge.s32.totalorder %v1550, %v1562
        %vm1569 = vcmp.ge.s32.totalorder %v1551, %v1562
        %vm1570 = vcmp.ge.s32.totalorder %v1552, %v1562
        %vm1571 = vcmp.ge.s32.totalorder %v1553, %v1562
        %vm1572 = vcmp.ge.s32.totalorder %v1554, %v1562
        %vm1573 = vcmp.ge.s32.totalorder %v1555, %v1562
        %vm1574 = vcmp.ge.s32.totalorder %v1556, %v1562
        %vm1575 = vcmp.ge.s32.totalorder %v1557, %v1562
        %vm1576 = vcmp.ge.s32.totalorder %v1558, %v1562
        %vm1577 = vcmp.ge.s32.totalorder %v1559, %v1562
        %vm1578 = vcmp.ge.s32.totalorder %v1560, %v1562
        %v1595 = vunpack.c.l.b16 %v1496
        %v1596 = vunpack.c.l.b16 %v1497
        %v1597 = vunpack.c.l.b16 %v1498
        %v1598 = vunpack.c.l.b16 %v1499
        %v1599 = vunpack.c.l.b16 %v1500
        %v1600 = vunpack.c.l.b16 %v1501
        %v1601 = vunpack.c.l.b16 %v1502
        %v1602 = vunpack.c.l.b16 %v1503
        %v1603 = vunpack.c.l.b16 %v1504
        %v1604 = vunpack.c.l.b16 %v1505
        %v1605 = vunpack.c.l.b16 %v1506
        %v1606 = vunpack.c.l.b16 %v1507
        %v1607 = vunpack.c.l.b16 %v1508
        %v1608 = vunpack.c.l.b16 %v1509
        %v1609 = vunpack.c.l.b16 %v1510
        %v1610 = vunpack.c.l.b16 %v1511
        %v1611 = vpack.c.b16 %v1596, %v1595
        %v1612 = vpack.c.b16 %v1598, %v1597
        %v1613 = vpack.c.b16 %v1600, %v1599
        %v1614 = vpack.c.b16 %v1602, %v1601
        %v1615 = vpack.c.b16 %v1604, %v1603
        %v1616 = vpack.c.b16 %v1606, %v1605
        %v1617 = vpack.c.b16 %v1608, %v1607
        %v1618 = vpack.c.b16 %v1610, %v1609
        %v1635 = vunpack.c.l.b16 %v1512
        %v1636 = vunpack.c.l.b16 %v1513
        %v1637 = vunpack.c.l.b16 %v1514
        %v1638 = vunpack.c.l.b16 %v1515
        %v1639 = vunpack.c.l.b16 %v1516
        %v1640 = vunpack.c.l.b16 %v1517
        %v1641 = vunpack.c.l.b16 %v1518
        %v1642 = vunpack.c.l.b16 %v1519
        %v1643 = vunpack.c.l.b16 %v1520
        %v1644 = vunpack.c.l.b16 %v1521
        %v1645 = vunpack.c.l.b16 %v1522
        %v1646 = vunpack.c.l.b16 %v1523
        %v1647 = vunpack.c.l.b16 %v1524
        %v1648 = vunpack.c.l.b16 %v1525
        %v1649 = vunpack.c.l.b16 %v1526
        %v1650 = vunpack.c.l.b16 %v1527
        %v1651 = vpack.c.b16 %v1636, %v1635
        %v1652 = vpack.c.b16 %v1638, %v1637
        %v1653 = vpack.c.b16 %v1640, %v1639
        %v1654 = vpack.c.b16 %v1642, %v1641
        %v1655 = vpack.c.b16 %v1644, %v1643
        %v1656 = vpack.c.b16 %v1646, %v1645
        %v1657 = vpack.c.b16 %v1648, %v1647
        %v1658 = vpack.c.b16 %v1650, %v1649
        %vm1659 = vcmask 261120
        %v1661 = vsel %vm1659, %v1611, 0
        %v1664 = vsel %vm1659, %v1612, 0
        %v1667 = vsel %vm1659, %v1613, 0
        %v1670 = vsel %vm1659, %v1614, 0
        %v1673 = vsel %vm1659, %v1615, 0
        %v1676 = vsel %vm1659, %v1616, 0
        %v1679 = vsel %vm1659, %v1617, 0
        %v1682 = vsel %vm1659, %v1618, 0
        %v1685 = vsel %vm1659, %v1651, 0
        %v1688 = vsel %vm1659, %v1652, 0
        %v1691 = vsel %vm1659, %v1653, 0
        %v1694 = vsel %vm1659, %v1654, 0
        %v1697 = vsel %vm1659, %v1655, 0
        %v1700 = vsel %vm1659, %v1656, 0
        %v1703 = vsel %vm1659, %v1657, 0
        %v1706 = vsel %vm1659, %v1658, 0
        %1708 = vmatpush.bf16.xpose.msra.mxu0 %v1706
        %1709 = vmatpush.bf16.xpose.msra.mxu0 %v1703
        %1710 = vmatpush.bf16.xpose.msra.mxu0 %v1700
        %1711 = vmatpush.bf16.xpose.msra.mxu0 %v1697
        %1712 = vmatpush.bf16.xpose.msra.mxu0 %v1694
        %1713 = vmatpush.bf16.xpose.msra.mxu0 %v1691
        %1714 = vmatpush.bf16.xpose.msra.mxu0 %v1688
        %1715 = vmatpush.bf16.xpose.msra.mxu0 %v1685
        %1716 = vmatmul.bf16.gmra.mxu0 %v1661
        %v1717 = vpop.f32.mrf.mxu0
        %v1718 = vadd.f32 0.0, %v1717
        %v1719 = vpop.f32.mrf.mxu0
        %v1720 = vadd.f32 0.0, %v1719
        %1721 = vmatmul.bf16.gmra.mxu0 %v1664
        %v1722 = vpop.f32.mrf.mxu0
        %v1723 = vadd.f32 0.0, %v1722
        %v1724 = vpop.f32.mrf.mxu0
        %v1725 = vadd.f32 0.0, %v1724
        %1726 = vmatmul.bf16.gmra.mxu0 %v1667
        %v1727 = vpop.f32.mrf.mxu0
        %v1728 = vadd.f32 0.0, %v1727
        %v1729 = vpop.f32.mrf.mxu0
        %v1730 = vadd.f32 0.0, %v1729
        %1731 = vmatmul.bf16.gmra.mxu0 %v1670
        %v1732 = vpop.f32.mrf.mxu0
        %v1733 = vadd.f32 0.0, %v1732
        %v1734 = vpop.f32.mrf.mxu0
        %v1735 = vadd.f32 0.0, %v1734
        %1736 = vmatmul.bf16.gmra.mxu0 %v1673
        %v1737 = vpop.f32.mrf.mxu0
        %v1738 = vadd.f32 0.0, %v1737
        %v1739 = vpop.f32.mrf.mxu0
        %v1740 = vadd.f32 0.0, %v1739
        %1741 = vmatmul.bf16.gmra.mxu0 %v1676
        %v1742 = vpop.f32.mrf.mxu0
        %v1743 = vadd.f32 0.0, %v1742
        %v1744 = vpop.f32.mrf.mxu0
        %v1745 = vadd.f32 0.0, %v1744
        %1746 = vmatmul.bf16.gmra.mxu0 %v1679
        %v1747 = vpop.f32.mrf.mxu0
        %v1748 = vadd.f32 0.0, %v1747
        %v1749 = vpop.f32.mrf.mxu0
        %v1750 = vadd.f32 0.0, %v1749
        %1751 = vmatmul.bf16.gmra.mxu0 %v1682
        %v1752 = vpop.f32.mrf.mxu0
        %v1753 = vadd.f32 0.0, %v1752
        %v1754 = vpop.f32.mrf.mxu0
        %v1755 = vadd.f32 0.0, %v1754
        %1756 = vdwg.mxu0
        %v1757 = vsel %vm1563, %v1718, 1e-09
        %v1758 = vsel %vm1564, %v1720, 1e-09
        %v1759 = vsel %vm1565, %v1723, 1e-09
        %v1760 = vsel %vm1566, %v1725, 1e-09
        %v1761 = vsel %vm1567, %v1728, 1e-09
        %v1762 = vsel %vm1568, %v1730, 1e-09
        %v1763 = vsel %vm1569, %v1733, 1e-09
        %v1764 = vsel %vm1570, %v1735, 1e-09
        %v1765 = vsel %vm1571, %v1738, 1e-09
        %v1766 = vsel %vm1572, %v1740, 1e-09
        %v1767 = vsel %vm1573, %v1743, 1e-09
        %v1768 = vsel %vm1574, %v1745, 1e-09
        %v1769 = vsel %vm1575, %v1748, 1e-09
        %v1770 = vsel %vm1576, %v1750, 1e-09
        %v1771 = vsel %vm1577, %v1753, 1e-09
        %v1772 = vsel %vm1578, %v1755, 1e-09
        %1773 = vmax.xlane.f32.xlu0 %v1757
        %v1774 = vpop.xlane.xlu0 %1773
        %1775 = vmax.xlane.f32.xlu0 %v1758
        %v1776 = vpop.xlane.xlu0 %1775
        %1777 = vmax.xlane.f32.xlu0 %v1759
        %v1778 = vpop.xlane.xlu0 %1777
        %1779 = vmax.xlane.f32.xlu0 %v1760
        %v1780 = vpop.xlane.xlu0 %1779
        %1781 = vmax.xlane.f32.xlu0 %v1761
        %v1782 = vpop.xlane.xlu0 %1781
        %1783 = vmax.xlane.f32.xlu0 %v1762
        %v1784 = vpop.xlane.xlu0 %1783
        %1785 = vmax.xlane.f32.xlu0 %v1763
        %v1786 = vpop.xlane.xlu0 %1785
        %1787 = vmax.xlane.f32.xlu0 %v1764
        %v1788 = vpop.xlane.xlu0 %1787
        %1789 = vmax.xlane.f32.xlu0 %v1765
        %v1790 = vpop.xlane.xlu0 %1789
        %1791 = vmax.xlane.f32.xlu0 %v1766
        %v1792 = vpop.xlane.xlu0 %1791
        %1793 = vmax.xlane.f32.xlu0 %v1767
        %v1794 = vpop.xlane.xlu0 %1793
        %1795 = vmax.xlane.f32.xlu0 %v1768
        %v1796 = vpop.xlane.xlu0 %1795
        %1797 = vmax.xlane.f32.xlu0 %v1769
        %v1798 = vpop.xlane.xlu0 %1797
        %1799 = vmax.xlane.f32.xlu0 %v1770
        %v1800 = vpop.xlane.xlu0 %1799
        %1801 = vmax.xlane.f32.xlu0 %v1771
        %v1802 = vpop.xlane.xlu0 %1801
        %1803 = vmax.xlane.f32.xlu0 %v1772
        %v1804 = vpop.xlane.xlu0 %1803
        %v1805 = vsub.f32 %v1757, %v1774
        %v1806 = vsub.f32 %v1758, %v1776
        %v1807 = vsub.f32 %v1759, %v1778
        %v1808 = vsub.f32 %v1760, %v1780
        %v1809 = vsub.f32 %v1761, %v1782
        %v1810 = vsub.f32 %v1762, %v1784
        %v1811 = vsub.f32 %v1763, %v1786
        %v1812 = vsub.f32 %v1764, %v1788
        %v1813 = vsub.f32 %v1765, %v1790
        %v1814 = vsub.f32 %v1766, %v1792
        %v1815 = vsub.f32 %v1767, %v1794
        %v1816 = vsub.f32 %v1768, %v1796
        %v1817 = vsub.f32 %v1769, %v1798
        %v1818 = vsub.f32 %v1770, %v1800
        %v1819 = vsub.f32 %v1771, %v1802
        %v1820 = vsub.f32 %v1772, %v1804
        %v1821 = vmul.f32 %v1805, 1.442695
        %v1822 = vpow.pop %v1821
        %v1823 = vmul.f32 %v1806, 1.442695
        %v1824 = vpow.pop %v1823
        %v1825 = vmul.f32 %v1807, 1.442695
        %v1826 = vpow.pop %v1825
        %v1827 = vmul.f32 %v1808, 1.442695
        %v1828 = vpow.pop %v1827
        %v1829 = vmul.f32 %v1809, 1.442695
        %v1830 = vpow.pop %v1829
        %v1831 = vmul.f32 %v1810, 1.442695
        %v1832 = vpow.pop %v1831
        %v1833 = vmul.f32 %v1811, 1.442695
        %v1834 = vpow.pop %v1833
        %v1835 = vmul.f32 %v1812, 1.442695
        %v1836 = vpow.pop %v1835
        %v1837 = vmul.f32 %v1813, 1.442695
        %v1838 = vpow.pop %v1837
        %v1839 = vmul.f32 %v1814, 1.442695
        %v1840 = vpow.pop %v1839
        %v1841 = vmul.f32 %v1815, 1.442695
        %v1842 = vpow.pop %v1841
        %v1843 = vmul.f32 %v1816, 1.442695
        %v1844 = vpow.pop %v1843
        %v1845 = vmul.f32 %v1817, 1.442695
        %v1846 = vpow.pop %v1845
        %v1847 = vmul.f32 %v1818, 1.442695
        %v1848 = vpow.pop %v1847
        %v1849 = vmul.f32 %v1819, 1.442695
        %v1850 = vpow.pop %v1849
        %v1851 = vmul.f32 %v1820, 1.442695
        %v1852 = vpow.pop %v1851
        %1853 = vadd.xlane.f32.xlu0 %v1822
        %v1854 = vpop.xlane.xlu0 %1853
        %1855 = vadd.xlane.f32.xlu0 %v1824
        %v1856 = vpop.xlane.xlu0 %1855
        %1857 = vadd.xlane.f32.xlu0 %v1826
        %v1858 = vpop.xlane.xlu0 %1857
        %1859 = vadd.xlane.f32.xlu0 %v1828
        %v1860 = vpop.xlane.xlu0 %1859
        %1861 = vadd.xlane.f32.xlu0 %v1830
        %v1862 = vpop.xlane.xlu0 %1861
        %1863 = vadd.xlane.f32.xlu0 %v1832
        %v1864 = vpop.xlane.xlu0 %1863
        %1865 = vadd.xlane.f32.xlu0 %v1834
        %v1866 = vpop.xlane.xlu0 %1865
        %1867 = vadd.xlane.f32.xlu0 %v1836
        %v1868 = vpop.xlane.xlu0 %1867
        %1869 = vadd.xlane.f32.xlu0 %v1838
        %v1870 = vpop.xlane.xlu0 %1869
        %1871 = vadd.xlane.f32.xlu0 %v1840
        %v1872 = vpop.xlane.xlu0 %1871
        %1873 = vadd.xlane.f32.xlu0 %v1842
        %v1874 = vpop.xlane.xlu0 %1873
        %1875 = vadd.xlane.f32.xlu0 %v1844
        %v1876 = vpop.xlane.xlu0 %1875
        %1877 = vadd.xlane.f32.xlu0 %v1846
        %v1878 = vpop.xlane.xlu0 %1877
        %1879 = vadd.xlane.f32.xlu0 %v1848
        %v1880 = vpop.xlane.xlu0 %1879
        %1881 = vadd.xlane.f32.xlu0 %v1850
        %v1882 = vpop.xlane.xlu0 %1881
        %1883 = vadd.xlane.f32.xlu0 %v1852
        %v1884 = vpop.xlane.xlu0 %1883
        %v1885 = vrcp.pop %v1854
        %v1886 = vrcp.pop %v1856
        %v1887 = vrcp.pop %v1858
        %v1888 = vrcp.pop %v1860
        %v1889 = vrcp.pop %v1862
        %v1890 = vrcp.pop %v1864
        %v1891 = vrcp.pop %v1866
        %v1892 = vrcp.pop %v1868
        %v1893 = vrcp.pop %v1870
        %v1894 = vrcp.pop %v1872
        %v1895 = vrcp.pop %v1874
        %v1896 = vrcp.pop %v1876
        %v1897 = vrcp.pop %v1878
        %v1898 = vrcp.pop %v1880
        %v1899 = vrcp.pop %v1882
        %v1900 = vrcp.pop %v1884
        %v1901 = vmul.f32 %v1822, %v1885
        %v1902 = vmul.f32 %v1824, %v1886
        %v1903 = vmul.f32 %v1826, %v1887
        %v1904 = vmul.f32 %v1828, %v1888
        %v1905 = vmul.f32 %v1830, %v1889
        %v1906 = vmul.f32 %v1832, %v1890
        %v1907 = vmul.f32 %v1834, %v1891
        %v1908 = vmul.f32 %v1836, %v1892
        %v1909 = vmul.f32 %v1838, %v1893
        %v1910 = vmul.f32 %v1840, %v1894
        %v1911 = vmul.f32 %v1842, %v1895
        %v1912 = vmul.f32 %v1844, %v1896
        %v1913 = vmul.f32 %v1846, %v1897
        %v1914 = vmul.f32 %v1848, %v1898
        %v1915 = vmul.f32 %v1850, %v1899
        %v1916 = vmul.f32 %v1852, %v1900
        %v1917 = vpack.c.bf16 %v1902, %v1901
        %v1918 = vpack.c.bf16 %v1904, %v1903
        %v1919 = vpack.c.bf16 %v1906, %v1905
        %v1920 = vpack.c.bf16 %v1908, %v1907
        %v1921 = vpack.c.bf16 %v1910, %v1909
        %v1922 = vpack.c.bf16 %v1912, %v1911
        %v1923 = vpack.c.bf16 %v1914, %v1913
        %v1924 = vpack.c.bf16 %v1916, %v1915
        %v1941 = vunpack.c.l.b16 %v1528
        %v1942 = vunpack.c.l.b16 %v1529
        %v1943 = vunpack.c.l.b16 %v1530
        %v1944 = vunpack.c.l.b16 %v1531
        %v1945 = vunpack.c.l.b16 %v1532
        %v1946 = vunpack.c.l.b16 %v1533
        %v1947 = vunpack.c.l.b16 %v1534
        %v1948 = vunpack.c.l.b16 %v1535
        %v1949 = vunpack.c.l.b16 %v1536
        %v1950 = vunpack.c.l.b16 %v1537
        %v1951 = vunpack.c.l.b16 %v1538
        %v1952 = vunpack.c.l.b16 %v1539
        %v1953 = vunpack.c.l.b16 %v1540
        %v1954 = vunpack.c.l.b16 %v1541
        %v1955 = vunpack.c.l.b16 %v1542
        %v1956 = vunpack.c.l.b16 %v1543
        %v1957 = vpack.c.b16 %v1942, %v1941
        %v1958 = vpack.c.b16 %v1944, %v1943
        %v1959 = vpack.c.b16 %v1946, %v1945
        %v1960 = vpack.c.b16 %v1948, %v1947
        %v1961 = vpack.c.b16 %v1950, %v1949
        %v1962 = vpack.c.b16 %v1952, %v1951
        %v1963 = vpack.c.b16 %v1954, %v1953
        %v1964 = vpack.c.b16 %v1956, %v1955
        %1973 = vmatpush.bf16.msra.mxu0 %v1964
        %1974 = vmatpush.bf16.msra.mxu0 %v1963
        %1975 = vmatpush.bf16.msra.mxu0 %v1962
        %1976 = vmatpush.bf16.msra.mxu0 %v1961
        %1977 = vmatpush.bf16.msra.mxu0 %v1960
        %1978 = vmatpush.bf16.msra.mxu0 %v1959
        %1979 = vmatpush.bf16.msra.mxu0 %v1958
        %1980 = vmatpush.bf16.msra.mxu0 %v1957
        %1981 = vmatmul.bf16.gmra.mxu0 %v1917
        %v1982 = vpop.f32.mrf.mxu0
        %v1983 = vadd.f32 0.0, %v1982
        %v1984 = vpop.f32.mrf.mxu0
        %v1985 = vadd.f32 0.0, %v1984
        %1986 = vmatmul.bf16.gmra.mxu0 %v1918
        %v1987 = vpop.f32.mrf.mxu0
        %v1988 = vadd.f32 0.0, %v1987
        %v1989 = vpop.f32.mrf.mxu0
        %v1990 = vadd.f32 0.0, %v1989
        %1991 = vmatmul.bf16.gmra.mxu0 %v1919
        %v1992 = vpop.f32.mrf.mxu0
        %v1993 = vadd.f32 0.0, %v1992
        %v1994 = vpop.f32.mrf.mxu0
        %v1995 = vadd.f32 0.0, %v1994
        %1996 = vmatmul.bf16.gmra.mxu0 %v1920
        %v1997 = vpop.f32.mrf.mxu0
        %v1998 = vadd.f32 0.0, %v1997
        %v1999 = vpop.f32.mrf.mxu0
        %v2000 = vadd.f32 0.0, %v1999
        %2001 = vmatmul.bf16.gmra.mxu0 %v1921
        %v2002 = vpop.f32.mrf.mxu0
        %v2003 = vadd.f32 0.0, %v2002
        %v2004 = vpop.f32.mrf.mxu0
        %v2005 = vadd.f32 0.0, %v2004
        %2006 = vmatmul.bf16.gmra.mxu0 %v1922
        %v2007 = vpop.f32.mrf.mxu0
        %v2008 = vadd.f32 0.0, %v2007
        %v2009 = vpop.f32.mrf.mxu0
        %v2010 = vadd.f32 0.0, %v2009
        %2011 = vmatmul.bf16.gmra.mxu0 %v1923
        %v2012 = vpop.f32.mrf.mxu0
        %v2013 = vadd.f32 0.0, %v2012
        %v2014 = vpop.f32.mrf.mxu0
        %v2015 = vadd.f32 0.0, %v2014
        %2016 = vmatmul.bf16.gmra.mxu0 %v1924
        %v2017 = vpop.f32.mrf.mxu0
        %v2018 = vadd.f32 0.0, %v2017
        %v2019 = vpop.f32.mrf.mxu0
        %v2020 = vadd.f32 0.0, %v2019
        %2021 = vdwg.mxu0
        %v2022 = vpack.c.bf16 %v1983, %v1983
        %v2023 = vpack.c.bf16 %v1985, %v1985
        %v2024 = vpack.c.bf16 %v1988, %v1988
        %v2025 = vpack.c.bf16 %v1990, %v1990
        %v2026 = vpack.c.bf16 %v1993, %v1993
        %v2027 = vpack.c.bf16 %v1995, %v1995
        %v2028 = vpack.c.bf16 %v1998, %v1998
        %v2029 = vpack.c.bf16 %v2000, %v2000
        %v2030 = vpack.c.bf16 %v2003, %v2003
        %v2031 = vpack.c.bf16 %v2005, %v2005
        %v2032 = vpack.c.bf16 %v2008, %v2008
        %v2033 = vpack.c.bf16 %v2010, %v2010
        %v2034 = vpack.c.bf16 %v2013, %v2013
        %v2035 = vpack.c.bf16 %v2015, %v2015
        %v2036 = vpack.c.bf16 %v2018, %v2018
        %v2037 = vpack.c.bf16 %v2020, %v2020
        %2038 = vrot.lane.b32.xlu0 %v1611, 96
        %v2039 = vpop.permute.xlu0 %2038
        %2040 = vrot.lane.b32.xlu0 %v1612, 96
        %v2041 = vpop.permute.xlu0 %2040
        %2042 = vrot.lane.b32.xlu0 %v1613, 96
        %v2043 = vpop.permute.xlu0 %2042
        %2044 = vrot.lane.b32.xlu0 %v1614, 96
        %v2045 = vpop.permute.xlu0 %2044
        %2046 = vrot.lane.b32.xlu0 %v1615, 96
        %v2047 = vpop.permute.xlu0 %2046
        %2048 = vrot.lane.b32.xlu0 %v1616, 96
        %v2049 = vpop.permute.xlu0 %2048
        %2050 = vrot.lane.b32.xlu0 %v1617, 96
        %v2051 = vpop.permute.xlu0 %2050
        %2052 = vrot.lane.b32.xlu0 %v1618, 96
        %v2053 = vpop.permute.xlu0 %2052
        %2054 = vrot.lane.b32.xlu0 %v1651, 96
        %v2055 = vpop.permute.xlu0 %2054
        %2056 = vrot.lane.b32.xlu0 %v1652, 96
        %v2057 = vpop.permute.xlu0 %2056
        %2058 = vrot.lane.b32.xlu0 %v1653, 96
        %v2059 = vpop.permute.xlu0 %2058
        %2060 = vrot.lane.b32.xlu0 %v1654, 96
        %v2061 = vpop.permute.xlu0 %2060
        %2062 = vrot.lane.b32.xlu0 %v1655, 96
        %v2063 = vpop.permute.xlu0 %2062
        %2064 = vrot.lane.b32.xlu0 %v1656, 96
        %v2065 = vpop.permute.xlu0 %2064
        %2066 = vrot.lane.b32.xlu0 %v1657, 96
        %v2067 = vpop.permute.xlu0 %2066
        %2068 = vrot.lane.b32.xlu0 %v1658, 96
        %v2069 = vpop.permute.xlu0 %2068
        %v2071 = vsel %vm1659, %v2039, 0
        %v2074 = vsel %vm1659, %v2041, 0
        %v2077 = vsel %vm1659, %v2043, 0
        %v2080 = vsel %vm1659, %v2045, 0
        %v2083 = vsel %vm1659, %v2047, 0
        %v2086 = vsel %vm1659, %v2049, 0
        %v2089 = vsel %vm1659, %v2051, 0
        %v2092 = vsel %vm1659, %v2053, 0
        %v2095 = vsel %vm1659, %v2055, 0
        %v2098 = vsel %vm1659, %v2057, 0
        %v2101 = vsel %vm1659, %v2059, 0
        %v2104 = vsel %vm1659, %v2061, 0
        %v2107 = vsel %vm1659, %v2063, 0
        %v2110 = vsel %vm1659, %v2065, 0
        %v2113 = vsel %vm1659, %v2067, 0
        %v2116 = vsel %vm1659, %v2069, 0
        %2118 = vmatpush.bf16.xpose.msra.mxu0 %v2116
        %2119 = vmatpush.bf16.xpose.msra.mxu0 %v2113
        %2120 = vmatpush.bf16.xpose.msra.mxu0 %v2110
        %2121 = vmatpush.bf16.xpose.msra.mxu0 %v2107
        %2122 = vmatpush.bf16.xpose.msra.mxu0 %v2104
        %2123 = vmatpush.bf16.xpose.msra.mxu0 %v2101
        %2124 = vmatpush.bf16.xpose.msra.mxu0 %v2098
        %2125 = vmatpush.bf16.xpose.msra.mxu0 %v2095
        %2126 = vmatmul.bf16.gmra.mxu0 %v2071
        %v2127 = vpop.f32.mrf.mxu0
        %v2128 = vadd.f32 0.0, %v2127
        %v2129 = vpop.f32.mrf.mxu0
        %v2130 = vadd.f32 0.0, %v2129
        %2131 = vmatmul.bf16.gmra.mxu0 %v2074
        %v2132 = vpop.f32.mrf.mxu0
        %v2133 = vadd.f32 0.0, %v2132
        %v2134 = vpop.f32.mrf.mxu0
        %v2135 = vadd.f32 0.0, %v2134
        %2136 = vmatmul.bf16.gmra.mxu0 %v2077
        %v2137 = vpop.f32.mrf.mxu0
        %v2138 = vadd.f32 0.0, %v2137
        %v2139 = vpop.f32.mrf.mxu0
        %v2140 = vadd.f32 0.0, %v2139
        %2141 = vmatmul.bf16.gmra.mxu0 %v2080
        %v2142 = vpop.f32.mrf.mxu0
        %v2143 = vadd.f32 0.0, %v2142
        %v2144 = vpop.f32.mrf.mxu0
        %v2145 = vadd.f32 0.0, %v2144
        %2146 = vmatmul.bf16.gmra.mxu0 %v2083
        %v2147 = vpop.f32.mrf.mxu0
        %v2148 = vadd.f32 0.0, %v2147
        %v2149 = vpop.f32.mrf.mxu0
        %v2150 = vadd.f32 0.0, %v2149
        %2151 = vmatmul.bf16.gmra.mxu0 %v2086
        %v2152 = vpop.f32.mrf.mxu0
        %v2153 = vadd.f32 0.0, %v2152
        %v2154 = vpop.f32.mrf.mxu0
        %v2155 = vadd.f32 0.0, %v2154
        %2156 = vmatmul.bf16.gmra.mxu0 %v2089
        %v2157 = vpop.f32.mrf.mxu0
        %v2158 = vadd.f32 0.0, %v2157
        %v2159 = vpop.f32.mrf.mxu0
        %v2160 = vadd.f32 0.0, %v2159
        %2161 = vmatmul.bf16.gmra.mxu0 %v2092
        %v2162 = vpop.f32.mrf.mxu0
        %v2163 = vadd.f32 0.0, %v2162
        %v2164 = vpop.f32.mrf.mxu0
        %v2165 = vadd.f32 0.0, %v2164
        %2166 = vdwg.mxu0
        %v2167 = vsel %vm1563, %v2128, 1e-09
        %v2168 = vsel %vm1564, %v2130, 1e-09
        %v2169 = vsel %vm1565, %v2133, 1e-09
        %v2170 = vsel %vm1566, %v2135, 1e-09
        %v2171 = vsel %vm1567, %v2138, 1e-09
        %v2172 = vsel %vm1568, %v2140, 1e-09
        %v2173 = vsel %vm1569, %v2143, 1e-09
        %v2174 = vsel %vm1570, %v2145, 1e-09
        %v2175 = vsel %vm1571, %v2148, 1e-09
        %v2176 = vsel %vm1572, %v2150, 1e-09
        %v2177 = vsel %vm1573, %v2153, 1e-09
        %v2178 = vsel %vm1574, %v2155, 1e-09
        %v2179 = vsel %vm1575, %v2158, 1e-09
        %v2180 = vsel %vm1576, %v2160, 1e-09
        %v2181 = vsel %vm1577, %v2163, 1e-09
        %v2182 = vsel %vm1578, %v2165, 1e-09
        %2183 = vmax.xlane.f32.xlu0 %v2167
        %v2184 = vpop.xlane.xlu0 %2183
        %2185 = vmax.xlane.f32.xlu0 %v2168
        %v2186 = vpop.xlane.xlu0 %2185
        %2187 = vmax.xlane.f32.xlu0 %v2169
        %v2188 = vpop.xlane.xlu0 %2187
        %2189 = vmax.xlane.f32.xlu0 %v2170
        %v2190 = vpop.xlane.xlu0 %2189
        %2191 = vmax.xlane.f32.xlu0 %v2171
        %v2192 = vpop.xlane.xlu0 %2191
        %2193 = vmax.xlane.f32.xlu0 %v2172
        %v2194 = vpop.xlane.xlu0 %2193
        %2195 = vmax.xlane.f32.xlu0 %v2173
        %v2196 = vpop.xlane.xlu0 %2195
        %2197 = vmax.xlane.f32.xlu0 %v2174
        %v2198 = vpop.xlane.xlu0 %2197
        %2199 = vmax.xlane.f32.xlu0 %v2175
        %v2200 = vpop.xlane.xlu0 %2199
        %2201 = vmax.xlane.f32.xlu0 %v2176
        %v2202 = vpop.xlane.xlu0 %2201
        %2203 = vmax.xlane.f32.xlu0 %v2177
        %v2204 = vpop.xlane.xlu0 %2203
        %2205 = vmax.xlane.f32.xlu0 %v2178
        %v2206 = vpop.xlane.xlu0 %2205
        %2207 = vmax.xlane.f32.xlu0 %v2179
        %v2208 = vpop.xlane.xlu0 %2207
        %2209 = vmax.xlane.f32.xlu0 %v2180
        %v2210 = vpop.xlane.xlu0 %2209
        %2211 = vmax.xlane.f32.xlu0 %v2181
        %v2212 = vpop.xlane.xlu0 %2211
        %2213 = vmax.xlane.f32.xlu0 %v2182
        %v2214 = vpop.xlane.xlu0 %2213
        %v2215 = vsub.f32 %v2167, %v2184
        %v2216 = vsub.f32 %v2168, %v2186
        %v2217 = vsub.f32 %v2169, %v2188
        %v2218 = vsub.f32 %v2170, %v2190
        %v2219 = vsub.f32 %v2171, %v2192
        %v2220 = vsub.f32 %v2172, %v2194
        %v2221 = vsub.f32 %v2173, %v2196
        %v2222 = vsub.f32 %v2174, %v2198
        %v2223 = vsub.f32 %v2175, %v2200
        %v2224 = vsub.f32 %v2176, %v2202
        %v2225 = vsub.f32 %v2177, %v2204
        %v2226 = vsub.f32 %v2178, %v2206
        %v2227 = vsub.f32 %v2179, %v2208
        %v2228 = vsub.f32 %v2180, %v2210
        %v2229 = vsub.f32 %v2181, %v2212
        %v2230 = vsub.f32 %v2182, %v2214
        %v2231 = vmul.f32 %v2215, 1.442695
        %v2232 = vpow.pop %v2231
        %v2233 = vmul.f32 %v2216, 1.442695
        %v2234 = vpow.pop %v2233
        %v2235 = vmul.f32 %v2217, 1.442695
        %v2236 = vpow.pop %v2235
        %v2237 = vmul.f32 %v2218, 1.442695
        %v2238 = vpow.pop %v2237
        %v2239 = vmul.f32 %v2219, 1.442695
        %v2240 = vpow.pop %v2239
        %v2241 = vmul.f32 %v2220, 1.442695
        %v2242 = vpow.pop %v2241
        %v2243 = vmul.f32 %v2221, 1.442695
        %v2244 = vpow.pop %v2243
        %v2245 = vmul.f32 %v2222, 1.442695
        %v2246 = vpow.pop %v2245
        %v2247 = vmul.f32 %v2223, 1.442695
        %v2248 = vpow.pop %v2247
        %v2249 = vmul.f32 %v2224, 1.442695
        %v2250 = vpow.pop %v2249
        %v2251 = vmul.f32 %v2225, 1.442695
        %v2252 = vpow.pop %v2251
        %v2253 = vmul.f32 %v2226, 1.442695
        %v2254 = vpow.pop %v2253
        %v2255 = vmul.f32 %v2227, 1.442695
        %v2256 = vpow.pop %v2255
        %v2257 = vmul.f32 %v2228, 1.442695
        %v2258 = vpow.pop %v2257
        %v2259 = vmul.f32 %v2229, 1.442695
        %v2260 = vpow.pop %v2259
        %v2261 = vmul.f32 %v2230, 1.442695
        %v2262 = vpow.pop %v2261
        %2263 = vadd.xlane.f32.xlu0 %v2232
        %v2264 = vpop.xlane.xlu0 %2263
        %2265 = vadd.xlane.f32.xlu0 %v2234
        %v2266 = vpop.xlane.xlu0 %2265
        %2267 = vadd.xlane.f32.xlu0 %v2236
        %v2268 = vpop.xlane.xlu0 %2267
        %2269 = vadd.xlane.f32.xlu0 %v2238
        %v2270 = vpop.xlane.xlu0 %2269
        %2271 = vadd.xlane.f32.xlu0 %v2240
        %v2272 = vpop.xlane.xlu0 %2271
        %2273 = vadd.xlane.f32.xlu0 %v2242
        %v2274 = vpop.xlane.xlu0 %2273
        %2275 = vadd.xlane.f32.xlu0 %v2244
        %v2276 = vpop.xlane.xlu0 %2275
        %2277 = vadd.xlane.f32.xlu0 %v2246
        %v2278 = vpop.xlane.xlu0 %2277
        %2279 = vadd.xlane.f32.xlu0 %v2248
        %v2280 = vpop.xlane.xlu0 %2279
        %2281 = vadd.xlane.f32.xlu0 %v2250
        %v2282 = vpop.xlane.xlu0 %2281
        %2283 = vadd.xlane.f32.xlu0 %v2252
        %v2284 = vpop.xlane.xlu0 %2283
        %2285 = vadd.xlane.f32.xlu0 %v2254
        %v2286 = vpop.xlane.xlu0 %2285
        %2287 = vadd.xlane.f32.xlu0 %v2256
        %v2288 = vpop.xlane.xlu0 %2287
        %2289 = vadd.xlane.f32.xlu0 %v2258
        %v2290 = vpop.xlane.xlu0 %2289
        %2291 = vadd.xlane.f32.xlu0 %v2260
        %v2292 = vpop.xlane.xlu0 %2291
        %2293 = vadd.xlane.f32.xlu0 %v2262
        %v2294 = vpop.xlane.xlu0 %2293
        %v2295 = vrcp.pop %v2264
        %v2296 = vrcp.pop %v2266
        %v2297 = vrcp.pop %v2268
        %v2298 = vrcp.pop %v2270
        %v2299 = vrcp.pop %v2272
        %v2300 = vrcp.pop %v2274
        %v2301 = vrcp.pop %v2276
        %v2302 = vrcp.pop %v2278
        %v2303 = vrcp.pop %v2280
        %v2304 = vrcp.pop %v2282
        %v2305 = vrcp.pop %v2284
        %v2306 = vrcp.pop %v2286
        %v2307 = vrcp.pop %v2288
        %v2308 = vrcp.pop %v2290
        %v2309 = vrcp.pop %v2292
        %v2310 = vrcp.pop %v2294
        %v2311 = vmul.f32 %v2232, %v2295
        %v2312 = vmul.f32 %v2234, %v2296
        %v2313 = vmul.f32 %v2236, %v2297
        %v2314 = vmul.f32 %v2238, %v2298
        %v2315 = vmul.f32 %v2240, %v2299
        %v2316 = vmul.f32 %v2242, %v2300
        %v2317 = vmul.f32 %v2244, %v2301
        %v2318 = vmul.f32 %v2246, %v2302
        %v2319 = vmul.f32 %v2248, %v2303
        %v2320 = vmul.f32 %v2250, %v2304
        %v2321 = vmul.f32 %v2252, %v2305
        %v2322 = vmul.f32 %v2254, %v2306
        %v2323 = vmul.f32 %v2256, %v2307
        %v2324 = vmul.f32 %v2258, %v2308
        %v2325 = vmul.f32 %v2260, %v2309
        %v2326 = vmul.f32 %v2262, %v2310
        %v2327 = vpack.c.bf16 %v2312, %v2311
        %v2328 = vpack.c.bf16 %v2314, %v2313
        %v2329 = vpack.c.bf16 %v2316, %v2315
        %v2330 = vpack.c.bf16 %v2318, %v2317
        %v2331 = vpack.c.bf16 %v2320, %v2319
        %v2332 = vpack.c.bf16 %v2322, %v2321
        %v2333 = vpack.c.bf16 %v2324, %v2323
        %v2334 = vpack.c.bf16 %v2326, %v2325
        %2335 = vrot.lane.b32.xlu0 %v1957, 96
        %v2336 = vpop.permute.xlu0 %2335
        %2337 = vrot.lane.b32.xlu0 %v1958, 96
        %v2338 = vpop.permute.xlu0 %2337
        %2339 = vrot.lane.b32.xlu0 %v1959, 96
        %v2340 = vpop.permute.xlu0 %2339
        %2341 = vrot.lane.b32.xlu0 %v1960, 96
        %v2342 = vpop.permute.xlu0 %2341
        %2343 = vrot.lane.b32.xlu0 %v1961, 96
        %v2344 = vpop.permute.xlu0 %2343
        %2345 = vrot.lane.b32.xlu0 %v1962, 96
        %v2346 = vpop.permute.xlu0 %2345
        %2347 = vrot.lane.b32.xlu0 %v1963, 96
        %v2348 = vpop.permute.xlu0 %2347
        %2349 = vrot.lane.b32.xlu0 %v1964, 96
        %v2350 = vpop.permute.xlu0 %2349
        %2359 = vmatpush.bf16.msra.mxu0 %v2350
        %2360 = vmatpush.bf16.msra.mxu0 %v2348
        %2361 = vmatpush.bf16.msra.mxu0 %v2346
        %2362 = vmatpush.bf16.msra.mxu0 %v2344
        %2363 = vmatpush.bf16.msra.mxu0 %v2342
        %2364 = vmatpush.bf16.msra.mxu0 %v2340
        %2365 = vmatpush.bf16.msra.mxu0 %v2338
        %2366 = vmatpush.bf16.msra.mxu0 %v2336
        %2367 = vmatmul.bf16.gmra.mxu0 %v2327
        %v2368 = vpop.f32.mrf.mxu0
        %v2369 = vadd.f32 0.0, %v2368
        %v2370 = vpop.f32.mrf.mxu0
        %v2371 = vadd.f32 0.0, %v2370
        %2372 = vmatmul.bf16.gmra.mxu0 %v2328
        %v2373 = vpop.f32.mrf.mxu0
        %v2374 = vadd.f32 0.0, %v2373
        %v2375 = vpop.f32.mrf.mxu0
        %v2376 = vadd.f32 0.0, %v2375
        %2377 = vmatmul.bf16.gmra.mxu0 %v2329
        %v2378 = vpop.f32.mrf.mxu0
        %v2379 = vadd.f32 0.0, %v2378
        %v2380 = vpop.f32.mrf.mxu0
        %v2381 = vadd.f32 0.0, %v2380
        %2382 = vmatmul.bf16.gmra.mxu0 %v2330
        %v2383 = vpop.f32.mrf.mxu0
        %v2384 = vadd.f32 0.0, %v2383
        %v2385 = vpop.f32.mrf.mxu0
        %v2386 = vadd.f32 0.0, %v2385
        %2387 = vmatmul.bf16.gmra.mxu0 %v2331
        %v2388 = vpop.f32.mrf.mxu0
        %v2389 = vadd.f32 0.0, %v2388
        %v2390 = vpop.f32.mrf.mxu0
        %v2391 = vadd.f32 0.0, %v2390
        %2392 = vmatmul.bf16.gmra.mxu0 %v2332
        %v2393 = vpop.f32.mrf.mxu0
        %v2394 = vadd.f32 0.0, %v2393
        %v2395 = vpop.f32.mrf.mxu0
        %v2396 = vadd.f32 0.0, %v2395
        %2397 = vmatmul.bf16.gmra.mxu0 %v2333
        %v2398 = vpop.f32.mrf.mxu0
        %v2399 = vadd.f32 0.0, %v2398
        %v2400 = vpop.f32.mrf.mxu0
        %v2401 = vadd.f32 0.0, %v2400
        %2402 = vmatmul.bf16.gmra.mxu0 %v2334
        %v2403 = vpop.f32.mrf.mxu0
        %v2404 = vadd.f32 0.0, %v2403
        %v2405 = vpop.f32.mrf.mxu0
        %v2406 = vadd.f32 0.0, %v2405
        %2407 = vdwg.mxu0
        %v2408 = vpack.c.bf16 %v2369, %v2369
        %v2409 = vpack.c.bf16 %v2371, %v2371
        %v2410 = vpack.c.bf16 %v2374, %v2374
        %v2411 = vpack.c.bf16 %v2376, %v2376
        %v2412 = vpack.c.bf16 %v2379, %v2379
        %v2413 = vpack.c.bf16 %v2381, %v2381
        %v2414 = vpack.c.bf16 %v2384, %v2384
        %v2415 = vpack.c.bf16 %v2386, %v2386
        %v2416 = vpack.c.bf16 %v2389, %v2389
        %v2417 = vpack.c.bf16 %v2391, %v2391
        %v2418 = vpack.c.bf16 %v2394, %v2394
        %v2419 = vpack.c.bf16 %v2396, %v2396
        %v2420 = vpack.c.bf16 %v2399, %v2399
        %v2421 = vpack.c.bf16 %v2401, %v2401
        %v2422 = vpack.c.bf16 %v2404, %v2404
        %v2423 = vpack.c.bf16 %v2406, %v2406
        %2424 = vrot.lane.b32.xlu0 %v1611, 64
        %v2425 = vpop.permute.xlu0 %2424
        %2426 = vrot.lane.b32.xlu0 %v1612, 64
        %v2427 = vpop.permute.xlu0 %2426
        %2428 = vrot.lane.b32.xlu0 %v1613, 64
        %v2429 = vpop.permute.xlu0 %2428
        %2430 = vrot.lane.b32.xlu0 %v1614, 64
        %v2431 = vpop.permute.xlu0 %2430
        %2432 = vrot.lane.b32.xlu0 %v1615, 64
        %v2433 = vpop.permute.xlu0 %2432
        %2434 = vrot.lane.b32.xlu0 %v1616, 64
        %v2435 = vpop.permute.xlu0 %2434
        %2436 = vrot.lane.b32.xlu0 %v1617, 64
        %v2437 = vpop.permute.xlu0 %2436
        %2438 = vrot.lane.b32.xlu0 %v1618, 64
        %v2439 = vpop.permute.xlu0 %2438
        %2440 = vrot.lane.b32.xlu0 %v1651, 64
        %v2441 = vpop.permute.xlu0 %2440
        %2442 = vrot.lane.b32.xlu0 %v1652, 64
        %v2443 = vpop.permute.xlu0 %2442
        %2444 = vrot.lane.b32.xlu0 %v1653, 64
        %v2445 = vpop.permute.xlu0 %2444
        %2446 = vrot.lane.b32.xlu0 %v1654, 64
        %v2447 = vpop.permute.xlu0 %2446
        %2448 = vrot.lane.b32.xlu0 %v1655, 64
        %v2449 = vpop.permute.xlu0 %2448
        %2450 = vrot.lane.b32.xlu0 %v1656, 64
        %v2451 = vpop.permute.xlu0 %2450
        %2452 = vrot.lane.b32.xlu0 %v1657, 64
        %v2453 = vpop.permute.xlu0 %2452
        %2454 = vrot.lane.b32.xlu0 %v1658, 64
        %v2455 = vpop.permute.xlu0 %2454
        %v2457 = vsel %vm1659, %v2425, 0
        %v2460 = vsel %vm1659, %v2427, 0
        %v2463 = vsel %vm1659, %v2429, 0
        %v2466 = vsel %vm1659, %v2431, 0
        %v2469 = vsel %vm1659, %v2433, 0
        %v2472 = vsel %vm1659, %v2435, 0
        %v2475 = vsel %vm1659, %v2437, 0
        %v2478 = vsel %vm1659, %v2439, 0
        %v2481 = vsel %vm1659, %v2441, 0
        %v2484 = vsel %vm1659, %v2443, 0
        %v2487 = vsel %vm1659, %v2445, 0
        %v2490 = vsel %vm1659, %v2447, 0
        %v2493 = vsel %vm1659, %v2449, 0
        %v2496 = vsel %vm1659, %v2451, 0
        %v2499 = vsel %vm1659, %v2453, 0
        %v2502 = vsel %vm1659, %v2455, 0
        %2504 = vmatpush.bf16.xpose.msra.mxu0 %v2502
        %2505 = vmatpush.bf16.xpose.msra.mxu0 %v2499
        %2506 = vmatpush.bf16.xpose.msra.mxu0 %v2496
        %2507 = vmatpush.bf16.xpose.msra.mxu0 %v2493
        %2508 = vmatpush.bf16.xpose.msra.mxu0 %v2490
        %2509 = vmatpush.bf16.xpose.msra.mxu0 %v2487
        %2510 = vmatpush.bf16.xpose.msra.mxu0 %v2484
        %2511 = vmatpush.bf16.xpose.msra.mxu0 %v2481
        %2512 = vmatmul.bf16.gmra.mxu0 %v2457
        %v2513 = vpop.f32.mrf.mxu0
        %v2514 = vadd.f32 0.0, %v2513
        %v2515 = vpop.f32.mrf.mxu0
        %v2516 = vadd.f32 0.0, %v2515
        %2517 = vmatmul.bf16.gmra.mxu0 %v2460
        %v2518 = vpop.f32.mrf.mxu0
        %v2519 = vadd.f32 0.0, %v2518
        %v2520 = vpop.f32.mrf.mxu0
        %v2521 = vadd.f32 0.0, %v2520
        %2522 = vmatmul.bf16.gmra.mxu0 %v2463
        %v2523 = vpop.f32.mrf.mxu0
        %v2524 = vadd.f32 0.0, %v2523
        %v2525 = vpop.f32.mrf.mxu0
        %v2526 = vadd.f32 0.0, %v2525
        %2527 = vmatmul.bf16.gmra.mxu0 %v2466
        %v2528 = vpop.f32.mrf.mxu0
        %v2529 = vadd.f32 0.0, %v2528
        %v2530 = vpop.f32.mrf.mxu0
        %v2531 = vadd.f32 0.0, %v2530
        %2532 = vmatmul.bf16.gmra.mxu0 %v2469
        %v2533 = vpop.f32.mrf.mxu0
        %v2534 = vadd.f32 0.0, %v2533
        %v2535 = vpop.f32.mrf.mxu0
        %v2536 = vadd.f32 0.0, %v2535
        %2537 = vmatmul.bf16.gmra.mxu0 %v2472
        %v2538 = vpop.f32.mrf.mxu0
        %v2539 = vadd.f32 0.0, %v2538
        %v2540 = vpop.f32.mrf.mxu0
        %v2541 = vadd.f32 0.0, %v2540
        %2542 = vmatmul.bf16.gmra.mxu0 %v2475
        %v2543 = vpop.f32.mrf.mxu0
        %v2544 = vadd.f32 0.0, %v2543
        %v2545 = vpop.f32.mrf.mxu0
        %v2546 = vadd.f32 0.0, %v2545
        %2547 = vmatmul.bf16.gmra.mxu0 %v2478
        %v2548 = vpop.f32.mrf.mxu0
        %v2549 = vadd.f32 0.0, %v2548
        %v2550 = vpop.f32.mrf.mxu0
        %v2551 = vadd.f32 0.0, %v2550
        %2552 = vdwg.mxu0
        %v2553 = vsel %vm1563, %v2514, 1e-09
        %v2554 = vsel %vm1564, %v2516, 1e-09
        %v2555 = vsel %vm1565, %v2519, 1e-09
        %v2556 = vsel %vm1566, %v2521, 1e-09
        %v2557 = vsel %vm1567, %v2524, 1e-09
        %v2558 = vsel %vm1568, %v2526, 1e-09
        %v2559 = vsel %vm1569, %v2529, 1e-09
        %v2560 = vsel %vm1570, %v2531, 1e-09
        %v2561 = vsel %vm1571, %v2534, 1e-09
        %v2562 = vsel %vm1572, %v2536, 1e-09
        %v2563 = vsel %vm1573, %v2539, 1e-09
        %v2564 = vsel %vm1574, %v2541, 1e-09
        %v2565 = vsel %vm1575, %v2544, 1e-09
        %v2566 = vsel %vm1576, %v2546, 1e-09
        %v2567 = vsel %vm1577, %v2549, 1e-09
        %v2568 = vsel %vm1578, %v2551, 1e-09
        %2569 = vmax.xlane.f32.xlu0 %v2553
        %v2570 = vpop.xlane.xlu0 %2569
        %2571 = vmax.xlane.f32.xlu0 %v2554
        %v2572 = vpop.xlane.xlu0 %2571
        %2573 = vmax.xlane.f32.xlu0 %v2555
        %v2574 = vpop.xlane.xlu0 %2573
        %2575 = vmax.xlane.f32.xlu0 %v2556
        %v2576 = vpop.xlane.xlu0 %2575
        %2577 = vmax.xlane.f32.xlu0 %v2557
        %v2578 = vpop.xlane.xlu0 %2577
        %2579 = vmax.xlane.f32.xlu0 %v2558
        %v2580 = vpop.xlane.xlu0 %2579
        %2581 = vmax.xlane.f32.xlu0 %v2559
        %v2582 = vpop.xlane.xlu0 %2581
        %2583 = vmax.xlane.f32.xlu0 %v2560
        %v2584 = vpop.xlane.xlu0 %2583
        %2585 = vmax.xlane.f32.xlu0 %v2561
        %v2586 = vpop.xlane.xlu0 %2585
        %2587 = vmax.xlane.f32.xlu0 %v2562
        %v2588 = vpop.xlane.xlu0 %2587
        %2589 = vmax.xlane.f32.xlu0 %v2563
        %v2590 = vpop.xlane.xlu0 %2589
        %2591 = vmax.xlane.f32.xlu0 %v2564
        %v2592 = vpop.xlane.xlu0 %2591
        %2593 = vmax.xlane.f32.xlu0 %v2565
        %v2594 = vpop.xlane.xlu0 %2593
        %2595 = vmax.xlane.f32.xlu0 %v2566
        %v2596 = vpop.xlane.xlu0 %2595
        %2597 = vmax.xlane.f32.xlu0 %v2567
        %v2598 = vpop.xlane.xlu0 %2597
        %2599 = vmax.xlane.f32.xlu0 %v2568
        %v2600 = vpop.xlane.xlu0 %2599
        %v2601 = vsub.f32 %v2553, %v2570
        %v2602 = vsub.f32 %v2554, %v2572
        %v2603 = vsub.f32 %v2555, %v2574
        %v2604 = vsub.f32 %v2556, %v2576
        %v2605 = vsub.f32 %v2557, %v2578
        %v2606 = vsub.f32 %v2558, %v2580
        %v2607 = vsub.f32 %v2559, %v2582
        %v2608 = vsub.f32 %v2560, %v2584
        %v2609 = vsub.f32 %v2561, %v2586
        %v2610 = vsub.f32 %v2562, %v2588
        %v2611 = vsub.f32 %v2563, %v2590
        %v2612 = vsub.f32 %v2564, %v2592
        %v2613 = vsub.f32 %v2565, %v2594
        %v2614 = vsub.f32 %v2566, %v2596
        %v2615 = vsub.f32 %v2567, %v2598
        %v2616 = vsub.f32 %v2568, %v2600
        %v2617 = vmul.f32 %v2601, 1.442695
        %v2618 = vpow.pop %v2617
        %v2619 = vmul.f32 %v2602, 1.442695
        %v2620 = vpow.pop %v2619
        %v2621 = vmul.f32 %v2603, 1.442695
        %v2622 = vpow.pop %v2621
        %v2623 = vmul.f32 %v2604, 1.442695
        %v2624 = vpow.pop %v2623
        %v2625 = vmul.f32 %v2605, 1.442695
        %v2626 = vpow.pop %v2625
        %v2627 = vmul.f32 %v2606, 1.442695
        %v2628 = vpow.pop %v2627
        %v2629 = vmul.f32 %v2607, 1.442695
        %v2630 = vpow.pop %v2629
        %v2631 = vmul.f32 %v2608, 1.442695
        %v2632 = vpow.pop %v2631
        %v2633 = vmul.f32 %v2609, 1.442695
        %v2634 = vpow.pop %v2633
        %v2635 = vmul.f32 %v2610, 1.442695
        %v2636 = vpow.pop %v2635
        %v2637 = vmul.f32 %v2611, 1.442695
        %v2638 = vpow.pop %v2637
        %v2639 = vmul.f32 %v2612, 1.442695
        %v2640 = vpow.pop %v2639
        %v2641 = vmul.f32 %v2613, 1.442695
        %v2642 = vpow.pop %v2641
        %v2643 = vmul.f32 %v2614, 1.442695
        %v2644 = vpow.pop %v2643
        %v2645 = vmul.f32 %v2615, 1.442695
        %v2646 = vpow.pop %v2645
        %v2647 = vmul.f32 %v2616, 1.442695
        %v2648 = vpow.pop %v2647
        %2649 = vadd.xlane.f32.xlu0 %v2618
        %v2650 = vpop.xlane.xlu0 %2649
        %2651 = vadd.xlane.f32.xlu0 %v2620
        %v2652 = vpop.xlane.xlu0 %2651
        %2653 = vadd.xlane.f32.xlu0 %v2622
        %v2654 = vpop.xlane.xlu0 %2653
        %2655 = vadd.xlane.f32.xlu0 %v2624
        %v2656 = vpop.xlane.xlu0 %2655
        %2657 = vadd.xlane.f32.xlu0 %v2626
        %v2658 = vpop.xlane.xlu0 %2657
        %2659 = vadd.xlane.f32.xlu0 %v2628
        %v2660 = vpop.xlane.xlu0 %2659
        %2661 = vadd.xlane.f32.xlu0 %v2630
        %v2662 = vpop.xlane.xlu0 %2661
        %2663 = vadd.xlane.f32.xlu0 %v2632
        %v2664 = vpop.xlane.xlu0 %2663
        %2665 = vadd.xlane.f32.xlu0 %v2634
        %v2666 = vpop.xlane.xlu0 %2665
        %2667 = vadd.xlane.f32.xlu0 %v2636
        %v2668 = vpop.xlane.xlu0 %2667
        %2669 = vadd.xlane.f32.xlu0 %v2638
        %v2670 = vpop.xlane.xlu0 %2669
        %2671 = vadd.xlane.f32.xlu0 %v2640
        %v2672 = vpop.xlane.xlu0 %2671
        %2673 = vadd.xlane.f32.xlu0 %v2642
        %v2674 = vpop.xlane.xlu0 %2673
        %2675 = vadd.xlane.f32.xlu0 %v2644
        %v2676 = vpop.xlane.xlu0 %2675
        %2677 = vadd.xlane.f32.xlu0 %v2646
        %v2678 = vpop.xlane.xlu0 %2677
        %2679 = vadd.xlane.f32.xlu0 %v2648
        %v2680 = vpop.xlane.xlu0 %2679
        %v2681 = vrcp.pop %v2650
        %v2682 = vrcp.pop %v2652
        %v2683 = vrcp.pop %v2654
        %v2684 = vrcp.pop %v2656
        %v2685 = vrcp.pop %v2658
        %v2686 = vrcp.pop %v2660
        %v2687 = vrcp.pop %v2662
        %v2688 = vrcp.pop %v2664
        %v2689 = vrcp.pop %v2666
        %v2690 = vrcp.pop %v2668
        %v2691 = vrcp.pop %v2670
        %v2692 = vrcp.pop %v2672
        %v2693 = vrcp.pop %v2674
        %v2694 = vrcp.pop %v2676
        %v2695 = vrcp.pop %v2678
        %v2696 = vrcp.pop %v2680
        %v2697 = vmul.f32 %v2618, %v2681
        %v2698 = vmul.f32 %v2620, %v2682
        %v2699 = vmul.f32 %v2622, %v2683
        %v2700 = vmul.f32 %v2624, %v2684
        %v2701 = vmul.f32 %v2626, %v2685
        %v2702 = vmul.f32 %v2628, %v2686
        %v2703 = vmul.f32 %v2630, %v2687
        %v2704 = vmul.f32 %v2632, %v2688
        %v2705 = vmul.f32 %v2634, %v2689
        %v2706 = vmul.f32 %v2636, %v2690
        %v2707 = vmul.f32 %v2638, %v2691
        %v2708 = vmul.f32 %v2640, %v2692
        %v2709 = vmul.f32 %v2642, %v2693
        %v2710 = vmul.f32 %v2644, %v2694
        %v2711 = vmul.f32 %v2646, %v2695
        %v2712 = vmul.f32 %v2648, %v2696
        %v2713 = vpack.c.bf16 %v2698, %v2697
        %v2714 = vpack.c.bf16 %v2700, %v2699
        %v2715 = vpack.c.bf16 %v2702, %v2701
        %v2716 = vpack.c.bf16 %v2704, %v2703
        %v2717 = vpack.c.bf16 %v2706, %v2705
        %v2718 = vpack.c.bf16 %v2708, %v2707
        %v2719 = vpack.c.bf16 %v2710, %v2709
        %v2720 = vpack.c.bf16 %v2712, %v2711
        %2721 = vrot.lane.b32.xlu0 %v1957, 64
        %v2722 = vpop.permute.xlu0 %2721
        %2723 = vrot.lane.b32.xlu0 %v1958, 64
        %v2724 = vpop.permute.xlu0 %2723
        %2725 = vrot.lane.b32.xlu0 %v1959, 64
        %v2726 = vpop.permute.xlu0 %2725
        %2727 = vrot.lane.b32.xlu0 %v1960, 64
        %v2728 = vpop.permute.xlu0 %2727
        %2729 = vrot.lane.b32.xlu0 %v1961, 64
        %v2730 = vpop.permute.xlu0 %2729
        %2731 = vrot.lane.b32.xlu0 %v1962, 64
        %v2732 = vpop.permute.xlu0 %2731
        %2733 = vrot.lane.b32.xlu0 %v1963, 64
        %v2734 = vpop.permute.xlu0 %2733
        %2735 = vrot.lane.b32.xlu0 %v1964, 64
        %v2736 = vpop.permute.xlu0 %2735
        %2745 = vmatpush.bf16.msra.mxu0 %v2736
        %2746 = vmatpush.bf16.msra.mxu0 %v2734
        %2747 = vmatpush.bf16.msra.mxu0 %v2732
        %2748 = vmatpush.bf16.msra.mxu0 %v2730
        %2749 = vmatpush.bf16.msra.mxu0 %v2728
        %2750 = vmatpush.bf16.msra.mxu0 %v2726
        %2751 = vmatpush.bf16.msra.mxu0 %v2724
        %2752 = vmatpush.bf16.msra.mxu0 %v2722
        %2753 = vmatmul.bf16.gmra.mxu0 %v2713
        %v2754 = vpop.f32.mrf.mxu0
        %v2755 = vadd.f32 0.0, %v2754
        %v2756 = vpop.f32.mrf.mxu0
        %v2757 = vadd.f32 0.0, %v2756
        %2758 = vmatmul.bf16.gmra.mxu0 %v2714
        %v2759 = vpop.f32.mrf.mxu0
        %v2760 = vadd.f32 0.0, %v2759
        %v2761 = vpop.f32.mrf.mxu0
        %v2762 = vadd.f32 0.0, %v2761
        %2763 = vmatmul.bf16.gmra.mxu0 %v2715
        %v2764 = vpop.f32.mrf.mxu0
        %v2765 = vadd.f32 0.0, %v2764
        %v2766 = vpop.f32.mrf.mxu0
        %v2767 = vadd.f32 0.0, %v2766
        %2768 = vmatmul.bf16.gmra.mxu0 %v2716
        %v2769 = vpop.f32.mrf.mxu0
        %v2770 = vadd.f32 0.0, %v2769
        %v2771 = vpop.f32.mrf.mxu0
        %v2772 = vadd.f32 0.0, %v2771
        %2773 = vmatmul.bf16.gmra.mxu0 %v2717
        %v2774 = vpop.f32.mrf.mxu0
        %v2775 = vadd.f32 0.0, %v2774
        %v2776 = vpop.f32.mrf.mxu0
        %v2777 = vadd.f32 0.0, %v2776
        %2778 = vmatmul.bf16.gmra.mxu0 %v2718
        %v2779 = vpop.f32.mrf.mxu0
        %v2780 = vadd.f32 0.0, %v2779
        %v2781 = vpop.f32.mrf.mxu0
        %v2782 = vadd.f32 0.0, %v2781
        %2783 = vmatmul.bf16.gmra.mxu0 %v2719
        %v2784 = vpop.f32.mrf.mxu0
        %v2785 = vadd.f32 0.0, %v2784
        %v2786 = vpop.f32.mrf.mxu0
        %v2787 = vadd.f32 0.0, %v2786
        %2788 = vmatmul.bf16.gmra.mxu0 %v2720
        %v2789 = vpop.f32.mrf.mxu0
        %v2790 = vadd.f32 0.0, %v2789
        %v2791 = vpop.f32.mrf.mxu0
        %v2792 = vadd.f32 0.0, %v2791
        %2793 = vdwg.mxu0
        %v2794 = vpack.c.bf16 %v2755, %v2755
        %v2795 = vpack.c.bf16 %v2757, %v2757
        %v2796 = vpack.c.bf16 %v2760, %v2760
        %v2797 = vpack.c.bf16 %v2762, %v2762
        %v2798 = vpack.c.bf16 %v2765, %v2765
        %v2799 = vpack.c.bf16 %v2767, %v2767
        %v2800 = vpack.c.bf16 %v2770, %v2770
        %v2801 = vpack.c.bf16 %v2772, %v2772
        %v2802 = vpack.c.bf16 %v2775, %v2775
        %v2803 = vpack.c.bf16 %v2777, %v2777
        %v2804 = vpack.c.bf16 %v2780, %v2780
        %v2805 = vpack.c.bf16 %v2782, %v2782
        %v2806 = vpack.c.bf16 %v2785, %v2785
        %v2807 = vpack.c.bf16 %v2787, %v2787
        %v2808 = vpack.c.bf16 %v2790, %v2790
        %v2809 = vpack.c.bf16 %v2792, %v2792
        %2810 = vrot.lane.b32.xlu0 %v1611, 32
        %v2811 = vpop.permute.xlu0 %2810
        %2812 = vrot.lane.b32.xlu0 %v1612, 32
        %v2813 = vpop.permute.xlu0 %2812
        %2814 = vrot.lane.b32.xlu0 %v1613, 32
        %v2815 = vpop.permute.xlu0 %2814
        %2816 = vrot.lane.b32.xlu0 %v1614, 32
        %v2817 = vpop.permute.xlu0 %2816
        %2818 = vrot.lane.b32.xlu0 %v1615, 32
        %v2819 = vpop.permute.xlu0 %2818
        %2820 = vrot.lane.b32.xlu0 %v1616, 32
        %v2821 = vpop.permute.xlu0 %2820
        %2822 = vrot.lane.b32.xlu0 %v1617, 32
        %v2823 = vpop.permute.xlu0 %2822
        %2824 = vrot.lane.b32.xlu0 %v1618, 32
        %v2825 = vpop.permute.xlu0 %2824
        %2826 = vrot.lane.b32.xlu0 %v1651, 32
        %v2827 = vpop.permute.xlu0 %2826
        %2828 = vrot.lane.b32.xlu0 %v1652, 32
        %v2829 = vpop.permute.xlu0 %2828
        %2830 = vrot.lane.b32.xlu0 %v1653, 32
        %v2831 = vpop.permute.xlu0 %2830
        %2832 = vrot.lane.b32.xlu0 %v1654, 32
        %v2833 = vpop.permute.xlu0 %2832
        %2834 = vrot.lane.b32.xlu0 %v1655, 32
        %v2835 = vpop.permute.xlu0 %2834
        %2836 = vrot.lane.b32.xlu0 %v1656, 32
        %v2837 = vpop.permute.xlu0 %2836
        %2838 = vrot.lane.b32.xlu0 %v1657, 32
        %v2839 = vpop.permute.xlu0 %2838
        %2840 = vrot.lane.b32.xlu0 %v1658, 32
        %v2841 = vpop.permute.xlu0 %2840
        %v2843 = vsel %vm1659, %v2811, 0
        %v2846 = vsel %vm1659, %v2813, 0
        %v2849 = vsel %vm1659, %v2815, 0
        %v2852 = vsel %vm1659, %v2817, 0
        %v2855 = vsel %vm1659, %v2819, 0
        %v2858 = vsel %vm1659, %v2821, 0
        %v2861 = vsel %vm1659, %v2823, 0
        %v2864 = vsel %vm1659, %v2825, 0
        %v2867 = vsel %vm1659, %v2827, 0
        %v2870 = vsel %vm1659, %v2829, 0
        %v2873 = vsel %vm1659, %v2831, 0
        %v2876 = vsel %vm1659, %v2833, 0
        %v2879 = vsel %vm1659, %v2835, 0
        %v2882 = vsel %vm1659, %v2837, 0
        %v2885 = vsel %vm1659, %v2839, 0
        %v2888 = vsel %vm1659, %v2841, 0
        %2890 = vmatpush.bf16.xpose.msra.mxu0 %v2888
        %2891 = vmatpush.bf16.xpose.msra.mxu0 %v2885
        %2892 = vmatpush.bf16.xpose.msra.mxu0 %v2882
        %2893 = vmatpush.bf16.xpose.msra.mxu0 %v2879
        %2894 = vmatpush.bf16.xpose.msra.mxu0 %v2876
        %2895 = vmatpush.bf16.xpose.msra.mxu0 %v2873
        %2896 = vmatpush.bf16.xpose.msra.mxu0 %v2870
        %2897 = vmatpush.bf16.xpose.msra.mxu0 %v2867
        %2898 = vmatmul.bf16.gmra.mxu0 %v2843
        %v2899 = vpop.f32.mrf.mxu0
        %v2900 = vadd.f32 0.0, %v2899
        %v2901 = vpop.f32.mrf.mxu0
        %v2902 = vadd.f32 0.0, %v2901
        %2903 = vmatmul.bf16.gmra.mxu0 %v2846
        %v2904 = vpop.f32.mrf.mxu0
        %v2905 = vadd.f32 0.0, %v2904
        %v2906 = vpop.f32.mrf.mxu0
        %v2907 = vadd.f32 0.0, %v2906
        %2908 = vmatmul.bf16.gmra.mxu0 %v2849
        %v2909 = vpop.f32.mrf.mxu0
        %v2910 = vadd.f32 0.0, %v2909
        %v2911 = vpop.f32.mrf.mxu0
        %v2912 = vadd.f32 0.0, %v2911
        %2913 = vmatmul.bf16.gmra.mxu0 %v2852
        %v2914 = vpop.f32.mrf.mxu0
        %v2915 = vadd.f32 0.0, %v2914
        %v2916 = vpop.f32.mrf.mxu0
        %v2917 = vadd.f32 0.0, %v2916
        %2918 = vmatmul.bf16.gmra.mxu0 %v2855
        %v2919 = vpop.f32.mrf.mxu0
        %v2920 = vadd.f32 0.0, %v2919
        %v2921 = vpop.f32.mrf.mxu0
        %v2922 = vadd.f32 0.0, %v2921
        %2923 = vmatmul.bf16.gmra.mxu0 %v2858
        %v2924 = vpop.f32.mrf.mxu0
        %v2925 = vadd.f32 0.0, %v2924
        %v2926 = vpop.f32.mrf.mxu0
        %v2927 = vadd.f32 0.0, %v2926
        %2928 = vmatmul.bf16.gmra.mxu0 %v2861
        %v2929 = vpop.f32.mrf.mxu0
        %v2930 = vadd.f32 0.0, %v2929
        %v2931 = vpop.f32.mrf.mxu0
        %v2932 = vadd.f32 0.0, %v2931
        %2933 = vmatmul.bf16.gmra.mxu0 %v2864
        %v2934 = vpop.f32.mrf.mxu0
        %v2935 = vadd.f32 0.0, %v2934
        %v2936 = vpop.f32.mrf.mxu0
        %v2937 = vadd.f32 0.0, %v2936
        %2938 = vdwg.mxu0
        %v2939 = vsel %vm1563, %v2900, 1e-09
        %v2940 = vsel %vm1564, %v2902, 1e-09
        %v2941 = vsel %vm1565, %v2905, 1e-09
        %v2942 = vsel %vm1566, %v2907, 1e-09
        %v2943 = vsel %vm1567, %v2910, 1e-09
        %v2944 = vsel %vm1568, %v2912, 1e-09
        %v2945 = vsel %vm1569, %v2915, 1e-09
        %v2946 = vsel %vm1570, %v2917, 1e-09
        %v2947 = vsel %vm1571, %v2920, 1e-09
        %v2948 = vsel %vm1572, %v2922, 1e-09
        %v2949 = vsel %vm1573, %v2925, 1e-09
        %v2950 = vsel %vm1574, %v2927, 1e-09
        %v2951 = vsel %vm1575, %v2930, 1e-09
        %v2952 = vsel %vm1576, %v2932, 1e-09
        %v2953 = vsel %vm1577, %v2935, 1e-09
        %v2954 = vsel %vm1578, %v2937, 1e-09
        %2955 = vmax.xlane.f32.xlu0 %v2939
        %v2956 = vpop.xlane.xlu0 %2955
        %2957 = vmax.xlane.f32.xlu0 %v2940
        %v2958 = vpop.xlane.xlu0 %2957
        %2959 = vmax.xlane.f32.xlu0 %v2941
        %v2960 = vpop.xlane.xlu0 %2959
        %2961 = vmax.xlane.f32.xlu0 %v2942
        %v2962 = vpop.xlane.xlu0 %2961
        %2963 = vmax.xlane.f32.xlu0 %v2943
        %v2964 = vpop.xlane.xlu0 %2963
        %2965 = vmax.xlane.f32.xlu0 %v2944
        %v2966 = vpop.xlane.xlu0 %2965
        %2967 = vmax.xlane.f32.xlu0 %v2945
        %v2968 = vpop.xlane.xlu0 %2967
        %2969 = vmax.xlane.f32.xlu0 %v2946
        %v2970 = vpop.xlane.xlu0 %2969
        %2971 = vmax.xlane.f32.xlu0 %v2947
        %v2972 = vpop.xlane.xlu0 %2971
        %2973 = vmax.xlane.f32.xlu0 %v2948
        %v2974 = vpop.xlane.xlu0 %2973
        %2975 = vmax.xlane.f32.xlu0 %v2949
        %v2976 = vpop.xlane.xlu0 %2975
        %2977 = vmax.xlane.f32.xlu0 %v2950
        %v2978 = vpop.xlane.xlu0 %2977
        %2979 = vmax.xlane.f32.xlu0 %v2951
        %v2980 = vpop.xlane.xlu0 %2979
        %2981 = vmax.xlane.f32.xlu0 %v2952
        %v2982 = vpop.xlane.xlu0 %2981
        %2983 = vmax.xlane.f32.xlu0 %v2953
        %v2984 = vpop.xlane.xlu0 %2983
        %2985 = vmax.xlane.f32.xlu0 %v2954
        %v2986 = vpop.xlane.xlu0 %2985
        %v2987 = vsub.f32 %v2939, %v2956
        %v2988 = vsub.f32 %v2940, %v2958
        %v2989 = vsub.f32 %v2941, %v2960
        %v2990 = vsub.f32 %v2942, %v2962
        %v2991 = vsub.f32 %v2943, %v2964
        %v2992 = vsub.f32 %v2944, %v2966
        %v2993 = vsub.f32 %v2945, %v2968
        %v2994 = vsub.f32 %v2946, %v2970
        %v2995 = vsub.f32 %v2947, %v2972
        %v2996 = vsub.f32 %v2948, %v2974
        %v2997 = vsub.f32 %v2949, %v2976
        %v2998 = vsub.f32 %v2950, %v2978
        %v2999 = vsub.f32 %v2951, %v2980
        %v3000 = vsub.f32 %v2952, %v2982
        %v3001 = vsub.f32 %v2953, %v2984
        %v3002 = vsub.f32 %v2954, %v2986
        %v3003 = vmul.f32 %v2987, 1.442695
        %v3004 = vpow.pop %v3003
        %v3005 = vmul.f32 %v2988, 1.442695
        %v3006 = vpow.pop %v3005
        %v3007 = vmul.f32 %v2989, 1.442695
        %v3008 = vpow.pop %v3007
        %v3009 = vmul.f32 %v2990, 1.442695
        %v3010 = vpow.pop %v3009
        %v3011 = vmul.f32 %v2991, 1.442695
        %v3012 = vpow.pop %v3011
        %v3013 = vmul.f32 %v2992, 1.442695
        %v3014 = vpow.pop %v3013
        %v3015 = vmul.f32 %v2993, 1.442695
        %v3016 = vpow.pop %v3015
        %v3017 = vmul.f32 %v2994, 1.442695
        %v3018 = vpow.pop %v3017
        %v3019 = vmul.f32 %v2995, 1.442695
        %v3020 = vpow.pop %v3019
        %v3021 = vmul.f32 %v2996, 1.442695
        %v3022 = vpow.pop %v3021
        %v3023 = vmul.f32 %v2997, 1.442695
        %v3024 = vpow.pop %v3023
        %v3025 = vmul.f32 %v2998, 1.442695
        %v3026 = vpow.pop %v3025
        %v3027 = vmul.f32 %v2999, 1.442695
        %v3028 = vpow.pop %v3027
        %v3029 = vmul.f32 %v3000, 1.442695
        %v3030 = vpow.pop %v3029
        %v3031 = vmul.f32 %v3001, 1.442695
        %v3032 = vpow.pop %v3031
        %v3033 = vmul.f32 %v3002, 1.442695
        %v3034 = vpow.pop %v3033
        %3035 = vadd.xlane.f32.xlu0 %v3004
        %v3036 = vpop.xlane.xlu0 %3035
        %3037 = vadd.xlane.f32.xlu0 %v3006
        %v3038 = vpop.xlane.xlu0 %3037
        %3039 = vadd.xlane.f32.xlu0 %v3008
        %v3040 = vpop.xlane.xlu0 %3039
        %3041 = vadd.xlane.f32.xlu0 %v3010
        %v3042 = vpop.xlane.xlu0 %3041
        %3043 = vadd.xlane.f32.xlu0 %v3012
        %v3044 = vpop.xlane.xlu0 %3043
        %3045 = vadd.xlane.f32.xlu0 %v3014
        %v3046 = vpop.xlane.xlu0 %3045
        %3047 = vadd.xlane.f32.xlu0 %v3016
        %v3048 = vpop.xlane.xlu0 %3047
        %3049 = vadd.xlane.f32.xlu0 %v3018
        %v3050 = vpop.xlane.xlu0 %3049
        %3051 = vadd.xlane.f32.xlu0 %v3020
        %v3052 = vpop.xlane.xlu0 %3051
        %3053 = vadd.xlane.f32.xlu0 %v3022
        %v3054 = vpop.xlane.xlu0 %3053
        %3055 = vadd.xlane.f32.xlu0 %v3024
        %v3056 = vpop.xlane.xlu0 %3055
        %3057 = vadd.xlane.f32.xlu0 %v3026
        %v3058 = vpop.xlane.xlu0 %3057
        %3059 = vadd.xlane.f32.xlu0 %v3028
        %v3060 = vpop.xlane.xlu0 %3059
        %3061 = vadd.xlane.f32.xlu0 %v3030
        %v3062 = vpop.xlane.xlu0 %3061
        %3063 = vadd.xlane.f32.xlu0 %v3032
        %v3064 = vpop.xlane.xlu0 %3063
        %3065 = vadd.xlane.f32.xlu0 %v3034
        %v3066 = vpop.xlane.xlu0 %3065
        %v3067 = vrcp.pop %v3036
        %v3068 = vrcp.pop %v3038
        %v3069 = vrcp.pop %v3040
        %v3070 = vrcp.pop %v3042
        %v3071 = vrcp.pop %v3044
        %v3072 = vrcp.pop %v3046
        %v3073 = vrcp.pop %v3048
        %v3074 = vrcp.pop %v3050
        %v3075 = vrcp.pop %v3052
        %v3076 = vrcp.pop %v3054
        %v3077 = vrcp.pop %v3056
        %v3078 = vrcp.pop %v3058
        %v3079 = vrcp.pop %v3060
        %v3080 = vrcp.pop %v3062
        %v3081 = vrcp.pop %v3064
        %v3082 = vrcp.pop %v3066
        %v3083 = vmul.f32 %v3004, %v3067
        %v3084 = vmul.f32 %v3006, %v3068
        %v3085 = vmul.f32 %v3008, %v3069
        %v3086 = vmul.f32 %v3010, %v3070
        %v3087 = vmul.f32 %v3012, %v3071
        %v3088 = vmul.f32 %v3014, %v3072
        %v3089 = vmul.f32 %v3016, %v3073
        %v3090 = vmul.f32 %v3018, %v3074
        %v3091 = vmul.f32 %v3020, %v3075
        %v3092 = vmul.f32 %v3022, %v3076
        %v3093 = vmul.f32 %v3024, %v3077
        %v3094 = vmul.f32 %v3026, %v3078
        %v3095 = vmul.f32 %v3028, %v3079
        %v3096 = vmul.f32 %v3030, %v3080
        %v3097 = vmul.f32 %v3032, %v3081
        %v3098 = vmul.f32 %v3034, %v3082
        %v3099 = vpack.c.bf16 %v3084, %v3083
        %v3100 = vpack.c.bf16 %v3086, %v3085
        %v3101 = vpack.c.bf16 %v3088, %v3087
        %v3102 = vpack.c.bf16 %v3090, %v3089
        %v3103 = vpack.c.bf16 %v3092, %v3091
        %v3104 = vpack.c.bf16 %v3094, %v3093
        %v3105 = vpack.c.bf16 %v3096, %v3095
        %v3106 = vpack.c.bf16 %v3098, %v3097
        %3107 = vrot.lane.b32.xlu0 %v1957, 32
        %v3108 = vpop.permute.xlu0 %3107
        %3109 = vrot.lane.b32.xlu0 %v1958, 32
        %v3110 = vpop.permute.xlu0 %3109
        %3111 = vrot.lane.b32.xlu0 %v1959, 32
        %v3112 = vpop.permute.xlu0 %3111
        %3113 = vrot.lane.b32.xlu0 %v1960, 32
        %v3114 = vpop.permute.xlu0 %3113
        %3115 = vrot.lane.b32.xlu0 %v1961, 32
        %v3116 = vpop.permute.xlu0 %3115
        %3117 = vrot.lane.b32.xlu0 %v1962, 32
        %v3118 = vpop.permute.xlu0 %3117
        %3119 = vrot.lane.b32.xlu0 %v1963, 32
        %v3120 = vpop.permute.xlu0 %3119
        %3121 = vrot.lane.b32.xlu0 %v1964, 32
        %v3122 = vpop.permute.xlu0 %3121
        %3131 = vmatpush.bf16.msra.mxu0 %v3122
        %3132 = vmatpush.bf16.msra.mxu0 %v3120
        %3133 = vmatpush.bf16.msra.mxu0 %v3118
        %3134 = vmatpush.bf16.msra.mxu0 %v3116
        %3135 = vmatpush.bf16.msra.mxu0 %v3114
        %3136 = vmatpush.bf16.msra.mxu0 %v3112
        %3137 = vmatpush.bf16.msra.mxu0 %v3110
        %3138 = vmatpush.bf16.msra.mxu0 %v3108
        %3139 = vmatmul.bf16.gmra.mxu0 %v3099
        %v3140 = vpop.f32.mrf.mxu0
        %v3141 = vadd.f32 0.0, %v3140
        %v3142 = vpop.f32.mrf.mxu0
        %v3143 = vadd.f32 0.0, %v3142
        %3144 = vmatmul.bf16.gmra.mxu0 %v3100
        %v3145 = vpop.f32.mrf.mxu0
        %v3146 = vadd.f32 0.0, %v3145
        %v3147 = vpop.f32.mrf.mxu0
        %v3148 = vadd.f32 0.0, %v3147
        %3149 = vmatmul.bf16.gmra.mxu0 %v3101
        %v3150 = vpop.f32.mrf.mxu0
        %v3151 = vadd.f32 0.0, %v3150
        %v3152 = vpop.f32.mrf.mxu0
        %v3153 = vadd.f32 0.0, %v3152
        %3154 = vmatmul.bf16.gmra.mxu0 %v3102
        %v3155 = vpop.f32.mrf.mxu0
        %v3156 = vadd.f32 0.0, %v3155
        %v3157 = vpop.f32.mrf.mxu0
        %v3158 = vadd.f32 0.0, %v3157
        %3159 = vmatmul.bf16.gmra.mxu0 %v3103
        %v3160 = vpop.f32.mrf.mxu0
        %v3161 = vadd.f32 0.0, %v3160
        %v3162 = vpop.f32.mrf.mxu0
        %v3163 = vadd.f32 0.0, %v3162
        %3164 = vmatmul.bf16.gmra.mxu0 %v3104
        %v3165 = vpop.f32.mrf.mxu0
        %v3166 = vadd.f32 0.0, %v3165
        %v3167 = vpop.f32.mrf.mxu0
        %v3168 = vadd.f32 0.0, %v3167
        %3169 = vmatmul.bf16.gmra.mxu0 %v3105
        %v3170 = vpop.f32.mrf.mxu0
        %v3171 = vadd.f32 0.0, %v3170
        %v3172 = vpop.f32.mrf.mxu0
        %v3173 = vadd.f32 0.0, %v3172
        %3174 = vmatmul.bf16.gmra.mxu0 %v3106
        %v3175 = vpop.f32.mrf.mxu0
        %v3176 = vadd.f32 0.0, %v3175
        %v3177 = vpop.f32.mrf.mxu0
        %v3178 = vadd.f32 0.0, %v3177
        %3179 = vdwg.mxu0
        %v3180 = vpack.c.bf16 %v3141, %v3141
        %v3181 = vpack.c.bf16 %v3143, %v3143
        %v3182 = vpack.c.bf16 %v3146, %v3146
        %v3183 = vpack.c.bf16 %v3148, %v3148
        %v3184 = vpack.c.bf16 %v3151, %v3151
        %v3185 = vpack.c.bf16 %v3153, %v3153
        %v3186 = vpack.c.bf16 %v3156, %v3156
        %v3187 = vpack.c.bf16 %v3158, %v3158
        %v3188 = vpack.c.bf16 %v3161, %v3161
        %v3189 = vpack.c.bf16 %v3163, %v3163
        %v3190 = vpack.c.bf16 %v3166, %v3166
        %v3191 = vpack.c.bf16 %v3168, %v3168
        %v3192 = vpack.c.bf16 %v3171, %v3171
        %v3193 = vpack.c.bf16 %v3173, %v3173
        %v3194 = vpack.c.bf16 %v3176, %v3176
        %v3195 = vpack.c.bf16 %v3178, %v3178
        %v3212 = vunpack.c.l.b16 %v2022
        %v3213 = vunpack.c.l.b16 %v2023
        %v3214 = vunpack.c.l.b16 %v2024
        %v3215 = vunpack.c.l.b16 %v2025
        %v3216 = vunpack.c.l.b16 %v2026
        %v3217 = vunpack.c.l.b16 %v2027
        %v3218 = vunpack.c.l.b16 %v2028
        %v3219 = vunpack.c.l.b16 %v2029
        %v3220 = vunpack.c.l.b16 %v2030
        %v3221 = vunpack.c.l.b16 %v2031
        %v3222 = vunpack.c.l.b16 %v2032
        %v3223 = vunpack.c.l.b16 %v2033
        %v3224 = vunpack.c.l.b16 %v2034
        %v3225 = vunpack.c.l.b16 %v2035
        %v3226 = vunpack.c.l.b16 %v2036
        %v3227 = vunpack.c.l.b16 %v2037
        %v3228 = vpack.c.b16 %v3213, %v3212
        %v3229 = vpack.c.b16 %v3215, %v3214
        %v3230 = vpack.c.b16 %v3217, %v3216
        %v3231 = vpack.c.b16 %v3219, %v3218
        %v3232 = vpack.c.b16 %v3221, %v3220
        %v3233 = vpack.c.b16 %v3223, %v3222
        %v3234 = vpack.c.b16 %v3225, %v3224
        %v3235 = vpack.c.b16 %v3227, %v3226
        %v3252 = vunpack.c.l.b16 %v2408
        %v3253 = vunpack.c.l.b16 %v2409
        %v3254 = vunpack.c.l.b16 %v2410
        %v3255 = vunpack.c.l.b16 %v2411
        %v3256 = vunpack.c.l.b16 %v2412
        %v3257 = vunpack.c.l.b16 %v2413
        %v3258 = vunpack.c.l.b16 %v2414
        %v3259 = vunpack.c.l.b16 %v2415
        %v3260 = vunpack.c.l.b16 %v2416
        %v3261 = vunpack.c.l.b16 %v2417
        %v3262 = vunpack.c.l.b16 %v2418
        %v3263 = vunpack.c.l.b16 %v2419
        %v3264 = vunpack.c.l.b16 %v2420
        %v3265 = vunpack.c.l.b16 %v2421
        %v3266 = vunpack.c.l.b16 %v2422
        %v3267 = vunpack.c.l.b16 %v2423
        %v3268 = vpack.c.b16 %v3253, %v3252
        %v3269 = vpack.c.b16 %v3255, %v3254
        %v3270 = vpack.c.b16 %v3257, %v3256
        %v3271 = vpack.c.b16 %v3259, %v3258
        %v3272 = vpack.c.b16 %v3261, %v3260
        %v3273 = vpack.c.b16 %v3263, %v3262
        %v3274 = vpack.c.b16 %v3265, %v3264
        %v3275 = vpack.c.b16 %v3267, %v3266
        %3276 = vrot.lane.b32.xlu0 %v3268, 32
        %v3277 = vpop.permute.xlu0 %3276
        %3278 = vrot.lane.b32.xlu0 %v3269, 32
        %v3279 = vpop.permute.xlu0 %3278
        %3280 = vrot.lane.b32.xlu0 %v3270, 32
        %v3281 = vpop.permute.xlu0 %3280
        %3282 = vrot.lane.b32.xlu0 %v3271, 32
        %v3283 = vpop.permute.xlu0 %3282
        %3284 = vrot.lane.b32.xlu0 %v3272, 32
        %v3285 = vpop.permute.xlu0 %3284
        %3286 = vrot.lane.b32.xlu0 %v3273, 32
        %v3287 = vpop.permute.xlu0 %3286
        %3288 = vrot.lane.b32.xlu0 %v3274, 32
        %v3289 = vpop.permute.xlu0 %3288
        %3290 = vrot.lane.b32.xlu0 %v3275, 32
        %v3291 = vpop.permute.xlu0 %3290
        %v3308 = vunpack.c.l.b16 %v2794
        %v3309 = vunpack.c.l.b16 %v2795
        %v3310 = vunpack.c.l.b16 %v2796
        %v3311 = vunpack.c.l.b16 %v2797
        %v3312 = vunpack.c.l.b16 %v2798
        %v3313 = vunpack.c.l.b16 %v2799
        %v3314 = vunpack.c.l.b16 %v2800
        %v3315 = vunpack.c.l.b16 %v2801
        %v3316 = vunpack.c.l.b16 %v2802
        %v3317 = vunpack.c.l.b16 %v2803
        %v3318 = vunpack.c.l.b16 %v2804
        %v3319 = vunpack.c.l.b16 %v2805
        %v3320 = vunpack.c.l.b16 %v2806
        %v3321 = vunpack.c.l.b16 %v2807
        %v3322 = vunpack.c.l.b16 %v2808
        %v3323 = vunpack.c.l.b16 %v2809
        %v3324 = vpack.c.b16 %v3309, %v3308
        %v3325 = vpack.c.b16 %v3311, %v3310
        %v3326 = vpack.c.b16 %v3313, %v3312
        %v3327 = vpack.c.b16 %v3315, %v3314
        %v3328 = vpack.c.b16 %v3317, %v3316
        %v3329 = vpack.c.b16 %v3319, %v3318
        %v3330 = vpack.c.b16 %v3321, %v3320
        %v3331 = vpack.c.b16 %v3323, %v3322
        %3332 = vrot.lane.b32.xlu0 %v3324, 64
        %v3333 = vpop.permute.xlu0 %3332
        %3334 = vrot.lane.b32.xlu0 %v3325, 64
        %v3335 = vpop.permute.xlu0 %3334
        %3336 = vrot.lane.b32.xlu0 %v3326, 64
        %v3337 = vpop.permute.xlu0 %3336
        %3338 = vrot.lane.b32.xlu0 %v3327, 64
        %v3339 = vpop.permute.xlu0 %3338
        %3340 = vrot.lane.b32.xlu0 %v3328, 64
        %v3341 = vpop.permute.xlu0 %3340
        %3342 = vrot.lane.b32.xlu0 %v3329, 64
        %v3343 = vpop.permute.xlu0 %3342
        %3344 = vrot.lane.b32.xlu0 %v3330, 64
        %v3345 = vpop.permute.xlu0 %3344
        %3346 = vrot.lane.b32.xlu0 %v3331, 64
        %v3347 = vpop.permute.xlu0 %3346
        %v3364 = vunpack.c.l.b16 %v3180
        %v3365 = vunpack.c.l.b16 %v3181
        %v3366 = vunpack.c.l.b16 %v3182
        %v3367 = vunpack.c.l.b16 %v3183
        %v3368 = vunpack.c.l.b16 %v3184
        %v3369 = vunpack.c.l.b16 %v3185
        %v3370 = vunpack.c.l.b16 %v3186
        %v3371 = vunpack.c.l.b16 %v3187
        %v3372 = vunpack.c.l.b16 %v3188
        %v3373 = vunpack.c.l.b16 %v3189
        %v3374 = vunpack.c.l.b16 %v3190
        %v3375 = vunpack.c.l.b16 %v3191
        %v3376 = vunpack.c.l.b16 %v3192
        %v3377 = vunpack.c.l.b16 %v3193
        %v3378 = vunpack.c.l.b16 %v3194
        %v3379 = vunpack.c.l.b16 %v3195
        %v3380 = vpack.c.b16 %v3365, %v3364
        %v3381 = vpack.c.b16 %v3367, %v3366
        %v3382 = vpack.c.b16 %v3369, %v3368
        %v3383 = vpack.c.b16 %v3371, %v3370
        %v3384 = vpack.c.b16 %v3373, %v3372
        %v3385 = vpack.c.b16 %v3375, %v3374
        %v3386 = vpack.c.b16 %v3377, %v3376
        %v3387 = vpack.c.b16 %v3379, %v3378
        %3388 = vrot.lane.b32.xlu0 %v3380, 96
        %v3389 = vpop.permute.xlu0 %3388
        %3390 = vrot.lane.b32.xlu0 %v3381, 96
        %v3391 = vpop.permute.xlu0 %3390
        %3392 = vrot.lane.b32.xlu0 %v3382, 96
        %v3393 = vpop.permute.xlu0 %3392
        %3394 = vrot.lane.b32.xlu0 %v3383, 96
        %v3395 = vpop.permute.xlu0 %3394
        %3396 = vrot.lane.b32.xlu0 %v3384, 96
        %v3397 = vpop.permute.xlu0 %3396
        %3398 = vrot.lane.b32.xlu0 %v3385, 96
        %v3399 = vpop.permute.xlu0 %3398
        %3400 = vrot.lane.b32.xlu0 %v3386, 96
        %v3401 = vpop.permute.xlu0 %3400
        %3402 = vrot.lane.b32.xlu0 %v3387, 96
        %v3403 = vpop.permute.xlu0 %3402
        %v3406 = vsel %vm1659, %v3228, %v3277
        %v3409 = vsel %vm1659, %v3229, %v3279
        %v3412 = vsel %vm1659, %v3230, %v3281
        %v3415 = vsel %vm1659, %v3231, %v3283
        %v3418 = vsel %vm1659, %v3232, %v3285
        %v3421 = vsel %vm1659, %v3233, %v3287
        %v3424 = vsel %vm1659, %v3234, %v3289
        %v3427 = vsel %vm1659, %v3235, %v3291
        %vm3428 = vcmask 523264
        %v3430 = vsel %vm3428, %v3406, %v3333
        %v3432 = vsel %vm3428, %v3409, %v3335
        %v3434 = vsel %vm3428, %v3412, %v3337
        %v3436 = vsel %vm3428, %v3415, %v3339
        %v3438 = vsel %vm3428, %v3418, %v3341
        %v3440 = vsel %vm3428, %v3421, %v3343
        %v3442 = vsel %vm3428, %v3424, %v3345
        %v3444 = vsel %vm3428, %v3427, %v3347
        %vm3445 = vcmask 785408
        %v3447 = vsel %vm3445, %v3430, %v3389
        %v3450 = vsel %vm3445, %v3432, %v3391
        %v3453 = vsel %vm3445, %v3434, %v3393
        %v3456 = vsel %vm3445, %v3436, %v3395
        %v3459 = vsel %vm3445, %v3438, %v3397
        %v3462 = vsel %vm3445, %v3440, %v3399
        %v3465 = vsel %vm3445, %v3442, %v3401
        %v3468 = vsel %vm3445, %v3444, %v3403
        %v3470 = vld [vmem:[%s607] sm:$0xf]
        %v3471 = vld [vmem:[%s607 + $0x4] sm:$0xf]
        %v3472 = vld [vmem:[%s607 + $0x8] sm:$0xf]
        %v3473 = vld [vmem:[%s607 + $0xc] sm:$0xf]
        %v3474 = vld [vmem:[%s607 + $0x10] sm:$0xf]
        %v3475 = vld [vmem:[%s607 + $0x14] sm:$0xf]
        %v3476 = vld [vmem:[%s607 + $0x18] sm:$0xf]
        %v3477 = vld [vmem:[%s607 + $0x1c] sm:$0xf]
        %v3478 = vld [vmem:[%s607 + $0x20] sm:$0xf]
        %v3479 = vld [vmem:[%s607 + $0x24] sm:$0xf]
        %v3480 = vld [vmem:[%s607 + $0x28] sm:$0xf]
        %v3481 = vld [vmem:[%s607 + $0x2c] sm:$0xf]
        %v3482 = vld [vmem:[%s607 + $0x30] sm:$0xf]
        %v3483 = vld [vmem:[%s607 + $0x34] sm:$0xf]
        %v3484 = vld [vmem:[%s607 + $0x38] sm:$0xf]
        %v3485 = vld [vmem:[%s607 + $0x3c] sm:$0xf]
        %v3502 = vunpack.c.l.b16 %v3470
        %v3503 = vunpack.c.l.b16 %v3471
        %v3504 = vunpack.c.l.b16 %v3472
        %v3505 = vunpack.c.l.b16 %v3473
        %v3506 = vunpack.c.l.b16 %v3474
        %v3507 = vunpack.c.l.b16 %v3475
        %v3508 = vunpack.c.l.b16 %v3476
        %v3509 = vunpack.c.l.b16 %v3477
        %v3510 = vunpack.c.l.b16 %v3478
        %v3511 = vunpack.c.l.b16 %v3479
        %v3512 = vunpack.c.l.b16 %v3480
        %v3513 = vunpack.c.l.b16 %v3481
        %v3514 = vunpack.c.l.b16 %v3482
        %v3515 = vunpack.c.l.b16 %v3483
        %v3516 = vunpack.c.l.b16 %v3484
        %v3517 = vunpack.c.l.b16 %v3485
        %v3518 = vpack.c.b16 %v3503, %v3502
        %v3519 = vpack.c.b16 %v3505, %v3504
        %v3520 = vpack.c.b16 %v3507, %v3506
        %v3521 = vpack.c.b16 %v3509, %v3508
        %v3522 = vpack.c.b16 %v3511, %v3510
        %v3523 = vpack.c.b16 %v3513, %v3512
        %v3524 = vpack.c.b16 %v3515, %v3514
        %v3525 = vpack.c.b16 %v3517, %v3516
        %3534 = vmatpush.bf16.msra.mxu0 %v3525
        %3535 = vmatpush.bf16.msra.mxu0 %v3524
        %3536 = vmatpush.bf16.msra.mxu0 %v3523
        %3537 = vmatpush.bf16.msra.mxu0 %v3522
        %3538 = vmatpush.bf16.msra.mxu0 %v3521
        %3539 = vmatpush.bf16.msra.mxu0 %v3520
        %3540 = vmatpush.bf16.msra.mxu0 %v3519
        %3541 = vmatpush.bf16.msra.mxu0 %v3518
        %3542 = vmatmul.bf16.gmra.mxu0 %v3447
        %v3543 = vpop.f32.mrf.mxu0
        %v3544 = vadd.f32 0.0, %v3543
        %v3545 = vpop.f32.mrf.mxu0
        %v3546 = vadd.f32 0.0, %v3545
        %3547 = vmatmul.bf16.gmra.mxu0 %v3450
        %v3548 = vpop.f32.mrf.mxu0
        %v3549 = vadd.f32 0.0, %v3548
        %v3550 = vpop.f32.mrf.mxu0
        %v3551 = vadd.f32 0.0, %v3550
        %3552 = vmatmul.bf16.gmra.mxu0 %v3453
        %v3553 = vpop.f32.mrf.mxu0
        %v3554 = vadd.f32 0.0, %v3553
        %v3555 = vpop.f32.mrf.mxu0
        %v3556 = vadd.f32 0.0, %v3555
        %3557 = vmatmul.bf16.gmra.mxu0 %v3456
        %v3558 = vpop.f32.mrf.mxu0
        %v3559 = vadd.f32 0.0, %v3558
        %v3560 = vpop.f32.mrf.mxu0
        %v3561 = vadd.f32 0.0, %v3560
        %3562 = vmatmul.bf16.gmra.mxu0 %v3459
        %v3563 = vpop.f32.mrf.mxu0
        %v3564 = vadd.f32 0.0, %v3563
        %v3565 = vpop.f32.mrf.mxu0
        %v3566 = vadd.f32 0.0, %v3565
        %3567 = vmatmul.bf16.gmra.mxu0 %v3462
        %v3568 = vpop.f32.mrf.mxu0
        %v3569 = vadd.f32 0.0, %v3568
        %v3570 = vpop.f32.mrf.mxu0
        %v3571 = vadd.f32 0.0, %v3570
        %3572 = vmatmul.bf16.gmra.mxu0 %v3465
        %v3573 = vpop.f32.mrf.mxu0
        %v3574 = vadd.f32 0.0, %v3573
        %v3575 = vpop.f32.mrf.mxu0
        %v3576 = vadd.f32 0.0, %v3575
        %3577 = vmatmul.bf16.gmra.mxu0 %v3468
        %v3578 = vpop.f32.mrf.mxu0
        %v3579 = vadd.f32 0.0, %v3578
        %v3580 = vpop.f32.mrf.mxu0
        %v3581 = vadd.f32 0.0, %v3580
        %3582 = vdwg.mxu0
        %v3583 = vadd.f32 %v1149, %v3544
        %v3584 = vadd.f32 %v1150, %v3546
        %v3585 = vadd.f32 %v1151, %v3549
        %v3586 = vadd.f32 %v1152, %v3551
        %v3587 = vadd.f32 %v1153, %v3554
        %v3588 = vadd.f32 %v1154, %v3556
        %v3589 = vadd.f32 %v1155, %v3559
        %v3590 = vadd.f32 %v1156, %v3561
        %v3591 = vadd.f32 %v1157, %v3564
        %v3592 = vadd.f32 %v1158, %v3566
        %v3593 = vadd.f32 %v1159, %v3569
        %v3594 = vadd.f32 %v1160, %v3571
        %v3595 = vadd.f32 %v1161, %v3574
        %v3596 = vadd.f32 %v1162, %v3576
        %v3597 = vadd.f32 %v1163, %v3579
        %v3598 = vadd.f32 %v1164, %v3581
        %3599 = vadd.xlane.f32.xlu0 %v3583
        %v3600 = vpop.xlane.xlu0 %3599
        %3601 = vadd.xlane.f32.xlu0 %v3584
        %v3602 = vpop.xlane.xlu0 %3601
        %3603 = vadd.xlane.f32.xlu0 %v3585
        %v3604 = vpop.xlane.xlu0 %3603
        %3605 = vadd.xlane.f32.xlu0 %v3586
        %v3606 = vpop.xlane.xlu0 %3605
        %3607 = vadd.xlane.f32.xlu0 %v3587
        %v3608 = vpop.xlane.xlu0 %3607
        %3609 = vadd.xlane.f32.xlu0 %v3588
        %v3610 = vpop.xlane.xlu0 %3609
        %3611 = vadd.xlane.f32.xlu0 %v3589
        %v3612 = vpop.xlane.xlu0 %3611
        %3613 = vadd.xlane.f32.xlu0 %v3590
        %v3614 = vpop.xlane.xlu0 %3613
        %3615 = vadd.xlane.f32.xlu0 %v3591
        %v3616 = vpop.xlane.xlu0 %3615
        %3617 = vadd.xlane.f32.xlu0 %v3592
        %v3618 = vpop.xlane.xlu0 %3617
        %3619 = vadd.xlane.f32.xlu0 %v3593
        %v3620 = vpop.xlane.xlu0 %3619
        %3621 = vadd.xlane.f32.xlu0 %v3594
        %v3622 = vpop.xlane.xlu0 %3621
        %3623 = vadd.xlane.f32.xlu0 %v3595
        %v3624 = vpop.xlane.xlu0 %3623
        %3625 = vadd.xlane.f32.xlu0 %v3596
        %v3626 = vpop.xlane.xlu0 %3625
        %3627 = vadd.xlane.f32.xlu0 %v3597
        %v3628 = vpop.xlane.xlu0 %3627
        %3629 = vadd.xlane.f32.xlu0 %v3598
        %v3630 = vpop.xlane.xlu0 %3629
        %v3631 = vmul.f32 %v3600, %v838
        %v3632 = vmul.f32 %v3602, %v838
        %v3633 = vmul.f32 %v3604, %v838
        %v3634 = vmul.f32 %v3606, %v838
        %v3635 = vmul.f32 %v3608, %v838
        %v3636 = vmul.f32 %v3610, %v838
        %v3637 = vmul.f32 %v3612, %v838
        %v3638 = vmul.f32 %v3614, %v838
        %v3639 = vmul.f32 %v3616, %v838
        %v3640 = vmul.f32 %v3618, %v838
        %v3641 = vmul.f32 %v3620, %v838
        %v3642 = vmul.f32 %v3622, %v838
        %v3643 = vmul.f32 %v3624, %v838
        %v3644 = vmul.f32 %v3626, %v838
        %v3645 = vmul.f32 %v3628, %v838
        %v3646 = vmul.f32 %v3630, %v838
        %v3647 = vsub.f32 %v3583, %v3631
        %v3648 = vsub.f32 %v3584, %v3632
        %v3649 = vsub.f32 %v3585, %v3633
        %v3650 = vsub.f32 %v3586, %v3634
        %v3651 = vsub.f32 %v3587, %v3635
        %v3652 = vsub.f32 %v3588, %v3636
        %v3653 = vsub.f32 %v3589, %v3637
        %v3654 = vsub.f32 %v3590, %v3638
        %v3655 = vsub.f32 %v3591, %v3639
        %v3656 = vsub.f32 %v3592, %v3640
        %v3657 = vsub.f32 %v3593, %v3641
        %v3658 = vsub.f32 %v3594, %v3642
        %v3659 = vsub.f32 %v3595, %v3643
        %v3660 = vsub.f32 %v3596, %v3644
        %v3661 = vsub.f32 %v3597, %v3645
        %v3662 = vsub.f32 %v3598, %v3646
        %v3663 = vmul.f32 %v3647, %v3647
        %v3664 = vmul.f32 %v3648, %v3648
        %v3665 = vmul.f32 %v3649, %v3649
        %v3666 = vmul.f32 %v3650, %v3650
        %v3667 = vmul.f32 %v3651, %v3651
        %v3668 = vmul.f32 %v3652, %v3652
        %v3669 = vmul.f32 %v3653, %v3653
        %v3670 = vmul.f32 %v3654, %v3654
        %v3671 = vmul.f32 %v3655, %v3655
        %v3672 = vmul.f32 %v3656, %v3656
        %v3673 = vmul.f32 %v3657, %v3657
        %v3674 = vmul.f32 %v3658, %v3658
        %v3675 = vmul.f32 %v3659, %v3659
        %v3676 = vmul.f32 %v3660, %v3660
        %v3677 = vmul.f32 %v3661, %v3661
        %v3678 = vmul.f32 %v3662, %v3662
        %3679 = vadd.xlane.f32.xlu0 %v3663
        %v3680 = vpop.xlane.xlu0 %3679
        %3681 = vadd.xlane.f32.xlu0 %v3664
        %v3682 = vpop.xlane.xlu0 %3681
        %3683 = vadd.xlane.f32.xlu0 %v3665
        %v3684 = vpop.xlane.xlu0 %3683
        %3685 = vadd.xlane.f32.xlu0 %v3666
        %v3686 = vpop.xlane.xlu0 %3685
        %3687 = vadd.xlane.f32.xlu0 %v3667
        %v3688 = vpop.xlane.xlu0 %3687
        %3689 = vadd.xlane.f32.xlu0 %v3668
        %v3690 = vpop.xlane.xlu0 %3689
        %3691 = vadd.xlane.f32.xlu0 %v3669
        %v3692 = vpop.xlane.xlu0 %3691
        %3693 = vadd.xlane.f32.xlu0 %v3670
        %v3694 = vpop.xlane.xlu0 %3693
        %3695 = vadd.xlane.f32.xlu0 %v3671
        %v3696 = vpop.xlane.xlu0 %3695
        %3697 = vadd.xlane.f32.xlu0 %v3672
        %v3698 = vpop.xlane.xlu0 %3697
        %3699 = vadd.xlane.f32.xlu0 %v3673
        %v3700 = vpop.xlane.xlu0 %3699
        %3701 = vadd.xlane.f32.xlu0 %v3674
        %v3702 = vpop.xlane.xlu0 %3701
        %3703 = vadd.xlane.f32.xlu0 %v3675
        %v3704 = vpop.xlane.xlu0 %3703
        %3705 = vadd.xlane.f32.xlu0 %v3676
        %v3706 = vpop.xlane.xlu0 %3705
        %3707 = vadd.xlane.f32.xlu0 %v3677
        %v3708 = vpop.xlane.xlu0 %3707
        %3709 = vadd.xlane.f32.xlu0 %v3678
        %v3710 = vpop.xlane.xlu0 %3709
        %v3711 = vmul.f32 %v3680, %v838
        %v3712 = vmul.f32 %v3682, %v838
        %v3713 = vmul.f32 %v3684, %v838
        %v3714 = vmul.f32 %v3686, %v838
        %v3715 = vmul.f32 %v3688, %v838
        %v3716 = vmul.f32 %v3690, %v838
        %v3717 = vmul.f32 %v3692, %v838
        %v3718 = vmul.f32 %v3694, %v838
        %v3719 = vmul.f32 %v3696, %v838
        %v3720 = vmul.f32 %v3698, %v838
        %v3721 = vmul.f32 %v3700, %v838
        %v3722 = vmul.f32 %v3702, %v838
        %v3723 = vmul.f32 %v3704, %v838
        %v3724 = vmul.f32 %v3706, %v838
        %v3725 = vmul.f32 %v3708, %v838
        %v3726 = vmul.f32 %v3710, %v838
        %v3727 = vadd.f32 %v3711, 1e-05
        %v3728 = vadd.f32 %v3712, 1e-05
        %v3729 = vadd.f32 %v3713, 1e-05
        %v3730 = vadd.f32 %v3714, 1e-05
        %v3731 = vadd.f32 %v3715, 1e-05
        %v3732 = vadd.f32 %v3716, 1e-05
        %v3733 = vadd.f32 %v3717, 1e-05
        %v3734 = vadd.f32 %v3718, 1e-05
        %v3735 = vadd.f32 %v3719, 1e-05
        %v3736 = vadd.f32 %v3720, 1e-05
        %v3737 = vadd.f32 %v3721, 1e-05
        %v3738 = vadd.f32 %v3722, 1e-05
        %v3739 = vadd.f32 %v3723, 1e-05
        %v3740 = vadd.f32 %v3724, 1e-05
        %v3741 = vadd.f32 %v3725, 1e-05
        %v3742 = vadd.f32 %v3726, 1e-05
        %v3743 = vrsqrt.pop %v3727
        %v3744 = vmul.f32 %v3743, %v3727
        %v3745 = vmul.f32 %v3744, %v3743
        %v3746 = vmul.f32 0.5, %v3745
        %v3747 = vsub.f32 1.5, %v3746
        %v3748 = vmul.f32 %v3743, %v3747
        %vm3749 = vweird.f32 %v3727
        %vm3750 = vweird.f32 %v3743
        %vm3751 = vmor %vm3749, %vm3750
        %v3752 = vsel %vm3751, %v3743, %v3748
        %v3753 = vrsqrt.pop %v3728
        %v3754 = vmul.f32 %v3753, %v3728
        %v3755 = vmul.f32 %v3754, %v3753
        %v3756 = vmul.f32 0.5, %v3755
        %v3757 = vsub.f32 1.5, %v3756
        %v3758 = vmul.f32 %v3753, %v3757
        %vm3759 = vweird.f32 %v3728
        %vm3760 = vweird.f32 %v3753
        %vm3761 = vmor %vm3759, %vm3760
        %v3762 = vsel %vm3761, %v3753, %v3758
        %v3763 = vrsqrt.pop %v3729
        %v3764 = vmul.f32 %v3763, %v3729
        %v3765 = vmul.f32 %v3764, %v3763
        %v3766 = vmul.f32 0.5, %v3765
        %v3767 = vsub.f32 1.5, %v3766
        %v3768 = vmul.f32 %v3763, %v3767
        %vm3769 = vweird.f32 %v3729
        %vm3770 = vweird.f32 %v3763
        %vm3771 = vmor %vm3769, %vm3770
        %v3772 = vsel %vm3771, %v3763, %v3768
        %v3773 = vrsqrt.pop %v3730
        %v3774 = vmul.f32 %v3773, %v3730
        %v3775 = vmul.f32 %v3774, %v3773
        %v3776 = vmul.f32 0.5, %v3775
        %v3777 = vsub.f32 1.5, %v3776
        %v3778 = vmul.f32 %v3773, %v3777
        %vm3779 = vweird.f32 %v3730
        %vm3780 = vweird.f32 %v3773
        %vm3781 = vmor %vm3779, %vm3780
        %v3782 = vsel %vm3781, %v3773, %v3778
        %v3783 = vrsqrt.pop %v3731
        %v3784 = vmul.f32 %v3783, %v3731
        %v3785 = vmul.f32 %v3784, %v3783
        %v3786 = vmul.f32 0.5, %v3785
        %v3787 = vsub.f32 1.5, %v3786
        %v3788 = vmul.f32 %v3783, %v3787
        %vm3789 = vweird.f32 %v3731
        %vm3790 = vweird.f32 %v3783
        %vm3791 = vmor %vm3789, %vm3790
        %v3792 = vsel %vm3791, %v3783, %v3788
        %v3793 = vrsqrt.pop %v3732
        %v3794 = vmul.f32 %v3793, %v3732
        %v3795 = vmul.f32 %v3794, %v3793
        %v3796 = vmul.f32 0.5, %v3795
        %v3797 = vsub.f32 1.5, %v3796
        %v3798 = vmul.f32 %v3793, %v3797
        %vm3799 = vweird.f32 %v3732
        %vm3800 = vweird.f32 %v3793
        %vm3801 = vmor %vm3799, %vm3800
        %v3802 = vsel %vm3801, %v3793, %v3798
        %v3803 = vrsqrt.pop %v3733
        %v3804 = vmul.f32 %v3803, %v3733
        %v3805 = vmul.f32 %v3804, %v3803
        %v3806 = vmul.f32 0.5, %v3805
        %v3807 = vsub.f32 1.5, %v3806
        %v3808 = vmul.f32 %v3803, %v3807
        %vm3809 = vweird.f32 %v3733
        %vm3810 = vweird.f32 %v3803
        %vm3811 = vmor %vm3809, %vm3810
        %v3812 = vsel %vm3811, %v3803, %v3808
        %v3813 = vrsqrt.pop %v3734
        %v3814 = vmul.f32 %v3813, %v3734
        %v3815 = vmul.f32 %v3814, %v3813
        %v3816 = vmul.f32 0.5, %v3815
        %v3817 = vsub.f32 1.5, %v3816
        %v3818 = vmul.f32 %v3813, %v3817
        %vm3819 = vweird.f32 %v3734
        %vm3820 = vweird.f32 %v3813
        %vm3821 = vmor %vm3819, %vm3820
        %v3822 = vsel %vm3821, %v3813, %v3818
        %v3823 = vrsqrt.pop %v3735
        %v3824 = vmul.f32 %v3823, %v3735
        %v3825 = vmul.f32 %v3824, %v3823
        %v3826 = vmul.f32 0.5, %v3825
        %v3827 = vsub.f32 1.5, %v3826
        %v3828 = vmul.f32 %v3823, %v3827
        %vm3829 = vweird.f32 %v3735
        %vm3830 = vweird.f32 %v3823
        %vm3831 = vmor %vm3829, %vm3830
        %v3832 = vsel %vm3831, %v3823, %v3828
        %v3833 = vrsqrt.pop %v3736
        %v3834 = vmul.f32 %v3833, %v3736
        %v3835 = vmul.f32 %v3834, %v3833
        %v3836 = vmul.f32 0.5, %v3835
        %v3837 = vsub.f32 1.5, %v3836
        %v3838 = vmul.f32 %v3833, %v3837
        %vm3839 = vweird.f32 %v3736
        %vm3840 = vweird.f32 %v3833
        %vm3841 = vmor %vm3839, %vm3840
        %v3842 = vsel %vm3841, %v3833, %v3838
        %v3843 = vrsqrt.pop %v3737
        %v3844 = vmul.f32 %v3843, %v3737
        %v3845 = vmul.f32 %v3844, %v3843
        %v3846 = vmul.f32 0.5, %v3845
        %v3847 = vsub.f32 1.5, %v3846
        %v3848 = vmul.f32 %v3843, %v3847
        %vm3849 = vweird.f32 %v3737
        %vm3850 = vweird.f32 %v3843
        %vm3851 = vmor %vm3849, %vm3850
        %v3852 = vsel %vm3851, %v3843, %v3848
        %v3853 = vrsqrt.pop %v3738
        %v3854 = vmul.f32 %v3853, %v3738
        %v3855 = vmul.f32 %v3854, %v3853
        %v3856 = vmul.f32 0.5, %v3855
        %v3857 = vsub.f32 1.5, %v3856
        %v3858 = vmul.f32 %v3853, %v3857
        %vm3859 = vweird.f32 %v3738
        %vm3860 = vweird.f32 %v3853
        %vm3861 = vmor %vm3859, %vm3860
        %v3862 = vsel %vm3861, %v3853, %v3858
        %v3863 = vrsqrt.pop %v3739
        %v3864 = vmul.f32 %v3863, %v3739
        %v3865 = vmul.f32 %v3864, %v3863
        %v3866 = vmul.f32 0.5, %v3865
        %v3867 = vsub.f32 1.5, %v3866
        %v3868 = vmul.f32 %v3863, %v3867
        %vm3869 = vweird.f32 %v3739
        %vm3870 = vweird.f32 %v3863
        %vm3871 = vmor %vm3869, %vm3870
        %v3872 = vsel %vm3871, %v3863, %v3868
        %v3873 = vrsqrt.pop %v3740
        %v3874 = vmul.f32 %v3873, %v3740
        %v3875 = vmul.f32 %v3874, %v3873
        %v3876 = vmul.f32 0.5, %v3875
        %v3877 = vsub.f32 1.5, %v3876
        %v3878 = vmul.f32 %v3873, %v3877
        %vm3879 = vweird.f32 %v3740
        %vm3880 = vweird.f32 %v3873
        %vm3881 = vmor %vm3879, %vm3880
        %v3882 = vsel %vm3881, %v3873, %v3878
        %v3883 = vrsqrt.pop %v3741
        %v3884 = vmul.f32 %v3883, %v3741
        %v3885 = vmul.f32 %v3884, %v3883
        %v3886 = vmul.f32 0.5, %v3885
        %v3887 = vsub.f32 1.5, %v3886
        %v3888 = vmul.f32 %v3883, %v3887
        %vm3889 = vweird.f32 %v3741
        %vm3890 = vweird.f32 %v3883
        %vm3891 = vmor %vm3889, %vm3890
        %v3892 = vsel %vm3891, %v3883, %v3888
        %v3893 = vrsqrt.pop %v3742
        %v3894 = vmul.f32 %v3893, %v3742
        %v3895 = vmul.f32 %v3894, %v3893
        %v3896 = vmul.f32 0.5, %v3895
        %v3897 = vsub.f32 1.5, %v3896
        %v3898 = vmul.f32 %v3893, %v3897
        %vm3899 = vweird.f32 %v3742
        %vm3900 = vweird.f32 %v3893
        %vm3901 = vmor %vm3899, %vm3900
        %v3902 = vsel %vm3901, %v3893, %v3898
        %v3903 = vmul.f32 %v3647, %v3752
        %v3904 = vmul.f32 %v3648, %v3762
        %v3905 = vmul.f32 %v3649, %v3772
        %v3906 = vmul.f32 %v3650, %v3782
        %v3907 = vmul.f32 %v3651, %v3792
        %v3908 = vmul.f32 %v3652, %v3802
        %v3909 = vmul.f32 %v3653, %v3812
        %v3910 = vmul.f32 %v3654, %v3822
        %v3911 = vmul.f32 %v3655, %v3832
        %v3912 = vmul.f32 %v3656, %v3842
        %v3913 = vmul.f32 %v3657, %v3852
        %v3914 = vmul.f32 %v3658, %v3862
        %v3915 = vmul.f32 %v3659, %v3872
        %v3916 = vmul.f32 %v3660, %v3882
        %v3917 = vmul.f32 %v3661, %v3892
        %v3918 = vmul.f32 %v3662, %v3902
        %v3920 = vperm.slane %v798, 0
        %v3922 = vmul.f32 %v3903, %v3920
        %v3923 = vmul.f32 %v3904, %v3920
        %v3924 = vmul.f32 %v3905, %v3920
        %v3925 = vmul.f32 %v3906, %v3920
        %v3926 = vmul.f32 %v3907, %v3920
        %v3927 = vmul.f32 %v3908, %v3920
        %v3928 = vmul.f32 %v3909, %v3920
        %v3929 = vmul.f32 %v3910, %v3920
        %v3930 = vmul.f32 %v3911, %v3920
        %v3931 = vmul.f32 %v3912, %v3920
        %v3932 = vmul.f32 %v3913, %v3920
        %v3933 = vmul.f32 %v3914, %v3920
        %v3934 = vmul.f32 %v3915, %v3920
        %v3935 = vmul.f32 %v3916, %v3920
        %v3936 = vmul.f32 %v3917, %v3920
        %v3937 = vmul.f32 %v3918, %v3920
        %v3939 = vperm.slane %v799, 0
        %v3941 = vadd.f32 %v3922, %v3939
        %v3942 = vadd.f32 %v3923, %v3939
        %v3943 = vadd.f32 %v3924, %v3939
        %v3944 = vadd.f32 %v3925, %v3939
        %v3945 = vadd.f32 %v3926, %v3939
        %v3946 = vadd.f32 %v3927, %v3939
        %v3947 = vadd.f32 %v3928, %v3939
        %v3948 = vadd.f32 %v3929, %v3939
        %v3949 = vadd.f32 %v3930, %v3939
        %v3950 = vadd.f32 %v3931, %v3939
        %v3951 = vadd.f32 %v3932, %v3939
        %v3952 = vadd.f32 %v3933, %v3939
        %v3953 = vadd.f32 %v3934, %v3939
        %v3954 = vadd.f32 %v3935, %v3939
        %v3955 = vadd.f32 %v3936, %v3939
        %v3956 = vadd.f32 %v3937, %v3939
        %v3957 = vpack.c.bf16 %v3942, %v3941
        %v3958 = vpack.c.bf16 %v3944, %v3943
        %v3959 = vpack.c.bf16 %v3946, %v3945
        %v3960 = vpack.c.bf16 %v3948, %v3947
        %v3961 = vpack.c.bf16 %v3950, %v3949
        %v3962 = vpack.c.bf16 %v3952, %v3951
        %v3963 = vpack.c.bf16 %v3954, %v3953
        %v3964 = vpack.c.bf16 %v3956, %v3955
        %v3965 = vld [vmem:[%s626] sm:$0xff]
        %v3966 = vld [vmem:[%s626 + $0x8] sm:$0xff]
        %v3967 = vld [vmem:[%s626 + $0x10] sm:$0xff]
        %v3968 = vld [vmem:[%s626 + $0x18] sm:$0xff]
        %v3969 = vld [vmem:[%s626 + $0x20] sm:$0xff]
        %v3970 = vld [vmem:[%s626 + $0x28] sm:$0xff]
        %v3971 = vld [vmem:[%s626 + $0x30] sm:$0xff]
        %v3972 = vld [vmem:[%s626 + $0x38] sm:$0xff]
        %v3973 = vld [vmem:[%s626 + $0x40] sm:$0xff]
        %v3974 = vld [vmem:[%s626 + $0x48] sm:$0xff]
        %v3975 = vld [vmem:[%s626 + $0x50] sm:$0xff]
        %v3976 = vld [vmem:[%s626 + $0x58] sm:$0xff]
        %v3977 = vld [vmem:[%s626 + $0x60] sm:$0xff]
        %v3978 = vld [vmem:[%s626 + $0x68] sm:$0xff]
        %v3979 = vld [vmem:[%s626 + $0x70] sm:$0xff]
        %v3980 = vld [vmem:[%s626 + $0x78] sm:$0xff]
        %v3981 = vld [vmem:[%s724] sm:$0x3]
        %v3983 = vperm.slane %v3981, 0
        %v3984 = vperm.slane %v3981, 1
        %v4003 = vunpack.c.l.b16 %v3965
        %v4004 = vunpack.c.h.b16 %v3965
        %v4005 = vunpack.c.l.b16 %v3966
        %v4006 = vunpack.c.h.b16 %v3966
        %v4007 = vunpack.c.l.b16 %v3967
        %v4008 = vunpack.c.h.b16 %v3967
        %v4009 = vunpack.c.l.b16 %v3968
        %v4010 = vunpack.c.h.b16 %v3968
        %v4011 = vunpack.c.l.b16 %v3969
        %v4012 = vunpack.c.h.b16 %v3969
        %v4013 = vunpack.c.l.b16 %v3970
        %v4014 = vunpack.c.h.b16 %v3970
        %v4015 = vunpack.c.l.b16 %v3971
        %v4016 = vunpack.c.h.b16 %v3971
        %v4017 = vunpack.c.l.b16 %v3972
        %v4018 = vunpack.c.h.b16 %v3972
        %v4019 = vunpack.c.l.b16 %v3973
        %v4020 = vunpack.c.h.b16 %v3973
        %v4021 = vunpack.c.l.b16 %v3974
        %v4022 = vunpack.c.h.b16 %v3974
        %v4023 = vunpack.c.l.b16 %v3975
        %v4024 = vunpack.c.h.b16 %v3975
        %v4025 = vunpack.c.l.b16 %v3976
        %v4026 = vunpack.c.h.b16 %v3976
        %v4027 = vunpack.c.l.b16 %v3977
        %v4028 = vunpack.c.h.b16 %v3977
        %v4029 = vunpack.c.l.b16 %v3978
        %v4030 = vunpack.c.h.b16 %v3978
        %v4031 = vunpack.c.l.b16 %v3979
        %v4032 = vunpack.c.h.b16 %v3979
        %v4033 = vunpack.c.l.b16 %v3980
        %v4034 = vunpack.c.h.b16 %v3980
        %v4035 = vpack.c.b16 %v4005, %v4003
        %v4036 = vpack.c.b16 %v4006, %v4004
        %v4037 = vpack.c.b16 %v4009, %v4007
        %v4038 = vpack.c.b16 %v4010, %v4008
        %v4039 = vpack.c.b16 %v4013, %v4011
        %v4040 = vpack.c.b16 %v4014, %v4012
        %v4041 = vpack.c.b16 %v4017, %v4015
        %v4042 = vpack.c.b16 %v4018, %v4016
        %v4043 = vpack.c.b16 %v4021, %v4019
        %v4044 = vpack.c.b16 %v4022, %v4020
        %v4045 = vpack.c.b16 %v4025, %v4023
        %v4046 = vpack.c.b16 %v4026, %v4024
        %v4047 = vpack.c.b16 %v4029, %v4027
        %v4048 = vpack.c.b16 %v4030, %v4028
        %v4049 = vpack.c.b16 %v4033, %v4031
        %v4050 = vpack.c.b16 %v4034, %v4032
        %4067 = vmatpush.bf16.msra.mxu0 %v4049
        %4068 = vmatpush.bf16.msra.mxu0 %v4047
        %4069 = vmatpush.bf16.msra.mxu0 %v4045
        %4070 = vmatpush.bf16.msra.mxu0 %v4043
        %4071 = vmatpush.bf16.msra.mxu0 %v4041
        %4072 = vmatpush.bf16.msra.mxu0 %v4039
        %4073 = vmatpush.bf16.msra.mxu0 %v4037
        %4074 = vmatpush.bf16.msra.mxu0 %v4035
        %4075 = vmatmul.bf16.gmra.mxu0 %v3957
        %v4076 = vpop.f32.mrf.mxu0
        %v4077 = vadd.f32 %v3983, %v4076
        %v4078 = vpop.f32.mrf.mxu0
        %v4079 = vadd.f32 %v3983, %v4078
        %4080 = vmatmul.bf16.gmra.mxu0 %v3958
        %v4081 = vpop.f32.mrf.mxu0
        %v4082 = vadd.f32 %v3983, %v4081
        %v4083 = vpop.f32.mrf.mxu0
        %v4084 = vadd.f32 %v3983, %v4083
        %4085 = vmatmul.bf16.gmra.mxu0 %v3959
        %v4086 = vpop.f32.mrf.mxu0
        %v4087 = vadd.f32 %v3983, %v4086
        %v4088 = vpop.f32.mrf.mxu0
        %v4089 = vadd.f32 %v3983, %v4088
        %4090 = vmatmul.bf16.gmra.mxu0 %v3960
        %v4091 = vpop.f32.mrf.mxu0
        %v4092 = vadd.f32 %v3983, %v4091
        %v4093 = vpop.f32.mrf.mxu0
        %v4094 = vadd.f32 %v3983, %v4093
        %4095 = vmatmul.bf16.gmra.mxu0 %v3961
        %v4096 = vpop.f32.mrf.mxu0
        %v4097 = vadd.f32 %v3983, %v4096
        %v4098 = vpop.f32.mrf.mxu0
        %v4099 = vadd.f32 %v3983, %v4098
        %4100 = vmatmul.bf16.gmra.mxu0 %v3962
        %v4101 = vpop.f32.mrf.mxu0
        %v4102 = vadd.f32 %v3983, %v4101
        %v4103 = vpop.f32.mrf.mxu0
        %v4104 = vadd.f32 %v3983, %v4103
        %4105 = vmatmul.bf16.gmra.mxu0 %v3963
        %v4106 = vpop.f32.mrf.mxu0
        %v4107 = vadd.f32 %v3983, %v4106
        %v4108 = vpop.f32.mrf.mxu0
        %v4109 = vadd.f32 %v3983, %v4108
        %4110 = vmatmul.bf16.gmra.mxu0 %v3964
        %v4111 = vpop.f32.mrf.mxu0
        %v4112 = vadd.f32 %v3983, %v4111
        %v4113 = vpop.f32.mrf.mxu0
        %v4114 = vadd.f32 %v3983, %v4113
        %4115 = vdwg.mxu0
        %4116 = vmatpush.bf16.msra.mxu0 %v4050
        %4117 = vmatpush.bf16.msra.mxu0 %v4048
        %4118 = vmatpush.bf16.msra.mxu0 %v4046
        %4119 = vmatpush.bf16.msra.mxu0 %v4044
        %4120 = vmatpush.bf16.msra.mxu0 %v4042
        %4121 = vmatpush.bf16.msra.mxu0 %v4040
        %4122 = vmatpush.bf16.msra.mxu0 %v4038
        %4123 = vmatpush.bf16.msra.mxu0 %v4036
        %4124 = vmatmul.bf16.gmra.mxu0 %v3957
        %v4125 = vpop.f32.mrf.mxu0
        %v4126 = vadd.f32 %v3984, %v4125
        %v4127 = vpop.f32.mrf.mxu0
        %v4128 = vadd.f32 %v3984, %v4127
        %4129 = vmatmul.bf16.gmra.mxu0 %v3958
        %v4130 = vpop.f32.mrf.mxu0
        %v4131 = vadd.f32 %v3984, %v4130
        %v4132 = vpop.f32.mrf.mxu0
        %v4133 = vadd.f32 %v3984, %v4132
        %4134 = vmatmul.bf16.gmra.mxu0 %v3959
        %v4135 = vpop.f32.mrf.mxu0
        %v4136 = vadd.f32 %v3984, %v4135
        %v4137 = vpop.f32.mrf.mxu0
        %v4138 = vadd.f32 %v3984, %v4137
        %4139 = vmatmul.bf16.gmra.mxu0 %v3960
        %v4140 = vpop.f32.mrf.mxu0
        %v4141 = vadd.f32 %v3984, %v4140
        %v4142 = vpop.f32.mrf.mxu0
        %v4143 = vadd.f32 %v3984, %v4142
        %4144 = vmatmul.bf16.gmra.mxu0 %v3961
        %v4145 = vpop.f32.mrf.mxu0
        %v4146 = vadd.f32 %v3984, %v4145
        %v4147 = vpop.f32.mrf.mxu0
        %v4148 = vadd.f32 %v3984, %v4147
        %4149 = vmatmul.bf16.gmra.mxu0 %v3962
        %v4150 = vpop.f32.mrf.mxu0
        %v4151 = vadd.f32 %v3984, %v4150
        %v4152 = vpop.f32.mrf.mxu0
        %v4153 = vadd.f32 %v3984, %v4152
        %4154 = vmatmul.bf16.gmra.mxu0 %v3963
        %v4155 = vpop.f32.mrf.mxu0
        %v4156 = vadd.f32 %v3984, %v4155
        %v4157 = vpop.f32.mrf.mxu0
        %v4158 = vadd.f32 %v3984, %v4157
        %4159 = vmatmul.bf16.gmra.mxu0 %v3964
        %v4160 = vpop.f32.mrf.mxu0
        %v4161 = vadd.f32 %v3984, %v4160
        %v4162 = vpop.f32.mrf.mxu0
        %v4163 = vadd.f32 %v3984, %v4162
        %4164 = vdwg.mxu0
        %v4165 = vpack.c.bf16 %v4079, %v4077
        %v4166 = vpack.c.bf16 %v4128, %v4126
        %v4167 = vpack.c.bf16 %v4084, %v4082
        %v4168 = vpack.c.bf16 %v4133, %v4131
        %v4169 = vpack.c.bf16 %v4089, %v4087
        %v4170 = vpack.c.bf16 %v4138, %v4136
        %v4171 = vpack.c.bf16 %v4094, %v4092
        %v4172 = vpack.c.bf16 %v4143, %v4141
        %v4173 = vpack.c.bf16 %v4099, %v4097
        %v4174 = vpack.c.bf16 %v4148, %v4146
        %v4175 = vpack.c.bf16 %v4104, %v4102
        %v4176 = vpack.c.bf16 %v4153, %v4151
        %v4177 = vpack.c.bf16 %v4109, %v4107
        %v4178 = vpack.c.bf16 %v4158, %v4156
        %v4179 = vpack.c.bf16 %v4114, %v4112
        %v4180 = vpack.c.bf16 %v4163, %v4161
        %v4181 = vld [vmem:[%s636] sm:$0xf]
        %v4182 = vld [vmem:[%s636 + $0x4] sm:$0xf]
        %v4183 = vld [vmem:[%s636 + $0x8] sm:$0xf]
        %v4184 = vld [vmem:[%s636 + $0xc] sm:$0xf]
        %v4185 = vld [vmem:[%s636 + $0x10] sm:$0xf]
        %v4186 = vld [vmem:[%s636 + $0x14] sm:$0xf]
        %v4187 = vld [vmem:[%s636 + $0x18] sm:$0xf]
        %v4188 = vld [vmem:[%s636 + $0x1c] sm:$0xf]
        %v4189 = vld [vmem:[%s636 + $0x20] sm:$0xf]
        %v4190 = vld [vmem:[%s636 + $0x24] sm:$0xf]
        %v4191 = vld [vmem:[%s636 + $0x28] sm:$0xf]
        %v4192 = vld [vmem:[%s636 + $0x2c] sm:$0xf]
        %v4193 = vld [vmem:[%s636 + $0x30] sm:$0xf]
        %v4194 = vld [vmem:[%s636 + $0x34] sm:$0xf]
        %v4195 = vld [vmem:[%s636 + $0x38] sm:$0xf]
        %v4196 = vld [vmem:[%s636 + $0x3c] sm:$0xf]
        %v4197 = vld [vmem:[%s636 + $0x40] sm:$0xf]
        %v4198 = vld [vmem:[%s636 + $0x44] sm:$0xf]
        %v4199 = vld [vmem:[%s636 + $0x48] sm:$0xf]
        %v4200 = vld [vmem:[%s636 + $0x4c] sm:$0xf]
        %v4201 = vld [vmem:[%s636 + $0x50] sm:$0xf]
        %v4202 = vld [vmem:[%s636 + $0x54] sm:$0xf]
        %v4203 = vld [vmem:[%s636 + $0x58] sm:$0xf]
        %v4204 = vld [vmem:[%s636 + $0x5c] sm:$0xf]
        %v4205 = vld [vmem:[%s636 + $0x60] sm:$0xf]
        %v4206 = vld [vmem:[%s636 + $0x64] sm:$0xf]
        %v4207 = vld [vmem:[%s636 + $0x68] sm:$0xf]
        %v4208 = vld [vmem:[%s636 + $0x6c] sm:$0xf]
        %v4209 = vld [vmem:[%s636 + $0x70] sm:$0xf]
        %v4210 = vld [vmem:[%s636 + $0x74] sm:$0xf]
        %v4211 = vld [vmem:[%s636 + $0x78] sm:$0xf]
        %v4212 = vld [vmem:[%s636 + $0x7c] sm:$0xf]
        %v4213 = vld [vmem:[%s727] sm:$0x1]
        %v4215 = vperm.slane %v4213, 0
        %v4249 = vunpack.c.l.b16 %v4181
        %v4250 = vunpack.c.l.b16 %v4182
        %v4251 = vunpack.c.l.b16 %v4183
        %v4252 = vunpack.c.l.b16 %v4184
        %v4253 = vunpack.c.l.b16 %v4185
        %v4254 = vunpack.c.l.b16 %v4186
        %v4255 = vunpack.c.l.b16 %v4187
        %v4256 = vunpack.c.l.b16 %v4188
        %v4257 = vunpack.c.l.b16 %v4189
        %v4258 = vunpack.c.l.b16 %v4190
        %v4259 = vunpack.c.l.b16 %v4191
        %v4260 = vunpack.c.l.b16 %v4192
        %v4261 = vunpack.c.l.b16 %v4193
        %v4262 = vunpack.c.l.b16 %v4194
        %v4263 = vunpack.c.l.b16 %v4195
        %v4264 = vunpack.c.l.b16 %v4196
        %v4265 = vunpack.c.l.b16 %v4197
        %v4266 = vunpack.c.l.b16 %v4198
        %v4267 = vunpack.c.l.b16 %v4199
        %v4268 = vunpack.c.l.b16 %v4200
        %v4269 = vunpack.c.l.b16 %v4201
        %v4270 = vunpack.c.l.b16 %v4202
        %v4271 = vunpack.c.l.b16 %v4203
        %v4272 = vunpack.c.l.b16 %v4204
        %v4273 = vunpack.c.l.b16 %v4205
        %v4274 = vunpack.c.l.b16 %v4206
        %v4275 = vunpack.c.l.b16 %v4207
        %v4276 = vunpack.c.l.b16 %v4208
        %v4277 = vunpack.c.l.b16 %v4209
        %v4278 = vunpack.c.l.b16 %v4210
        %v4279 = vunpack.c.l.b16 %v4211
        %v4280 = vunpack.c.l.b16 %v4212
        %v4281 = vpack.c.b16 %v4250, %v4249
        %v4282 = vpack.c.b16 %v4252, %v4251
        %v4283 = vpack.c.b16 %v4254, %v4253
        %v4284 = vpack.c.b16 %v4256, %v4255
        %v4285 = vpack.c.b16 %v4258, %v4257
        %v4286 = vpack.c.b16 %v4260, %v4259
        %v4287 = vpack.c.b16 %v4262, %v4261
        %v4288 = vpack.c.b16 %v4264, %v4263
        %v4289 = vpack.c.b16 %v4266, %v4265
        %v4290 = vpack.c.b16 %v4268, %v4267
        %v4291 = vpack.c.b16 %v4270, %v4269
        %v4292 = vpack.c.b16 %v4272, %v4271
        %v4293 = vpack.c.b16 %v4274, %v4273
        %v4294 = vpack.c.b16 %v4276, %v4275
        %v4295 = vpack.c.b16 %v4278, %v4277
        %v4296 = vpack.c.b16 %v4280, %v4279
        %4313 = vmatpush.bf16.msra.mxu0 %v4288
        %4314 = vmatpush.bf16.msra.mxu0 %v4287
        %4315 = vmatpush.bf16.msra.mxu0 %v4286
        %4316 = vmatpush.bf16.msra.mxu0 %v4285
        %4317 = vmatpush.bf16.msra.mxu0 %v4284
        %4318 = vmatpush.bf16.msra.mxu0 %v4283
        %4319 = vmatpush.bf16.msra.mxu0 %v4282
        %4320 = vmatpush.bf16.msra.mxu0 %v4281
        %4321 = vmatmul.bf16.gmra.mxu0 %v4165
        %v4322 = vpop.f32.mrf.mxu0
        %v4323 = vadd.f32 %v4215, %v4322
        %v4324 = vpop.f32.mrf.mxu0
        %v4325 = vadd.f32 %v4215, %v4324
        %4326 = vmatmul.bf16.gmra.mxu0 %v4167
        %v4327 = vpop.f32.mrf.mxu0
        %v4328 = vadd.f32 %v4215, %v4327
        %v4329 = vpop.f32.mrf.mxu0
        %v4330 = vadd.f32 %v4215, %v4329
        %4331 = vmatmul.bf16.gmra.mxu0 %v4169
        %v4332 = vpop.f32.mrf.mxu0
        %v4333 = vadd.f32 %v4215, %v4332
        %v4334 = vpop.f32.mrf.mxu0
        %v4335 = vadd.f32 %v4215, %v4334
        %4336 = vmatmul.bf16.gmra.mxu0 %v4171
        %v4337 = vpop.f32.mrf.mxu0
        %v4338 = vadd.f32 %v4215, %v4337
        %v4339 = vpop.f32.mrf.mxu0
        %v4340 = vadd.f32 %v4215, %v4339
        %4341 = vmatmul.bf16.gmra.mxu0 %v4173
        %v4342 = vpop.f32.mrf.mxu0
        %v4343 = vadd.f32 %v4215, %v4342
        %v4344 = vpop.f32.mrf.mxu0
        %v4345 = vadd.f32 %v4215, %v4344
        %4346 = vmatmul.bf16.gmra.mxu0 %v4175
        %v4347 = vpop.f32.mrf.mxu0
        %v4348 = vadd.f32 %v4215, %v4347
        %v4349 = vpop.f32.mrf.mxu0
        %v4350 = vadd.f32 %v4215, %v4349
        %4351 = vmatmul.bf16.gmra.mxu0 %v4177
        %v4352 = vpop.f32.mrf.mxu0
        %v4353 = vadd.f32 %v4215, %v4352
        %v4354 = vpop.f32.mrf.mxu0
        %v4355 = vadd.f32 %v4215, %v4354
        %4356 = vmatmul.bf16.gmra.mxu0 %v4179
        %v4357 = vpop.f32.mrf.mxu0
        %v4358 = vadd.f32 %v4215, %v4357
        %v4359 = vpop.f32.mrf.mxu0
        %v4360 = vadd.f32 %v4215, %v4359
        %4361 = vdwg.mxu0
        %4362 = vmatpush.bf16.msra.mxu0 %v4296
        %4363 = vmatpush.bf16.msra.mxu0 %v4295
        %4364 = vmatpush.bf16.msra.mxu0 %v4294
        %4365 = vmatpush.bf16.msra.mxu0 %v4293
        %4366 = vmatpush.bf16.msra.mxu0 %v4292
        %4367 = vmatpush.bf16.msra.mxu0 %v4291
        %4368 = vmatpush.bf16.msra.mxu0 %v4290
        %4369 = vmatpush.bf16.msra.mxu0 %v4289
        %4370 = vmatmul.bf16.gmra.mxu0 %v4166
        %v4371 = vpop.f32.mrf.mxu0
        %v4372 = vadd.f32 %v4323, %v4371
        %v4373 = vpop.f32.mrf.mxu0
        %v4374 = vadd.f32 %v4325, %v4373
        %4375 = vmatmul.bf16.gmra.mxu0 %v4168
        %v4376 = vpop.f32.mrf.mxu0
        %v4377 = vadd.f32 %v4328, %v4376
        %v4378 = vpop.f32.mrf.mxu0
        %v4379 = vadd.f32 %v4330, %v4378
        %4380 = vmatmul.bf16.gmra.mxu0 %v4170
        %v4381 = vpop.f32.mrf.mxu0
        %v4382 = vadd.f32 %v4333, %v4381
        %v4383 = vpop.f32.mrf.mxu0
        %v4384 = vadd.f32 %v4335, %v4383
        %4385 = vmatmul.bf16.gmra.mxu0 %v4172
        %v4386 = vpop.f32.mrf.mxu0
        %v4387 = vadd.f32 %v4338, %v4386
        %v4388 = vpop.f32.mrf.mxu0
        %v4389 = vadd.f32 %v4340, %v4388
        %4390 = vmatmul.bf16.gmra.mxu0 %v4174
        %v4391 = vpop.f32.mrf.mxu0
        %v4392 = vadd.f32 %v4343, %v4391
        %v4393 = vpop.f32.mrf.mxu0
        %v4394 = vadd.f32 %v4345, %v4393
        %4395 = vmatmul.bf16.gmra.mxu0 %v4176
        %v4396 = vpop.f32.mrf.mxu0
        %v4397 = vadd.f32 %v4348, %v4396
        %v4398 = vpop.f32.mrf.mxu0
        %v4399 = vadd.f32 %v4350, %v4398
        %4400 = vmatmul.bf16.gmra.mxu0 %v4178
        %v4401 = vpop.f32.mrf.mxu0
        %v4402 = vadd.f32 %v4353, %v4401
        %v4403 = vpop.f32.mrf.mxu0
        %v4404 = vadd.f32 %v4355, %v4403
        %4405 = vmatmul.bf16.gmra.mxu0 %v4180
        %v4406 = vpop.f32.mrf.mxu0
        %v4407 = vadd.f32 %v4358, %v4406
        %v4408 = vpop.f32.mrf.mxu0
        %v4409 = vadd.f32 %v4360, %v4408
        %4410 = vdwg.mxu0
        %v4411 = vadd.f32 %v3941, %v4372
        %v4412 = vadd.f32 %v3942, %v4374
        %v4413 = vadd.f32 %v3943, %v4377
        %v4414 = vadd.f32 %v3944, %v4379
        %v4415 = vadd.f32 %v3945, %v4382
        %v4416 = vadd.f32 %v3946, %v4384
        %v4417 = vadd.f32 %v3947, %v4387
        %v4418 = vadd.f32 %v3948, %v4389
        %v4419 = vadd.f32 %v3949, %v4392
        %v4420 = vadd.f32 %v3950, %v4394
        %v4421 = vadd.f32 %v3951, %v4397
        %v4422 = vadd.f32 %v3952, %v4399
        %v4423 = vadd.f32 %v3953, %v4402
        %v4424 = vadd.f32 %v3954, %v4404
        %v4425 = vadd.f32 %v3955, %v4407
        %v4426 = vadd.f32 %v3956, %v4409
        %v4427 = vpack.c.bf16 %v4411, %v4411
        %v4428 = vpack.c.bf16 %v4412, %v4412
        %v4429 = vpack.c.bf16 %v4413, %v4413
        %v4430 = vpack.c.bf16 %v4414, %v4414
        %v4431 = vpack.c.bf16 %v4415, %v4415
        %v4432 = vpack.c.bf16 %v4416, %v4416
        %v4433 = vpack.c.bf16 %v4417, %v4417
        %v4434 = vpack.c.bf16 %v4418, %v4418
        %v4435 = vpack.c.bf16 %v4419, %v4419
        %v4436 = vpack.c.bf16 %v4420, %v4420
        %v4437 = vpack.c.bf16 %v4421, %v4421
        %v4438 = vpack.c.bf16 %v4422, %v4422
        %v4439 = vpack.c.bf16 %v4423, %v4423
        %v4440 = vpack.c.bf16 %v4424, %v4424
        %v4441 = vpack.c.bf16 %v4425, %v4425
        %v4442 = vpack.c.bf16 %v4426, %v4426
        %4443 = vst [vmem:[#allocation2] sm:$0xf] %v4427
        %4444 = vst [vmem:[#allocation2 + $0x4] sm:$0xf] %v4428
        %4445 = vst [vmem:[#allocation2 + $0x8] sm:$0xf] %v4429
        %4446 = vst [vmem:[#allocation2 + $0xc] sm:$0xf] %v4430
        %4447 = vst [vmem:[#allocation2 + $0x10] sm:$0xf] %v4431
        %4448 = vst [vmem:[#allocation2 + $0x14] sm:$0xf] %v4432
        %4449 = vst [vmem:[#allocation2 + $0x18] sm:$0xf] %v4433
        %4450 = vst [vmem:[#allocation2 + $0x1c] sm:$0xf] %v4434
        %4451 = vst [vmem:[#allocation2 + $0x20] sm:$0xf] %v4435
        %4452 = vst [vmem:[#allocation2 + $0x24] sm:$0xf] %v4436
        %4453 = vst [vmem:[#allocation2 + $0x28] sm:$0xf] %v4437
        %4454 = vst [vmem:[#allocation2 + $0x2c] sm:$0xf] %v4438
        %4455 = vst [vmem:[#allocation2 + $0x30] sm:$0xf] %v4439
        %4456 = vst [vmem:[#allocation2 + $0x34] sm:$0xf] %v4440
        %4457 = vst [vmem:[#allocation2 + $0x38] sm:$0xf] %v4441
        %4458 = vst [vmem:[#allocation2 + $0x3c] sm:$0xf] %v4442
        %p4459 = scmp.eq.s32.totalorder %s45, 1
        // Predicated region
        $region101: #{tpu_custom_call.1} parent=63 // pred_check
          %p4460 = pneg %p4459
        $region102: #{tpu_custom_call.1} parent=63 // pred_check_branch
          %4462 = sbr.rel (%p4460) target = $region104
        $region103: #{tpu_custom_call.1} parent=63 // pred_region
          %4463 = vst [vmem:[%s717] sm:$0xf] %v4427
          %4464 = vst [vmem:[%s717 + $0x4] sm:$0xf] %v4428
          %4465 = vst [vmem:[%s717 + $0x8] sm:$0xf] %v4429
          %4466 = vst [vmem:[%s717 + $0xc] sm:$0xf] %v4430
          %4467 = vst [vmem:[%s717 + $0x10] sm:$0xf] %v4431
          %4468 = vst [vmem:[%s717 + $0x14] sm:$0xf] %v4432
          %4469 = vst [vmem:[%s717 + $0x18] sm:$0xf] %v4433
          %4470 = vst [vmem:[%s717 + $0x1c] sm:$0xf] %v4434
          %4471 = vst [vmem:[%s717 + $0x20] sm:$0xf] %v4435
          %4472 = vst [vmem:[%s717 + $0x24] sm:$0xf] %v4436
          %4473 = vst [vmem:[%s717 + $0x28] sm:$0xf] %v4437
          %4474 = vst [vmem:[%s717 + $0x2c] sm:$0xf] %v4438
          %4475 = vst [vmem:[%s717 + $0x30] sm:$0xf] %v4439
          %4476 = vst [vmem:[%s717 + $0x34] sm:$0xf] %v4440
          %4477 = vst [vmem:[%s717 + $0x38] sm:$0xf] %v4441
          %4478 = vst [vmem:[%s717 + $0x3c] sm:$0xf] %v4442
        $region104: #{tpu_custom_call.1} parent=63 // pred_fallthru
          _
        %s4479 = sand.u32 %s346, 1
        %s4480 = scalar_lea.sflag [#allocation5], %s4479
        %s4481 = sand.u32 %s346, 1
        %s4482 = smul.addr %s4481, 64
        %s4483 = scalar_lea.vmem [#allocation17], %s4482
        // Predicated region
        $region105: #{tpu_custom_call.1} parent=63 // pred_check
          %p4484 = pneg %p356
        $region106: #{tpu_custom_call.1} parent=63 // pred_check_branch
          %4486 = sbr.rel (%p4484) target = $region108
        $region107: #{tpu_custom_call.1} parent=63 // pred_region
          %4488 = vsyncadd %s4480, 0
          %s4489 = smul.addr %s44, 16
          %s4490 = smul.addr %s4489, 4
          %s4491 = scalar_lea.hbm %s11, %s4490
          %s4492 = sshll.u32 %s4483, 4
          %s4493 = int_to_ptr.vmem [resolvable:$true] %s4492
          %s4494 = sshll.u32 %s4491, 4
          %s4495 = int_to_ptr.hbm [resolvable:$true] %s4494
          %4500 = dma.vmem_to_hbm [thread:$0]  %s4493, 1024, %s4495, %s4480, 64, 64, 4
        $region108: #{tpu_custom_call.1} parent=63 // pred_fallthru
          _
      $region64: #{tpu_custom_call.1} parent=5 // pred_fallthru
        _
      %p4501 = scmp.le.s32.totalorder 2, %s35
      // Predicated region
      $region109: #{tpu_custom_call.1} parent=5 // pred_check
        %p4502 = pneg %p4501
      $region110: #{tpu_custom_call.1} parent=5 // pred_check_branch
        %4504 = sbr.rel (%p4502) target = $region112
      $region111: #{tpu_custom_call.1} parent=5 // pred_region
        %s4505 = ssub.s32 %s35, 2
        // Predicated region
        $region113: #{tpu_custom_call.1} parent=111 // pred_check
          %p4506 = pneg %p362
        $region114: #{tpu_custom_call.1} parent=111 // pred_check_branch
          %4508 = sbr.rel (%p4506) target = $region116
        $region115: #{tpu_custom_call.1} parent=111 // pred_region
          %s4509 = sand.u32 %s347, 1
          %s4510 = scalar_lea.sflag [#allocation5], %s4509
          %s4511 = sand.u32 %s347, 1
          %s4512 = smul.addr %s4511, 64
          %s4513 = scalar_lea.vmem [#allocation17], %s4512
          %4515 = dma.done %s4510, 1024
        $region116: #{tpu_custom_call.1} parent=111 // pred_fallthru
          _
      $region112: #{tpu_custom_call.1} parent=5 // pred_fallthru
        _
    $region6: #{tpu_custom_call.1} parent=1 // loop_footer
      %s39 = sadd.s32 1, %s35
    $region7: #{tpu_custom_call.1} parent=1 // loop_footer_branch
      %34 = sbr.rel target = $region3
    $region8: #{tpu_custom_call.1} parent=1 // loop_exit
      _
    %4516 = vsyncpa [#allocation4], 1
    %s4517 = scalar_lea.sflag [#allocation4], 1
    %4518 = vsyncpa %s4517, 1
    %4519 = vsyncpa [#allocation7], 1
    %s4520 = scalar_lea.sflag [#allocation7], 1
    %4521 = vsyncpa %s4520, 1
    %4522 = vsyncpa [#allocation10], 1
    %s4523 = scalar_lea.sflag [#allocation10], 1
    %4524 = vsyncpa %s4523, 1
    %4525 = vsyncpa [#allocation13], 1
    %s4526 = scalar_lea.sflag [#allocation13], 1
    %4527 = vsyncpa %s4526, 1
    %4528 = vsyncpa [#allocation16], 1
    %s4529 = scalar_lea.sflag [#allocation16], 1
    %4530 = vsyncpa %s4529, 1
    %4531 = vsyncpa [#allocation5], 1
    %s4532 = scalar_lea.sflag [#allocation5], 1
    %4533 = vsyncpa %s4532, 1

</llo_original>
